<compile_context>
chip_gen: v5e
topology: v5e:2x2
jax: 0.10.0
libtpu: 0.0.40
codegen_flags: <defaults>
</compile_context>

<pallas_src>
import functools

import jax
import jax.numpy as jnp
from jax.experimental import pallas as pl
from jax.experimental.pallas import tpu as pltpu


# ----------------------------- config (small) -------------------------------
class Config:
    n_vocab = 32
    embedding = 32
    max_seq_len = 8
    hidden_size = 32
    num_layers = 1          # single layer -> lstm_dropout unused
    dropout = 0.0           # eval mode -> identity
    lstm_dropout = 0.0
    padding_idx = n_vocab - 1


N_OUT_1 = 17
N_OUT_2 = 12
N_OUT_PAD = 128             # lane-dense final store (unmasked vst)


# ------------------------------ fused kernel --------------------------------
def _fused_kernel(ids_ref, wih_ref, bg_ref, whf_ref, whb_ref,
                  w2e_ref, w2hf_ref, w2hb_ref, b2_ref, fcw_ref, fcb_ref,
                  out_ref, pre_acc, *, S, B, H, V):
    """Whole TextMRCNN forward (both branches, both directions), VMEM-resident.

    ids_ref : (S*B, 1) int32 time-major flattened token ids
    wih_ref : (V, 16H) bf16  onehot->gates for [FWD 8H | BWD 8H]; within a
              direction: [I(2H) F(2H) G(2H) O(2H)], each 2H = [branch1 | branch2]
              (embedding tables folded in host-side: tbl_k @ W_ih_{k,dir})
    bg_ref  : (1, 16H) f32   fused gate bias (b_ih + b_hh), same layout
    whf_ref : (2H, 8H) bf16  h_fwd -> FWD gates, block-diagonal per branch
    whb_ref : (2H, 8H) bf16  h_bwd -> BWD gates, block-diagonal per branch
    w2e_ref : (V, 4H)  bf16  onehot -> W2 embedding term, cols [branch1 2H | branch2 2H]
    w2hf/b  : (2H, 4H) bf16  h_fwd / h_bwd -> W2 term, block-diagonal per branch
    b2_ref  : (1, 4H)  f32
    fcw_ref : (4H, 128) bf16 packed fc: rows 0:2H -> cols 0:17, rows 2H:4H -> cols 17:29
    fcb_ref : (1, 128) f32
    out_ref : (B, 128) f32   sigmoid(fc(maxpool(tanh(pre))))
    pre_acc : (S*B, 4H) f32 VMEM accumulator for the W2 pre-activation
    """
    H2, H4, H8, H16 = 2 * H, 4 * H, 8 * H, 16 * H

    # ---- one-hot "embedding" (tables already folded into downstream weights) ---
    ids = ids_ref[...]                                              # (S*B, 1)
    lane = jax.lax.broadcasted_iota(jnp.int32, (S * B, V), 1)
    onehot = jnp.where(lane == ids, 1.0, 0.0).astype(jnp.bfloat16)  # (S*B, V)

    # ---- hoisted input projections (both branches, both directions) ------------
    gates_in = (jnp.dot(onehot, wih_ref[...], preferred_element_type=jnp.float32)
                + bg_ref[...])                                      # (S*B, 16H) f32

    # ---- head accumulator: embedding term + bias -------------------------------
    pre_acc[...] = (jnp.dot(onehot, w2e_ref[...], preferred_element_type=jnp.float32)
                    + b2_ref[...])                                  # (S*B, 4H) f32

    whf = whf_ref[...]
    whb = whb_ref[...]
    w2hf = w2hf_ref[...]
    w2hb = w2hb_ref[...]

    hf = jnp.zeros((B, H2), jnp.bfloat16)   # [h_fwd branch1 | h_fwd branch2]
    hb = jnp.zeros((B, H2), jnp.bfloat16)   # [h_bwd branch1 | h_bwd branch2]
    cf = jnp.zeros((B, H2), jnp.float32)
    cb = jnp.zeros((B, H2), jnp.float32)

    # ---- fused recurrence: 8 chained cells total (fwd time s, bwd time S-1-s) ---
    for s in range(S):
        tf_ = s
        tb_ = S - 1 - s
        gf = (jnp.dot(hf, whf, preferred_element_type=jnp.float32)
              + gates_in[tf_ * B:(tf_ + 1) * B, 0:H8])              # (B, 8H)
        gb = (jnp.dot(hb, whb, preferred_element_type=jnp.float32)
              + gates_in[tb_ * B:(tb_ + 1) * B, H8:H16])            # (B, 8H)
        g_all = jnp.concatenate([gf, gb], axis=1)                   # (B, 16H), vreg-aligned

        sg = jax.nn.sigmoid(g_all)          # ONE EUP pass -> i, f, o slices
        th = jnp.tanh(g_all)                # ONE EUP pass -> g slices

        # forward cells (both branches at once)
        cf = sg[:, H2:2 * H2] * cf + sg[:, 0:H2] * th[:, 2 * H2:3 * H2]
        hf_f32 = sg[:, 3 * H2:4 * H2] * jnp.tanh(cf)
        # backward cells
        cb = (sg[:, H8 + H2:H8 + 2 * H2] * cb
              + sg[:, H8:H8 + H2] * th[:, H8 + 2 * H2:H8 + 3 * H2])
        hb_f32 = sg[:, H8 + 3 * H2:H8 + 4 * H2] * jnp.tanh(cb)

        hf = hf_f32.astype(jnp.bfloat16)
        hb = hb_f32.astype(jnp.bfloat16)

        # head projections hidden->W2 accumulated under the serial chain
        pre_acc[tf_ * B:(tf_ + 1) * B, :] += jnp.dot(
            hf, w2hf, preferred_element_type=jnp.float32)
        pre_acc[tb_ * B:(tb_ + 1) * B, :] += jnp.dot(
            hb, w2hb, preferred_element_type=jnp.float32)

    # ---- head: tanh, max-pool over the sequence, packed fc, sigmoid ------------
    act = jnp.tanh(pre_acc[...])                                    # (S*B, 4H)
    pooled = act[0:B, :]
    for t in range(1, S):
        pooled = jnp.maximum(pooled, act[t * B:(t + 1) * B, :])     # (B, 4H)

    logits = (jnp.dot(pooled.astype(jnp.bfloat16), fcw_ref[...],
                      preferred_element_type=jnp.float32) + fcb_ref[...])
    out_ref[...] = jax.nn.sigmoid(logits)                           # (B, 128) dense store


def _fused_call(ids_tm, p, *, B_pad, S):
    """One pallas_call for the whole model. Returns (B_pad, N_OUT_PAD)."""
    V, _ = p["wih"].shape
    H2 = p["whf"].shape[0]
    H = H2 // 2
    H4 = 4 * H
    NOUT = p["fcw"].shape[1]

    kernel = functools.partial(_fused_kernel, S=S, B=B_pad, H=H, V=V)

    def spec(arr_or_shape):
        shape = arr_or_shape.shape if hasattr(arr_or_shape, "shape") else arr_or_shape
        return pl.BlockSpec(shape, lambda i, _s=shape: (0,) * len(_s))

    return pl.pallas_call(
        kernel,
        out_shape=jax.ShapeDtypeStruct((B_pad, NOUT), jnp.float32),
        grid=(1,),
        in_specs=[
            spec((S * B_pad, 1)),                      # ids (time-major)
            spec(p["wih"]), spec(p["bg"]),             # folded input proj + gate bias
            spec(p["whf"]), spec(p["whb"]),            # block-diag hidden weights
            spec(p["w2e"]), spec(p["w2hf"]), spec(p["w2hb"]), spec(p["b2"]),
            spec(p["fcw"]), spec(p["fcb"]),
        ],
        out_specs=spec((B_pad, NOUT)),
        scratch_shapes=[pltpu.VMEM((S * B_pad, H4), jnp.float32)],   # pre_acc
        compiler_params=pltpu.CompilerParams(
            dimension_semantics=("arbitrary",)),
    )(ids_tm, p["wih"], p["bg"], p["whf"], p["whb"],
      p["w2e"], p["w2hf"], p["w2hb"], p["b2"], p["fcw"], p["fcb"])


# ------------------------------ model wrapper --------------------------------
def complete_short_sentence(x, max_seq_len, padding_idx):
    B, L = x.shape
    if L >= max_seq_len:
        return x[:, :max_seq_len]
    pad = jnp.full((B, max_seq_len - L), padding_idx, dtype=x.dtype)
    return jnp.concatenate([x, pad], axis=1)


def init_params(cfg, key):
    """Build the fused / block-diagonal / embedding-folded weight tensors."""
    E, H, V = cfg.embedding, cfg.hidden_size, cfg.n_vocab
    H2, H4, H8, H16 = 2 * H, 4 * H, 8 * H, 16 * H
    keys = jax.random.split(key, 32)
    ki = iter(range(32))

    def nrm(shape, scale=0.1):
        return scale * jax.random.normal(keys[next(ki)], shape, dtype=jnp.float32)

    wih = jnp.zeros((V, H16), jnp.float32)    # [FWD 8H | BWD 8H]; within: [I|F|G|O] x [br1|br2]
    bg = jnp.zeros((1, H16), jnp.float32)
    whf = jnp.zeros((H2, H8), jnp.float32)    # rows [h_fwd_br1 | h_fwd_br2], block-diag per branch
    whb = jnp.zeros((H2, H8), jnp.float32)
    w2e = jnp.zeros((V, H4), jnp.float32)     # cols [pre_br1 (2H) | pre_br2 (2H)]
    w2hf = jnp.zeros((H2, H4), jnp.float32)
    w2hb = jnp.zeros((H2, H4), jnp.float32)
    b2 = jnp.zeros((1, H4), jnp.float32)
    fcw = jnp.zeros((H4, N_OUT_PAD), jnp.float32)   # cols [br1 logits | br2 logits | 0-pad]
    fcb = jnp.zeros((1, N_OUT_PAD), jnp.float32)

    n_outs = (N_OUT_1, N_OUT_2)
    col_off = (0, N_OUT_1)
    for k in range(2):                        # branch index
        tbl = nrm((V, E)).at[cfg.padding_idx].set(0.0)   # nn.Embedding, padding row = 0
        for d in range(2):                    # 0 = forward, 1 = backward
            wih_T = nrm((E, H4))              # input->gates (transposed), gate cols [i|f|g|o]
            whh_T = nrm((H, H4))              # hidden->gates (transposed)
            bias = nrm((1, H4)) + nrm((1, H4))   # b_ih + b_hh
            folded = tbl @ wih_T              # fold embedding table: (V, 4H)
            for g in range(4):
                cols = slice(d * H8 + g * H2 + k * H, d * H8 + g * H2 + (k + 1) * H)
                wih = wih.at[:, cols].set(folded[:, g * H:(g + 1) * H])
                bg = bg.at[:, cols].set(bias[:, g * H:(g + 1) * H])
                dcols = slice(g * H2 + k * H, g * H2 + (k + 1) * H)
                blk = whh_T[:, g * H:(g + 1) * H]
                if d == 0:
                    whf = whf.at[k * H:(k + 1) * H, dcols].set(blk)
                else:
                    whb = whb.at[k * H:(k + 1) * H, dcols].set(blk)
        # W2_k : Linear(E + 2H -> 2H); input order matches torch.cat((embed, lstm), 2)
        w2_T = nrm((E + H2, H2))
        w2e = w2e.at[:, k * H2:(k + 1) * H2].set(tbl @ w2_T[0:E, :])
        w2hf = w2hf.at[k * H:(k + 1) * H, k * H2:(k + 1) * H2].set(w2_T[E:E + H, :])
        w2hb = w2hb.at[k * H:(k + 1) * H, k * H2:(k + 1) * H2].set(w2_T[E + H:E + H2, :])
        b2 = b2.at[:, k * H2:(k + 1) * H2].set(nrm((1, H2)))
        # fc_k : Linear(2H -> n_out_k), packed so out columns are already concatenated
        fcw = fcw.at[k * H2:(k + 1) * H2,
                     col_off[k]:col_off[k] + n_outs[k]].set(nrm((H2, n_outs[k])))
        fcb = fcb.at[:, col_off[k]:col_off[k] + n_outs[k]].set(nrm((1, n_outs[k])))

    bf16 = lambda a: a.astype(jnp.bfloat16)
    return {"wih": bf16(wih), "bg": bg, "whf": bf16(whf), "whb": bf16(whb),
            "w2e": bf16(w2e), "w2hf": bf16(w2hf), "w2hb": bf16(w2hb),
            "b2": b2, "fcw": bf16(fcw), "fcb": fcb}


@functools.partial(jax.jit, static_argnums=(2, 3))
def text_mrcnn_forward(x_ids, params, max_seq_len, padding_idx):
    x = complete_short_sentence(x_ids, max_seq_len, padding_idx)    # (B, S)
    B, S = x.shape
    B_pad = max(8, ((B + 7) // 8) * 8)                              # sublane-pad batch
    if B_pad > B:
        pad = jnp.full((B_pad - B, S), padding_idx, dtype=x.dtype)
        x = jnp.concatenate([x, pad], axis=0)
    # time-major flattened ids: row index = t * B_pad + b
    ids_tm = jnp.transpose(x, (1, 0)).reshape(S * B_pad, 1).astype(jnp.int32)

    out = _fused_call(ids_tm, params, B_pad=B_pad, S=S)             # (B_pad, 128)
    # cols 0:17 = branch1, 17:29 = branch2 -> already the concatenated, sigmoided output
    return out[:B, :N_OUT_1 + N_OUT_2]                              # (B, 29)


# ----------------------------------- main ------------------------------------
if __name__ == "__main__":
    cfg = Config()
    key = jax.random.PRNGKey(0)
    k_param, k_data = jax.random.split(key)

    params = init_params(cfg, k_param)

    B, seq_in = 2, 6   # shorter than max_seq_len to exercise the padding path
    x_ids = jax.random.randint(k_data, (B, seq_in), 0, cfg.n_vocab - 1,
                               dtype=jnp.int32)

    out = text_mrcnn_forward(x_ids, params, cfg.max_seq_len, cfg.padding_idx)
    out = jax.block_until_ready(out)

    assert out.shape == (B, 29), out.shape
    assert bool(jnp.all(jnp.isfinite(out)))
    assert bool(jnp.all((out >= 0.0) & (out <= 1.0)))
    print("KERNEL_OK")
</pallas_src>

<mosaic_0001>
module attributes {stable_mosaic.version = 11 : i64} {
  func.func @_fused_kernel(%arg0: i32, %arg1: memref<64x1xi32, #tpu.memory_space<vmem>>, %arg2: memref<32x512xbf16, #tpu.memory_space<vmem>>, %arg3: memref<1x512xf32, #tpu.memory_space<vmem>>, %arg4: memref<64x256xbf16, #tpu.memory_space<vmem>>, %arg5: memref<64x256xbf16, #tpu.memory_space<vmem>>, %arg6: memref<32x128xbf16, #tpu.memory_space<vmem>>, %arg7: memref<64x128xbf16, #tpu.memory_space<vmem>>, %arg8: memref<64x128xbf16, #tpu.memory_space<vmem>>, %arg9: memref<1x128xf32, #tpu.memory_space<vmem>>, %arg10: memref<128x128xbf16, #tpu.memory_space<vmem>>, %arg11: memref<1x128xf32, #tpu.memory_space<vmem>>, %arg12: memref<8x128xf32, #tpu.memory_space<vmem>>, %arg13: memref<64x128xf32, #tpu.memory_space<vmem>>) attributes {dimension_semantics = [#tpu.dimension_semantics<arbitrary>], iteration_bounds = array<i64: 1>, scalar_prefetch = 0 : i64, scratch_operands = 1 : i64, tpu.core_type = #tpu.core_type<tc>, window_params = [{pipeline_mode = #tpu.pipeline_mode<synchronous>, transform_indices = @transform_0, window_bounds = array<i64: 64, 1>}, {pipeline_mode = #tpu.pipeline_mode<synchronous>, transform_indices = @transform_1, window_bounds = array<i64: 32, 512>}, {pipeline_mode = #tpu.pipeline_mode<synchronous>, transform_indices = @transform_2, window_bounds = array<i64: 1, 512>}, {pipeline_mode = #tpu.pipeline_mode<synchronous>, transform_indices = @transform_3, window_bounds = array<i64: 64, 256>}, {pipeline_mode = #tpu.pipeline_mode<synchronous>, transform_indices = @transform_4, window_bounds = array<i64: 64, 256>}, {pipeline_mode = #tpu.pipeline_mode<synchronous>, transform_indices = @transform_5, window_bounds = array<i64: 32, 128>}, {pipeline_mode = #tpu.pipeline_mode<synchronous>, transform_indices = @transform_6, window_bounds = array<i64: 64, 128>}, {pipeline_mode = #tpu.pipeline_mode<synchronous>, transform_indices = @transform_7, window_bounds = array<i64: 64, 128>}, {pipeline_mode = #tpu.pipeline_mode<synchronous>, transform_indices = @transform_8, window_bounds = array<i64: 1, 128>}, {pipeline_mode = #tpu.pipeline_mode<synchronous>, transform_indices = @transform_9, window_bounds = array<i64: 128, 128>}, {pipeline_mode = #tpu.pipeline_mode<synchronous>, transform_indices = @transform_10, window_bounds = array<i64: 1, 128>}, {pipeline_mode = #tpu.pipeline_mode<synchronous>, transform_indices = @transform_11, window_bounds = array<i64: 8, 128>}]} {
    %c0 = arith.constant 0 : index
    %c0_0 = arith.constant 0 : index
    %0 = vector.load %arg1[%c0, %c0_0] : memref<64x1xi32, #tpu.memory_space<vmem>>, vector<64x1xi32>
    %1 = tpu.iota {dimensions = array<i32: 1>} : vector<64x32xi32>
    %2 = vector.broadcast %0 : vector<64x1xi32> to vector<64x32xi32>
    %3 = arith.cmpi eq, %1, %2 : vector<64x32xi32>
    %cst = arith.constant 1.000000e+00 : f32
    %cst_1 = arith.constant 0.000000e+00 : f32
    %4 = vector.broadcast %cst : f32 to vector<64x32xf32>
    %5 = vector.broadcast %cst_1 : f32 to vector<64x32xf32>
    %6 = arith.select %3, %4, %5 : vector<64x32xi1>, vector<64x32xf32>
    %7 = arith.truncf %6 : vector<64x32xf32> to vector<64x32xbf16>
    %c0_2 = arith.constant 0 : index
    %c0_3 = arith.constant 0 : index
    %8 = vector.load %arg2[%c0_2, %c0_3] : memref<32x512xbf16, #tpu.memory_space<vmem>>, vector<32x512xbf16>
    %cst_4 = arith.constant dense<0.000000e+00> : vector<64x512xf32>
    %9 = tpu.matmul %7, %8, %cst_4 {dimension_numbers = #tpu.dot_dimension_numbers<[1], [0], [0], [1], [0, 0, 1, 1], [], []>} : vector<64x32xbf16>, vector<32x512xbf16>, vector<64x512xf32> -> vector<64x512xf32>
    %c0_5 = arith.constant 0 : index
    %c0_6 = arith.constant 0 : index
    %10 = vector.load %arg3[%c0_5, %c0_6] : memref<1x512xf32, #tpu.memory_space<vmem>>, vector<1x512xf32>
    %11 = vector.broadcast %10 : vector<1x512xf32> to vector<64x512xf32>
    %12 = arith.addf %9, %11 : vector<64x512xf32>
    %c0_7 = arith.constant 0 : index
    %c0_8 = arith.constant 0 : index
    %13 = vector.load %arg6[%c0_7, %c0_8] : memref<32x128xbf16, #tpu.memory_space<vmem>>, vector<32x128xbf16>
    %cst_9 = arith.constant dense<0.000000e+00> : vector<64x128xf32>
    %14 = tpu.matmul %7, %13, %cst_9 {dimension_numbers = #tpu.dot_dimension_numbers<[1], [0], [0], [1], [0, 0, 1, 1], [], []>} : vector<64x32xbf16>, vector<32x128xbf16>, vector<64x128xf32> -> vector<64x128xf32>
    %c0_10 = arith.constant 0 : index
    %c0_11 = arith.constant 0 : index
    %15 = vector.load %arg9[%c0_10, %c0_11] : memref<1x128xf32, #tpu.memory_space<vmem>>, vector<1x128xf32>
    %16 = vector.broadcast %15 : vector<1x128xf32> to vector<64x128xf32>
    %17 = arith.addf %14, %16 : vector<64x128xf32>
    %c0_12 = arith.constant 0 : index
    %c0_13 = arith.constant 0 : index
    %18 = vector.load %arg13[%c0_12, %c0_13] : memref<64x128xf32, #tpu.memory_space<vmem>>, vector<64x128xf32>
    tpu.vector_store %arg13[%c0_12, %c0_13], %17 {strides = array<i32>} : memref<64x128xf32, #tpu.memory_space<vmem>>, vector<64x128xf32>,
    %c0_14 = arith.constant 0 : index
    %c0_15 = arith.constant 0 : index
    %19 = vector.load %arg4[%c0_14, %c0_15] : memref<64x256xbf16, #tpu.memory_space<vmem>>, vector<64x256xbf16>
    %c0_16 = arith.constant 0 : index
    %c0_17 = arith.constant 0 : index
    %20 = vector.load %arg5[%c0_16, %c0_17] : memref<64x256xbf16, #tpu.memory_space<vmem>>, vector<64x256xbf16>
    %c0_18 = arith.constant 0 : index
    %c0_19 = arith.constant 0 : index
    %21 = vector.load %arg7[%c0_18, %c0_19] : memref<64x128xbf16, #tpu.memory_space<vmem>>, vector<64x128xbf16>
    %c0_20 = arith.constant 0 : index
    %c0_21 = arith.constant 0 : index
    %22 = vector.load %arg8[%c0_20, %c0_21] : memref<64x128xbf16, #tpu.memory_space<vmem>>, vector<64x128xbf16>
    %cst_22 = arith.constant 0.000000e+00 : bf16
    %23 = vector.broadcast %cst_22 : bf16 to vector<8x64xbf16>
    %cst_23 = arith.constant 0.000000e+00 : bf16
    %24 = vector.broadcast %cst_23 : bf16 to vector<8x64xbf16>
    %cst_24 = arith.constant 0.000000e+00 : f32
    %25 = vector.broadcast %cst_24 : f32 to vector<8x64xf32>
    %cst_25 = arith.constant 0.000000e+00 : f32
    %26 = vector.broadcast %cst_25 : f32 to vector<8x64xf32>
    %cst_26 = arith.constant dense<0.000000e+00> : vector<8x256xf32>
    %27 = tpu.matmul %23, %19, %cst_26 {dimension_numbers = #tpu.dot_dimension_numbers<[1], [0], [0], [1], [0, 0, 1, 1], [], []>} : vector<8x64xbf16>, vector<64x256xbf16>, vector<8x256xf32> -> vector<8x256xf32>
    %28 = vector.extract_strided_slice %12 {offsets = [0, 0], sizes = [8, 256], strides = [1, 1]} : vector<64x512xf32> to vector<8x256xf32>
    %29 = arith.addf %27, %28 : vector<8x256xf32>
    %cst_27 = arith.constant dense<0.000000e+00> : vector<8x256xf32>
    %30 = tpu.matmul %24, %20, %cst_27 {dimension_numbers = #tpu.dot_dimension_numbers<[1], [0], [0], [1], [0, 0, 1, 1], [], []>} : vector<8x64xbf16>, vector<64x256xbf16>, vector<8x256xf32> -> vector<8x256xf32>
    %31 = vector.extract_strided_slice %12 {offsets = [56, 256], sizes = [8, 256], strides = [1, 1]} : vector<64x512xf32> to vector<8x256xf32>
    %32 = arith.addf %30, %31 : vector<8x256xf32>
    %33 = tpu.concatenate %29, %32 in 1 : vector<8x256xf32>, vector<8x256xf32> -> vector<8x512xf32>
    %34 = arith.negf %33 : vector<8x512xf32>
    %35 = math.exp %34 : vector<8x512xf32>
    %cst_28 = arith.constant 1.000000e+00 : f32
    %36 = vector.broadcast %cst_28 : f32 to vector<8x512xf32>
    %37 = arith.addf %36, %35 : vector<8x512xf32>
    %38 = arith.divf %36, %37 : vector<8x512xf32>
    %39 = math.tanh %33 : vector<8x512xf32>
    %40 = vector.extract_strided_slice %38 {offsets = [0, 64], sizes = [8, 64], strides = [1, 1]} : vector<8x512xf32> to vector<8x64xf32>
    %41 = arith.mulf %40, %25 : vector<8x64xf32>
    %42 = vector.extract_strided_slice %38 {offsets = [0, 0], sizes = [8, 64], strides = [1, 1]} : vector<8x512xf32> to vector<8x64xf32>
    %43 = vector.extract_strided_slice %39 {offsets = [0, 128], sizes = [8, 64], strides = [1, 1]} : vector<8x512xf32> to vector<8x64xf32>
    %44 = arith.mulf %42, %43 : vector<8x64xf32>
    %45 = arith.addf %41, %44 : vector<8x64xf32>
    %46 = vector.extract_strided_slice %38 {offsets = [0, 192], sizes = [8, 64], strides = [1, 1]} : vector<8x512xf32> to vector<8x64xf32>
    %47 = math.tanh %45 : vector<8x64xf32>
    %48 = arith.mulf %46, %47 : vector<8x64xf32>
    %49 = vector.extract_strided_slice %38 {offsets = [0, 320], sizes = [8, 64], strides = [1, 1]} : vector<8x512xf32> to vector<8x64xf32>
    %50 = arith.mulf %49, %26 : vector<8x64xf32>
    %51 = vector.extract_strided_slice %38 {offsets = [0, 256], sizes = [8, 64], strides = [1, 1]} : vector<8x512xf32> to vector<8x64xf32>
    %52 = vector.extract_strided_slice %39 {offsets = [0, 384], sizes = [8, 64], strides = [1, 1]} : vector<8x512xf32> to vector<8x64xf32>
    %53 = arith.mulf %51, %52 : vector<8x64xf32>
    %54 = arith.addf %50, %53 : vector<8x64xf32>
    %55 = vector.extract_strided_slice %38 {offsets = [0, 448], sizes = [8, 64], strides = [1, 1]} : vector<8x512xf32> to vector<8x64xf32>
    %56 = math.tanh %54 : vector<8x64xf32>
    %57 = arith.mulf %55, %56 : vector<8x64xf32>
    %58 = arith.truncf %48 : vector<8x64xf32> to vector<8x64xbf16>
    %59 = arith.truncf %57 : vector<8x64xf32> to vector<8x64xbf16>
    %c0_29 = arith.constant 0 : index
    %c0_30 = arith.constant 0 : index
    %60 = vector.load %arg13[%c0_29, %c0_30] : memref<64x128xf32, #tpu.memory_space<vmem>>, vector<8x128xf32>
    %cst_31 = arith.constant dense<0.000000e+00> : vector<8x128xf32>
    %61 = tpu.matmul %58, %21, %cst_31 {dimension_numbers = #tpu.dot_dimension_numbers<[1], [0], [0], [1], [0, 0, 1, 1], [], []>} : vector<8x64xbf16>, vector<64x128xbf16>, vector<8x128xf32> -> vector<8x128xf32>
    %62 = arith.addf %60, %61 : vector<8x128xf32>
    %c0_32 = arith.constant 0 : index
    %c0_33 = arith.constant 0 : index
    %63 = vector.load %arg13[%c0_32, %c0_33] : memref<64x128xf32, #tpu.memory_space<vmem>>, vector<8x128xf32>
    tpu.vector_store %arg13[%c0_32, %c0_33], %62 {strides = array<i32>} : memref<64x128xf32, #tpu.memory_space<vmem>>, vector<8x128xf32>,
    %c56 = arith.constant 56 : index
    %c0_34 = arith.constant 0 : index
    %64 = vector.load %arg13[%c56, %c0_34] : memref<64x128xf32, #tpu.memory_space<vmem>>, vector<8x128xf32>
    %cst_35 = arith.constant dense<0.000000e+00> : vector<8x128xf32>
    %65 = tpu.matmul %59, %22, %cst_35 {dimension_numbers = #tpu.dot_dimension_numbers<[1], [0], [0], [1], [0, 0, 1, 1], [], []>} : vector<8x64xbf16>, vector<64x128xbf16>, vector<8x128xf32> -> vector<8x128xf32>
    %66 = arith.addf %64, %65 : vector<8x128xf32>
    %c56_36 = arith.constant 56 : index
    %c0_37 = arith.constant 0 : index
    %67 = vector.load %arg13[%c56_36, %c0_37] : memref<64x128xf32, #tpu.memory_space<vmem>>, vector<8x128xf32>
    tpu.vector_store %arg13[%c56_36, %c0_37], %66 {strides = array<i32>} : memref<64x128xf32, #tpu.memory_space<vmem>>, vector<8x128xf32>,
    %cst_38 = arith.constant dense<0.000000e+00> : vector<8x256xf32>
    %68 = tpu.matmul %58, %19, %cst_38 {dimension_numbers = #tpu.dot_dimension_numbers<[1], [0], [0], [1], [0, 0, 1, 1], [], []>} : vector<8x64xbf16>, vector<64x256xbf16>, vector<8x256xf32> -> vector<8x256xf32>
    %69 = vector.extract_strided_slice %12 {offsets = [8, 0], sizes = [8, 256], strides = [1, 1]} : vector<64x512xf32> to vector<8x256xf32>
    %70 = arith.addf %68, %69 : vector<8x256xf32>
    %cst_39 = arith.constant dense<0.000000e+00> : vector<8x256xf32>
    %71 = tpu.matmul %59, %20, %cst_39 {dimension_numbers = #tpu.dot_dimension_numbers<[1], [0], [0], [1], [0, 0, 1, 1], [], []>} : vector<8x64xbf16>, vector<64x256xbf16>, vector<8x256xf32> -> vector<8x256xf32>
    %72 = vector.extract_strided_slice %12 {offsets = [48, 256], sizes = [8, 256], strides = [1, 1]} : vector<64x512xf32> to vector<8x256xf32>
    %73 = arith.addf %71, %72 : vector<8x256xf32>
    %74 = tpu.concatenate %70, %73 in 1 : vector<8x256xf32>, vector<8x256xf32> -> vector<8x512xf32>
    %75 = arith.negf %74 : vector<8x512xf32>
    %76 = math.exp %75 : vector<8x512xf32>
    %cst_40 = arith.constant 1.000000e+00 : f32
    %77 = vector.broadcast %cst_40 : f32 to vector<8x512xf32>
    %78 = arith.addf %77, %76 : vector<8x512xf32>
    %79 = arith.divf %77, %78 : vector<8x512xf32>
    %80 = math.tanh %74 : vector<8x512xf32>
    %81 = vector.extract_strided_slice %79 {offsets = [0, 64], sizes = [8, 64], strides = [1, 1]} : vector<8x512xf32> to vector<8x64xf32>
    %82 = arith.mulf %81, %45 : vector<8x64xf32>
    %83 = vector.extract_strided_slice %79 {offsets = [0, 0], sizes = [8, 64], strides = [1, 1]} : vector<8x512xf32> to vector<8x64xf32>
    %84 = vector.extract_strided_slice %80 {offsets = [0, 128], sizes = [8, 64], strides = [1, 1]} : vector<8x512xf32> to vector<8x64xf32>
    %85 = arith.mulf %83, %84 : vector<8x64xf32>
    %86 = arith.addf %82, %85 : vector<8x64xf32>
    %87 = vector.extract_strided_slice %79 {offsets = [0, 192], sizes = [8, 64], strides = [1, 1]} : vector<8x512xf32> to vector<8x64xf32>
    %88 = math.tanh %86 : vector<8x64xf32>
    %89 = arith.mulf %87, %88 : vector<8x64xf32>
    %90 = vector.extract_strided_slice %79 {offsets = [0, 320], sizes = [8, 64], strides = [1, 1]} : vector<8x512xf32> to vector<8x64xf32>
    %91 = arith.mulf %90, %54 : vector<8x64xf32>
    %92 = vector.extract_strided_slice %79 {offsets = [0, 256], sizes = [8, 64], strides = [1, 1]} : vector<8x512xf32> to vector<8x64xf32>
    %93 = vector.extract_strided_slice %80 {offsets = [0, 384], sizes = [8, 64], strides = [1, 1]} : vector<8x512xf32> to vector<8x64xf32>
    %94 = arith.mulf %92, %93 : vector<8x64xf32>
    %95 = arith.addf %91, %94 : vector<8x64xf32>
    %96 = vector.extract_strided_slice %79 {offsets = [0, 448], sizes = [8, 64], strides = [1, 1]} : vector<8x512xf32> to vector<8x64xf32>
    %97 = math.tanh %95 : vector<8x64xf32>
    %98 = arith.mulf %96, %97 : vector<8x64xf32>
    %99 = arith.truncf %89 : vector<8x64xf32> to vector<8x64xbf16>
    %100 = arith.truncf %98 : vector<8x64xf32> to vector<8x64xbf16>
    %c8 = arith.constant 8 : index
    %c0_41 = arith.constant 0 : index
    %101 = vector.load %arg13[%c8, %c0_41] : memref<64x128xf32, #tpu.memory_space<vmem>>, vector<8x128xf32>
    %cst_42 = arith.constant dense<0.000000e+00> : vector<8x128xf32>
    %102 = tpu.matmul %99, %21, %cst_42 {dimension_numbers = #tpu.dot_dimension_numbers<[1], [0], [0], [1], [0, 0, 1, 1], [], []>} : vector<8x64xbf16>, vector<64x128xbf16>, vector<8x128xf32> -> vector<8x128xf32>
    %103 = arith.addf %101, %102 : vector<8x128xf32>
    %c8_43 = arith.constant 8 : index
    %c0_44 = arith.constant 0 : index
    %104 = vector.load %arg13[%c8_43, %c0_44] : memref<64x128xf32, #tpu.memory_space<vmem>>, vector<8x128xf32>
    tpu.vector_store %arg13[%c8_43, %c0_44], %103 {strides = array<i32>} : memref<64x128xf32, #tpu.memory_space<vmem>>, vector<8x128xf32>,
    %c48 = arith.constant 48 : index
    %c0_45 = arith.constant 0 : index
    %105 = vector.load %arg13[%c48, %c0_45] : memref<64x128xf32, #tpu.memory_space<vmem>>, vector<8x128xf32>
    %cst_46 = arith.constant dense<0.000000e+00> : vector<8x128xf32>
    %106 = tpu.matmul %100, %22, %cst_46 {dimension_numbers = #tpu.dot_dimension_numbers<[1], [0], [0], [1], [0, 0, 1, 1], [], []>} : vector<8x64xbf16>, vector<64x128xbf16>, vector<8x128xf32> -> vector<8x128xf32>
    %107 = arith.addf %105, %106 : vector<8x128xf32>
    %c48_47 = arith.constant 48 : index
    %c0_48 = arith.constant 0 : index
    %108 = vector.load %arg13[%c48_47, %c0_48] : memref<64x128xf32, #tpu.memory_space<vmem>>, vector<8x128xf32>
    tpu.vector_store %arg13[%c48_47, %c0_48], %107 {strides = array<i32>} : memref<64x128xf32, #tpu.memory_space<vmem>>, vector<8x128xf32>,
    %cst_49 = arith.constant dense<0.000000e+00> : vector<8x256xf32>
    %109 = tpu.matmul %99, %19, %cst_49 {dimension_numbers = #tpu.dot_dimension_numbers<[1], [0], [0], [1], [0, 0, 1, 1], [], []>} : vector<8x64xbf16>, vector<64x256xbf16>, vector<8x256xf32> -> vector<8x256xf32>
    %110 = vector.extract_strided_slice %12 {offsets = [16, 0], sizes = [8, 256], strides = [1, 1]} : vector<64x512xf32> to vector<8x256xf32>
    %111 = arith.addf %109, %110 : vector<8x256xf32>
    %cst_50 = arith.constant dense<0.000000e+00> : vector<8x256xf32>
    %112 = tpu.matmul %100, %20, %cst_50 {dimension_numbers = #tpu.dot_dimension_numbers<[1], [0], [0], [1], [0, 0, 1, 1], [], []>} : vector<8x64xbf16>, vector<64x256xbf16>, vector<8x256xf32> -> vector<8x256xf32>
    %113 = vector.extract_strided_slice %12 {offsets = [40, 256], sizes = [8, 256], strides = [1, 1]} : vector<64x512xf32> to vector<8x256xf32>
    %114 = arith.addf %112, %113 : vector<8x256xf32>
    %115 = tpu.concatenate %111, %114 in 1 : vector<8x256xf32>, vector<8x256xf32> -> vector<8x512xf32>
    %116 = arith.negf %115 : vector<8x512xf32>
    %117 = math.exp %116 : vector<8x512xf32>
    %cst_51 = arith.constant 1.000000e+00 : f32
    %118 = vector.broadcast %cst_51 : f32 to vector<8x512xf32>
    %119 = arith.addf %118, %117 : vector<8x512xf32>
    %120 = arith.divf %118, %119 : vector<8x512xf32>
    %121 = math.tanh %115 : vector<8x512xf32>
    %122 = vector.extract_strided_slice %120 {offsets = [0, 64], sizes = [8, 64], strides = [1, 1]} : vector<8x512xf32> to vector<8x64xf32>
    %123 = arith.mulf %122, %86 : vector<8x64xf32>
    %124 = vector.extract_strided_slice %120 {offsets = [0, 0], sizes = [8, 64], strides = [1, 1]} : vector<8x512xf32> to vector<8x64xf32>
    %125 = vector.extract_strided_slice %121 {offsets = [0, 128], sizes = [8, 64], strides = [1, 1]} : vector<8x512xf32> to vector<8x64xf32>
    %126 = arith.mulf %124, %125 : vector<8x64xf32>
    %127 = arith.addf %123, %126 : vector<8x64xf32>
    %128 = vector.extract_strided_slice %120 {offsets = [0, 192], sizes = [8, 64], strides = [1, 1]} : vector<8x512xf32> to vector<8x64xf32>
    %129 = math.tanh %127 : vector<8x64xf32>
    %130 = arith.mulf %128, %129 : vector<8x64xf32>
    %131 = vector.extract_strided_slice %120 {offsets = [0, 320], sizes = [8, 64], strides = [1, 1]} : vector<8x512xf32> to vector<8x64xf32>
    %132 = arith.mulf %131, %95 : vector<8x64xf32>
    %133 = vector.extract_strided_slice %120 {offsets = [0, 256], sizes = [8, 64], strides = [1, 1]} : vector<8x512xf32> to vector<8x64xf32>
    %134 = vector.extract_strided_slice %121 {offsets = [0, 384], sizes = [8, 64], strides = [1, 1]} : vector<8x512xf32> to vector<8x64xf32>
    %135 = arith.mulf %133, %134 : vector<8x64xf32>
    %136 = arith.addf %132, %135 : vector<8x64xf32>
    %137 = vector.extract_strided_slice %120 {offsets = [0, 448], sizes = [8, 64], strides = [1, 1]} : vector<8x512xf32> to vector<8x64xf32>
    %138 = math.tanh %136 : vector<8x64xf32>
    %139 = arith.mulf %137, %138 : vector<8x64xf32>
    %140 = arith.truncf %130 : vector<8x64xf32> to vector<8x64xbf16>
    %141 = arith.truncf %139 : vector<8x64xf32> to vector<8x64xbf16>
    %c16 = arith.constant 16 : index
    %c0_52 = arith.constant 0 : index
    %142 = vector.load %arg13[%c16, %c0_52] : memref<64x128xf32, #tpu.memory_space<vmem>>, vector<8x128xf32>
    %cst_53 = arith.constant dense<0.000000e+00> : vector<8x128xf32>
    %143 = tpu.matmul %140, %21, %cst_53 {dimension_numbers = #tpu.dot_dimension_numbers<[1], [0], [0], [1], [0, 0, 1, 1], [], []>} : vector<8x64xbf16>, vector<64x128xbf16>, vector<8x128xf32> -> vector<8x128xf32>
    %144 = arith.addf %142, %143 : vector<8x128xf32>
    %c16_54 = arith.constant 16 : index
    %c0_55 = arith.constant 0 : index
    %145 = vector.load %arg13[%c16_54, %c0_55] : memref<64x128xf32, #tpu.memory_space<vmem>>, vector<8x128xf32>
    tpu.vector_store %arg13[%c16_54, %c0_55], %144 {strides = array<i32>} : memref<64x128xf32, #tpu.memory_space<vmem>>, vector<8x128xf32>,
    %c40 = arith.constant 40 : index
    %c0_56 = arith.constant 0 : index
    %146 = vector.load %arg13[%c40, %c0_56] : memref<64x128xf32, #tpu.memory_space<vmem>>, vector<8x128xf32>
    %cst_57 = arith.constant dense<0.000000e+00> : vector<8x128xf32>
    %147 = tpu.matmul %141, %22, %cst_57 {dimension_numbers = #tpu.dot_dimension_numbers<[1], [0], [0], [1], [0, 0, 1, 1], [], []>} : vector<8x64xbf16>, vector<64x128xbf16>, vector<8x128xf32> -> vector<8x128xf32>
    %148 = arith.addf %146, %147 : vector<8x128xf32>
    %c40_58 = arith.constant 40 : index
    %c0_59 = arith.constant 0 : index
    %149 = vector.load %arg13[%c40_58, %c0_59] : memref<64x128xf32, #tpu.memory_space<vmem>>, vector<8x128xf32>
    tpu.vector_store %arg13[%c40_58, %c0_59], %148 {strides = array<i32>} : memref<64x128xf32, #tpu.memory_space<vmem>>, vector<8x128xf32>,
    %cst_60 = arith.constant dense<0.000000e+00> : vector<8x256xf32>
    %150 = tpu.matmul %140, %19, %cst_60 {dimension_numbers = #tpu.dot_dimension_numbers<[1], [0], [0], [1], [0, 0, 1, 1], [], []>} : vector<8x64xbf16>, vector<64x256xbf16>, vector<8x256xf32> -> vector<8x256xf32>
    %151 = vector.extract_strided_slice %12 {offsets = [24, 0], sizes = [8, 256], strides = [1, 1]} : vector<64x512xf32> to vector<8x256xf32>
    %152 = arith.addf %150, %151 : vector<8x256xf32>
    %cst_61 = arith.constant dense<0.000000e+00> : vector<8x256xf32>
    %153 = tpu.matmul %141, %20, %cst_61 {dimension_numbers = #tpu.dot_dimension_numbers<[1], [0], [0], [1], [0, 0, 1, 1], [], []>} : vector<8x64xbf16>, vector<64x256xbf16>, vector<8x256xf32> -> vector<8x256xf32>
    %154 = vector.extract_strided_slice %12 {offsets = [32, 256], sizes = [8, 256], strides = [1, 1]} : vector<64x512xf32> to vector<8x256xf32>
    %155 = arith.addf %153, %154 : vector<8x256xf32>
    %156 = tpu.concatenate %152, %155 in 1 : vector<8x256xf32>, vector<8x256xf32> -> vector<8x512xf32>
    %157 = arith.negf %156 : vector<8x512xf32>
    %158 = math.exp %157 : vector<8x512xf32>
    %cst_62 = arith.constant 1.000000e+00 : f32
    %159 = vector.broadcast %cst_62 : f32 to vector<8x512xf32>
    %160 = arith.addf %159, %158 : vector<8x512xf32>
    %161 = arith.divf %159, %160 : vector<8x512xf32>
    %162 = math.tanh %156 : vector<8x512xf32>
    %163 = vector.extract_strided_slice %161 {offsets = [0, 64], sizes = [8, 64], strides = [1, 1]} : vector<8x512xf32> to vector<8x64xf32>
    %164 = arith.mulf %163, %127 : vector<8x64xf32>
    %165 = vector.extract_strided_slice %161 {offsets = [0, 0], sizes = [8, 64], strides = [1, 1]} : vector<8x512xf32> to vector<8x64xf32>
    %166 = vector.extract_strided_slice %162 {offsets = [0, 128], sizes = [8, 64], strides = [1, 1]} : vector<8x512xf32> to vector<8x64xf32>
    %167 = arith.mulf %165, %166 : vector<8x64xf32>
    %168 = arith.addf %164, %167 : vector<8x64xf32>
    %169 = vector.extract_strided_slice %161 {offsets = [0, 192], sizes = [8, 64], strides = [1, 1]} : vector<8x512xf32> to vector<8x64xf32>
    %170 = math.tanh %168 : vector<8x64xf32>
    %171 = arith.mulf %169, %170 : vector<8x64xf32>
    %172 = vector.extract_strided_slice %161 {offsets = [0, 320], sizes = [8, 64], strides = [1, 1]} : vector<8x512xf32> to vector<8x64xf32>
    %173 = arith.mulf %172, %136 : vector<8x64xf32>
    %174 = vector.extract_strided_slice %161 {offsets = [0, 256], sizes = [8, 64], strides = [1, 1]} : vector<8x512xf32> to vector<8x64xf32>
    %175 = vector.extract_strided_slice %162 {offsets = [0, 384], sizes = [8, 64], strides = [1, 1]} : vector<8x512xf32> to vector<8x64xf32>
    %176 = arith.mulf %174, %175 : vector<8x64xf32>
    %177 = arith.addf %173, %176 : vector<8x64xf32>
    %178 = vector.extract_strided_slice %161 {offsets = [0, 448], sizes = [8, 64], strides = [1, 1]} : vector<8x512xf32> to vector<8x64xf32>
    %179 = math.tanh %177 : vector<8x64xf32>
    %180 = arith.mulf %178, %179 : vector<8x64xf32>
    %181 = arith.truncf %171 : vector<8x64xf32> to vector<8x64xbf16>
    %182 = arith.truncf %180 : vector<8x64xf32> to vector<8x64xbf16>
    %c24 = arith.constant 24 : index
    %c0_63 = arith.constant 0 : index
    %183 = vector.load %arg13[%c24, %c0_63] : memref<64x128xf32, #tpu.memory_space<vmem>>, vector<8x128xf32>
    %cst_64 = arith.constant dense<0.000000e+00> : vector<8x128xf32>
    %184 = tpu.matmul %181, %21, %cst_64 {dimension_numbers = #tpu.dot_dimension_numbers<[1], [0], [0], [1], [0, 0, 1, 1], [], []>} : vector<8x64xbf16>, vector<64x128xbf16>, vector<8x128xf32> -> vector<8x128xf32>
    %185 = arith.addf %183, %184 : vector<8x128xf32>
    %c24_65 = arith.constant 24 : index
    %c0_66 = arith.constant 0 : index
    %186 = vector.load %arg13[%c24_65, %c0_66] : memref<64x128xf32, #tpu.memory_space<vmem>>, vector<8x128xf32>
    tpu.vector_store %arg13[%c24_65, %c0_66], %185 {strides = array<i32>} : memref<64x128xf32, #tpu.memory_space<vmem>>, vector<8x128xf32>,
    %c32 = arith.constant 32 : index
    %c0_67 = arith.constant 0 : index
    %187 = vector.load %arg13[%c32, %c0_67] : memref<64x128xf32, #tpu.memory_space<vmem>>, vector<8x128xf32>
    %cst_68 = arith.constant dense<0.000000e+00> : vector<8x128xf32>
    %188 = tpu.matmul %182, %22, %cst_68 {dimension_numbers = #tpu.dot_dimension_numbers<[1], [0], [0], [1], [0, 0, 1, 1], [], []>} : vector<8x64xbf16>, vector<64x128xbf16>, vector<8x128xf32> -> vector<8x128xf32>
    %189 = arith.addf %187, %188 : vector<8x128xf32>
    %c32_69 = arith.constant 32 : index
    %c0_70 = arith.constant 0 : index
    %190 = vector.load %arg13[%c32_69, %c0_70] : memref<64x128xf32, #tpu.memory_space<vmem>>, vector<8x128xf32>
    tpu.vector_store %arg13[%c32_69, %c0_70], %189 {strides = array<i32>} : memref<64x128xf32, #tpu.memory_space<vmem>>, vector<8x128xf32>,
    %cst_71 = arith.constant dense<0.000000e+00> : vector<8x256xf32>
    %191 = tpu.matmul %181, %19, %cst_71 {dimension_numbers = #tpu.dot_dimension_numbers<[1], [0], [0], [1], [0, 0, 1, 1], [], []>} : vector<8x64xbf16>, vector<64x256xbf16>, vector<8x256xf32> -> vector<8x256xf32>
    %192 = vector.extract_strided_slice %12 {offsets = [32, 0], sizes = [8, 256], strides = [1, 1]} : vector<64x512xf32> to vector<8x256xf32>
    %193 = arith.addf %191, %192 : vector<8x256xf32>
    %cst_72 = arith.constant dense<0.000000e+00> : vector<8x256xf32>
    %194 = tpu.matmul %182, %20, %cst_72 {dimension_numbers = #tpu.dot_dimension_numbers<[1], [0], [0], [1], [0, 0, 1, 1], [], []>} : vector<8x64xbf16>, vector<64x256xbf16>, vector<8x256xf32> -> vector<8x256xf32>
    %195 = vector.extract_strided_slice %12 {offsets = [24, 256], sizes = [8, 256], strides = [1, 1]} : vector<64x512xf32> to vector<8x256xf32>
    %196 = arith.addf %194, %195 : vector<8x256xf32>
    %197 = tpu.concatenate %193, %196 in 1 : vector<8x256xf32>, vector<8x256xf32> -> vector<8x512xf32>
    %198 = arith.negf %197 : vector<8x512xf32>
    %199 = math.exp %198 : vector<8x512xf32>
    %cst_73 = arith.constant 1.000000e+00 : f32
    %200 = vector.broadcast %cst_73 : f32 to vector<8x512xf32>
    %201 = arith.addf %200, %199 : vector<8x512xf32>
    %202 = arith.divf %200, %201 : vector<8x512xf32>
    %203 = math.tanh %197 : vector<8x512xf32>
    %204 = vector.extract_strided_slice %202 {offsets = [0, 64], sizes = [8, 64], strides = [1, 1]} : vector<8x512xf32> to vector<8x64xf32>
    %205 = arith.mulf %204, %168 : vector<8x64xf32>
    %206 = vector.extract_strided_slice %202 {offsets = [0, 0], sizes = [8, 64], strides = [1, 1]} : vector<8x512xf32> to vector<8x64xf32>
    %207 = vector.extract_strided_slice %203 {offsets = [0, 128], sizes = [8, 64], strides = [1, 1]} : vector<8x512xf32> to vector<8x64xf32>
    %208 = arith.mulf %206, %207 : vector<8x64xf32>
    %209 = arith.addf %205, %208 : vector<8x64xf32>
    %210 = vector.extract_strided_slice %202 {offsets = [0, 192], sizes = [8, 64], strides = [1, 1]} : vector<8x512xf32> to vector<8x64xf32>
    %211 = math.tanh %209 : vector<8x64xf32>
    %212 = arith.mulf %210, %211 : vector<8x64xf32>
    %213 = vector.extract_strided_slice %202 {offsets = [0, 320], sizes = [8, 64], strides = [1, 1]} : vector<8x512xf32> to vector<8x64xf32>
    %214 = arith.mulf %213, %177 : vector<8x64xf32>
    %215 = vector.extract_strided_slice %202 {offsets = [0, 256], sizes = [8, 64], strides = [1, 1]} : vector<8x512xf32> to vector<8x64xf32>
    %216 = vector.extract_strided_slice %203 {offsets = [0, 384], sizes = [8, 64], strides = [1, 1]} : vector<8x512xf32> to vector<8x64xf32>
    %217 = arith.mulf %215, %216 : vector<8x64xf32>
    %218 = arith.addf %214, %217 : vector<8x64xf32>
    %219 = vector.extract_strided_slice %202 {offsets = [0, 448], sizes = [8, 64], strides = [1, 1]} : vector<8x512xf32> to vector<8x64xf32>
    %220 = math.tanh %218 : vector<8x64xf32>
    %221 = arith.mulf %219, %220 : vector<8x64xf32>
    %222 = arith.truncf %212 : vector<8x64xf32> to vector<8x64xbf16>
    %223 = arith.truncf %221 : vector<8x64xf32> to vector<8x64xbf16>
    %c32_74 = arith.constant 32 : index
    %c0_75 = arith.constant 0 : index
    %224 = vector.load %arg13[%c32_74, %c0_75] : memref<64x128xf32, #tpu.memory_space<vmem>>, vector<8x128xf32>
    %cst_76 = arith.constant dense<0.000000e+00> : vector<8x128xf32>
    %225 = tpu.matmul %222, %21, %cst_76 {dimension_numbers = #tpu.dot_dimension_numbers<[1], [0], [0], [1], [0, 0, 1, 1], [], []>} : vector<8x64xbf16>, vector<64x128xbf16>, vector<8x128xf32> -> vector<8x128xf32>
    %226 = arith.addf %224, %225 : vector<8x128xf32>
    %c32_77 = arith.constant 32 : index
    %c0_78 = arith.constant 0 : index
    %227 = vector.load %arg13[%c32_77, %c0_78] : memref<64x128xf32, #tpu.memory_space<vmem>>, vector<8x128xf32>
    tpu.vector_store %arg13[%c32_77, %c0_78], %226 {strides = array<i32>} : memref<64x128xf32, #tpu.memory_space<vmem>>, vector<8x128xf32>,
    %c24_79 = arith.constant 24 : index
    %c0_80 = arith.constant 0 : index
    %228 = vector.load %arg13[%c24_79, %c0_80] : memref<64x128xf32, #tpu.memory_space<vmem>>, vector<8x128xf32>
    %cst_81 = arith.constant dense<0.000000e+00> : vector<8x128xf32>
    %229 = tpu.matmul %223, %22, %cst_81 {dimension_numbers = #tpu.dot_dimension_numbers<[1], [0], [0], [1], [0, 0, 1, 1], [], []>} : vector<8x64xbf16>, vector<64x128xbf16>, vector<8x128xf32> -> vector<8x128xf32>
    %230 = arith.addf %228, %229 : vector<8x128xf32>
    %c24_82 = arith.constant 24 : index
    %c0_83 = arith.constant 0 : index
    %231 = vector.load %arg13[%c24_82, %c0_83] : memref<64x128xf32, #tpu.memory_space<vmem>>, vector<8x128xf32>
    tpu.vector_store %arg13[%c24_82, %c0_83], %230 {strides = array<i32>} : memref<64x128xf32, #tpu.memory_space<vmem>>, vector<8x128xf32>,
    %cst_84 = arith.constant dense<0.000000e+00> : vector<8x256xf32>
    %232 = tpu.matmul %222, %19, %cst_84 {dimension_numbers = #tpu.dot_dimension_numbers<[1], [0], [0], [1], [0, 0, 1, 1], [], []>} : vector<8x64xbf16>, vector<64x256xbf16>, vector<8x256xf32> -> vector<8x256xf32>
    %233 = vector.extract_strided_slice %12 {offsets = [40, 0], sizes = [8, 256], strides = [1, 1]} : vector<64x512xf32> to vector<8x256xf32>
    %234 = arith.addf %232, %233 : vector<8x256xf32>
    %cst_85 = arith.constant dense<0.000000e+00> : vector<8x256xf32>
    %235 = tpu.matmul %223, %20, %cst_85 {dimension_numbers = #tpu.dot_dimension_numbers<[1], [0], [0], [1], [0, 0, 1, 1], [], []>} : vector<8x64xbf16>, vector<64x256xbf16>, vector<8x256xf32> -> vector<8x256xf32>
    %236 = vector.extract_strided_slice %12 {offsets = [16, 256], sizes = [8, 256], strides = [1, 1]} : vector<64x512xf32> to vector<8x256xf32>
    %237 = arith.addf %235, %236 : vector<8x256xf32>
    %238 = tpu.concatenate %234, %237 in 1 : vector<8x256xf32>, vector<8x256xf32> -> vector<8x512xf32>
    %239 = arith.negf %238 : vector<8x512xf32>
    %240 = math.exp %239 : vector<8x512xf32>
    %cst_86 = arith.constant 1.000000e+00 : f32
    %241 = vector.broadcast %cst_86 : f32 to vector<8x512xf32>
    %242 = arith.addf %241, %240 : vector<8x512xf32>
    %243 = arith.divf %241, %242 : vector<8x512xf32>
    %244 = math.tanh %238 : vector<8x512xf32>
    %245 = vector.extract_strided_slice %243 {offsets = [0, 64], sizes = [8, 64], strides = [1, 1]} : vector<8x512xf32> to vector<8x64xf32>
    %246 = arith.mulf %245, %209 : vector<8x64xf32>
    %247 = vector.extract_strided_slice %243 {offsets = [0, 0], sizes = [8, 64], strides = [1, 1]} : vector<8x512xf32> to vector<8x64xf32>
    %248 = vector.extract_strided_slice %244 {offsets = [0, 128], sizes = [8, 64], strides = [1, 1]} : vector<8x512xf32> to vector<8x64xf32>
    %249 = arith.mulf %247, %248 : vector<8x64xf32>
    %250 = arith.addf %246, %249 : vector<8x64xf32>
    %251 = vector.extract_strided_slice %243 {offsets = [0, 192], sizes = [8, 64], strides = [1, 1]} : vector<8x512xf32> to vector<8x64xf32>
    %252 = math.tanh %250 : vector<8x64xf32>
    %253 = arith.mulf %251, %252 : vector<8x64xf32>
    %254 = vector.extract_strided_slice %243 {offsets = [0, 320], sizes = [8, 64], strides = [1, 1]} : vector<8x512xf32> to vector<8x64xf32>
    %255 = arith.mulf %254, %218 : vector<8x64xf32>
    %256 = vector.extract_strided_slice %243 {offsets = [0, 256], sizes = [8, 64], strides = [1, 1]} : vector<8x512xf32> to vector<8x64xf32>
    %257 = vector.extract_strided_slice %244 {offsets = [0, 384], sizes = [8, 64], strides = [1, 1]} : vector<8x512xf32> to vector<8x64xf32>
    %258 = arith.mulf %256, %257 : vector<8x64xf32>
    %259 = arith.addf %255, %258 : vector<8x64xf32>
    %260 = vector.extract_strided_slice %243 {offsets = [0, 448], sizes = [8, 64], strides = [1, 1]} : vector<8x512xf32> to vector<8x64xf32>
    %261 = math.tanh %259 : vector<8x64xf32>
    %262 = arith.mulf %260, %261 : vector<8x64xf32>
    %263 = arith.truncf %253 : vector<8x64xf32> to vector<8x64xbf16>
    %264 = arith.truncf %262 : vector<8x64xf32> to vector<8x64xbf16>
    %c40_87 = arith.constant 40 : index
    %c0_88 = arith.constant 0 : index
    %265 = vector.load %arg13[%c40_87, %c0_88] : memref<64x128xf32, #tpu.memory_space<vmem>>, vector<8x128xf32>
    %cst_89 = arith.constant dense<0.000000e+00> : vector<8x128xf32>
    %266 = tpu.matmul %263, %21, %cst_89 {dimension_numbers = #tpu.dot_dimension_numbers<[1], [0], [0], [1], [0, 0, 1, 1], [], []>} : vector<8x64xbf16>, vector<64x128xbf16>, vector<8x128xf32> -> vector<8x128xf32>
    %267 = arith.addf %265, %266 : vector<8x128xf32>
    %c40_90 = arith.constant 40 : index
    %c0_91 = arith.constant 0 : index
    %268 = vector.load %arg13[%c40_90, %c0_91] : memref<64x128xf32, #tpu.memory_space<vmem>>, vector<8x128xf32>
    tpu.vector_store %arg13[%c40_90, %c0_91], %267 {strides = array<i32>} : memref<64x128xf32, #tpu.memory_space<vmem>>, vector<8x128xf32>,
    %c16_92 = arith.constant 16 : index
    %c0_93 = arith.constant 0 : index
    %269 = vector.load %arg13[%c16_92, %c0_93] : memref<64x128xf32, #tpu.memory_space<vmem>>, vector<8x128xf32>
    %cst_94 = arith.constant dense<0.000000e+00> : vector<8x128xf32>
    %270 = tpu.matmul %264, %22, %cst_94 {dimension_numbers = #tpu.dot_dimension_numbers<[1], [0], [0], [1], [0, 0, 1, 1], [], []>} : vector<8x64xbf16>, vector<64x128xbf16>, vector<8x128xf32> -> vector<8x128xf32>
    %271 = arith.addf %269, %270 : vector<8x128xf32>
    %c16_95 = arith.constant 16 : index
    %c0_96 = arith.constant 0 : index
    %272 = vector.load %arg13[%c16_95, %c0_96] : memref<64x128xf32, #tpu.memory_space<vmem>>, vector<8x128xf32>
    tpu.vector_store %arg13[%c16_95, %c0_96], %271 {strides = array<i32>} : memref<64x128xf32, #tpu.memory_space<vmem>>, vector<8x128xf32>,
    %cst_97 = arith.constant dense<0.000000e+00> : vector<8x256xf32>
    %273 = tpu.matmul %263, %19, %cst_97 {dimension_numbers = #tpu.dot_dimension_numbers<[1], [0], [0], [1], [0, 0, 1, 1], [], []>} : vector<8x64xbf16>, vector<64x256xbf16>, vector<8x256xf32> -> vector<8x256xf32>
    %274 = vector.extract_strided_slice %12 {offsets = [48, 0], sizes = [8, 256], strides = [1, 1]} : vector<64x512xf32> to vector<8x256xf32>
    %275 = arith.addf %273, %274 : vector<8x256xf32>
    %cst_98 = arith.constant dense<0.000000e+00> : vector<8x256xf32>
    %276 = tpu.matmul %264, %20, %cst_98 {dimension_numbers = #tpu.dot_dimension_numbers<[1], [0], [0], [1], [0, 0, 1, 1], [], []>} : vector<8x64xbf16>, vector<64x256xbf16>, vector<8x256xf32> -> vector<8x256xf32>
    %277 = vector.extract_strided_slice %12 {offsets = [8, 256], sizes = [8, 256], strides = [1, 1]} : vector<64x512xf32> to vector<8x256xf32>
    %278 = arith.addf %276, %277 : vector<8x256xf32>
    %279 = tpu.concatenate %275, %278 in 1 : vector<8x256xf32>, vector<8x256xf32> -> vector<8x512xf32>
    %280 = arith.negf %279 : vector<8x512xf32>
    %281 = math.exp %280 : vector<8x512xf32>
    %cst_99 = arith.constant 1.000000e+00 : f32
    %282 = vector.broadcast %cst_99 : f32 to vector<8x512xf32>
    %283 = arith.addf %282, %281 : vector<8x512xf32>
    %284 = arith.divf %282, %283 : vector<8x512xf32>
    %285 = math.tanh %279 : vector<8x512xf32>
    %286 = vector.extract_strided_slice %284 {offsets = [0, 64], sizes = [8, 64], strides = [1, 1]} : vector<8x512xf32> to vector<8x64xf32>
    %287 = arith.mulf %286, %250 : vector<8x64xf32>
    %288 = vector.extract_strided_slice %284 {offsets = [0, 0], sizes = [8, 64], strides = [1, 1]} : vector<8x512xf32> to vector<8x64xf32>
    %289 = vector.extract_strided_slice %285 {offsets = [0, 128], sizes = [8, 64], strides = [1, 1]} : vector<8x512xf32> to vector<8x64xf32>
    %290 = arith.mulf %288, %289 : vector<8x64xf32>
    %291 = arith.addf %287, %290 : vector<8x64xf32>
    %292 = vector.extract_strided_slice %284 {offsets = [0, 192], sizes = [8, 64], strides = [1, 1]} : vector<8x512xf32> to vector<8x64xf32>
    %293 = math.tanh %291 : vector<8x64xf32>
    %294 = arith.mulf %292, %293 : vector<8x64xf32>
    %295 = vector.extract_strided_slice %284 {offsets = [0, 320], sizes = [8, 64], strides = [1, 1]} : vector<8x512xf32> to vector<8x64xf32>
    %296 = arith.mulf %295, %259 : vector<8x64xf32>
    %297 = vector.extract_strided_slice %284 {offsets = [0, 256], sizes = [8, 64], strides = [1, 1]} : vector<8x512xf32> to vector<8x64xf32>
    %298 = vector.extract_strided_slice %285 {offsets = [0, 384], sizes = [8, 64], strides = [1, 1]} : vector<8x512xf32> to vector<8x64xf32>
    %299 = arith.mulf %297, %298 : vector<8x64xf32>
    %300 = arith.addf %296, %299 : vector<8x64xf32>
    %301 = vector.extract_strided_slice %284 {offsets = [0, 448], sizes = [8, 64], strides = [1, 1]} : vector<8x512xf32> to vector<8x64xf32>
    %302 = math.tanh %300 : vector<8x64xf32>
    %303 = arith.mulf %301, %302 : vector<8x64xf32>
    %304 = arith.truncf %294 : vector<8x64xf32> to vector<8x64xbf16>
    %305 = arith.truncf %303 : vector<8x64xf32> to vector<8x64xbf16>
    %c48_100 = arith.constant 48 : index
    %c0_101 = arith.constant 0 : index
    %306 = vector.load %arg13[%c48_100, %c0_101] : memref<64x128xf32, #tpu.memory_space<vmem>>, vector<8x128xf32>
    %cst_102 = arith.constant dense<0.000000e+00> : vector<8x128xf32>
    %307 = tpu.matmul %304, %21, %cst_102 {dimension_numbers = #tpu.dot_dimension_numbers<[1], [0], [0], [1], [0, 0, 1, 1], [], []>} : vector<8x64xbf16>, vector<64x128xbf16>, vector<8x128xf32> -> vector<8x128xf32>
    %308 = arith.addf %306, %307 : vector<8x128xf32>
    %c48_103 = arith.constant 48 : index
    %c0_104 = arith.constant 0 : index
    %309 = vector.load %arg13[%c48_103, %c0_104] : memref<64x128xf32, #tpu.memory_space<vmem>>, vector<8x128xf32>
    tpu.vector_store %arg13[%c48_103, %c0_104], %308 {strides = array<i32>} : memref<64x128xf32, #tpu.memory_space<vmem>>, vector<8x128xf32>,
    %c8_105 = arith.constant 8 : index
    %c0_106 = arith.constant 0 : index
    %310 = vector.load %arg13[%c8_105, %c0_106] : memref<64x128xf32, #tpu.memory_space<vmem>>, vector<8x128xf32>
    %cst_107 = arith.constant dense<0.000000e+00> : vector<8x128xf32>
    %311 = tpu.matmul %305, %22, %cst_107 {dimension_numbers = #tpu.dot_dimension_numbers<[1], [0], [0], [1], [0, 0, 1, 1], [], []>} : vector<8x64xbf16>, vector<64x128xbf16>, vector<8x128xf32> -> vector<8x128xf32>
    %312 = arith.addf %310, %311 : vector<8x128xf32>
    %c8_108 = arith.constant 8 : index
    %c0_109 = arith.constant 0 : index
    %313 = vector.load %arg13[%c8_108, %c0_109] : memref<64x128xf32, #tpu.memory_space<vmem>>, vector<8x128xf32>
    tpu.vector_store %arg13[%c8_108, %c0_109], %312 {strides = array<i32>} : memref<64x128xf32, #tpu.memory_space<vmem>>, vector<8x128xf32>,
    %cst_110 = arith.constant dense<0.000000e+00> : vector<8x256xf32>
    %314 = tpu.matmul %304, %19, %cst_110 {dimension_numbers = #tpu.dot_dimension_numbers<[1], [0], [0], [1], [0, 0, 1, 1], [], []>} : vector<8x64xbf16>, vector<64x256xbf16>, vector<8x256xf32> -> vector<8x256xf32>
    %315 = vector.extract_strided_slice %12 {offsets = [56, 0], sizes = [8, 256], strides = [1, 1]} : vector<64x512xf32> to vector<8x256xf32>
    %316 = arith.addf %314, %315 : vector<8x256xf32>
    %cst_111 = arith.constant dense<0.000000e+00> : vector<8x256xf32>
    %317 = tpu.matmul %305, %20, %cst_111 {dimension_numbers = #tpu.dot_dimension_numbers<[1], [0], [0], [1], [0, 0, 1, 1], [], []>} : vector<8x64xbf16>, vector<64x256xbf16>, vector<8x256xf32> -> vector<8x256xf32>
    %318 = vector.extract_strided_slice %12 {offsets = [0, 256], sizes = [8, 256], strides = [1, 1]} : vector<64x512xf32> to vector<8x256xf32>
    %319 = arith.addf %317, %318 : vector<8x256xf32>
    %320 = tpu.concatenate %316, %319 in 1 : vector<8x256xf32>, vector<8x256xf32> -> vector<8x512xf32>
    %321 = arith.negf %320 : vector<8x512xf32>
    %322 = math.exp %321 : vector<8x512xf32>
    %cst_112 = arith.constant 1.000000e+00 : f32
    %323 = vector.broadcast %cst_112 : f32 to vector<8x512xf32>
    %324 = arith.addf %323, %322 : vector<8x512xf32>
    %325 = arith.divf %323, %324 : vector<8x512xf32>
    %326 = math.tanh %320 : vector<8x512xf32>
    %327 = vector.extract_strided_slice %325 {offsets = [0, 64], sizes = [8, 64], strides = [1, 1]} : vector<8x512xf32> to vector<8x64xf32>
    %328 = arith.mulf %327, %291 : vector<8x64xf32>
    %329 = vector.extract_strided_slice %325 {offsets = [0, 0], sizes = [8, 64], strides = [1, 1]} : vector<8x512xf32> to vector<8x64xf32>
    %330 = vector.extract_strided_slice %326 {offsets = [0, 128], sizes = [8, 64], strides = [1, 1]} : vector<8x512xf32> to vector<8x64xf32>
    %331 = arith.mulf %329, %330 : vector<8x64xf32>
    %332 = arith.addf %328, %331 : vector<8x64xf32>
    %333 = vector.extract_strided_slice %325 {offsets = [0, 192], sizes = [8, 64], strides = [1, 1]} : vector<8x512xf32> to vector<8x64xf32>
    %334 = math.tanh %332 : vector<8x64xf32>
    %335 = arith.mulf %333, %334 : vector<8x64xf32>
    %336 = vector.extract_strided_slice %325 {offsets = [0, 320], sizes = [8, 64], strides = [1, 1]} : vector<8x512xf32> to vector<8x64xf32>
    %337 = arith.mulf %336, %300 : vector<8x64xf32>
    %338 = vector.extract_strided_slice %325 {offsets = [0, 256], sizes = [8, 64], strides = [1, 1]} : vector<8x512xf32> to vector<8x64xf32>
    %339 = vector.extract_strided_slice %326 {offsets = [0, 384], sizes = [8, 64], strides = [1, 1]} : vector<8x512xf32> to vector<8x64xf32>
    %340 = arith.mulf %338, %339 : vector<8x64xf32>
    %341 = arith.addf %337, %340 : vector<8x64xf32>
    %342 = vector.extract_strided_slice %325 {offsets = [0, 448], sizes = [8, 64], strides = [1, 1]} : vector<8x512xf32> to vector<8x64xf32>
    %343 = math.tanh %341 : vector<8x64xf32>
    %344 = arith.mulf %342, %343 : vector<8x64xf32>
    %345 = arith.truncf %335 : vector<8x64xf32> to vector<8x64xbf16>
    %346 = arith.truncf %344 : vector<8x64xf32> to vector<8x64xbf16>
    %c56_113 = arith.constant 56 : index
    %c0_114 = arith.constant 0 : index
    %347 = vector.load %arg13[%c56_113, %c0_114] : memref<64x128xf32, #tpu.memory_space<vmem>>, vector<8x128xf32>
    %cst_115 = arith.constant dense<0.000000e+00> : vector<8x128xf32>
    %348 = tpu.matmul %345, %21, %cst_115 {dimension_numbers = #tpu.dot_dimension_numbers<[1], [0], [0], [1], [0, 0, 1, 1], [], []>} : vector<8x64xbf16>, vector<64x128xbf16>, vector<8x128xf32> -> vector<8x128xf32>
    %349 = arith.addf %347, %348 : vector<8x128xf32>
    %c56_116 = arith.constant 56 : index
    %c0_117 = arith.constant 0 : index
    %350 = vector.load %arg13[%c56_116, %c0_117] : memref<64x128xf32, #tpu.memory_space<vmem>>, vector<8x128xf32>
    tpu.vector_store %arg13[%c56_116, %c0_117], %349 {strides = array<i32>} : memref<64x128xf32, #tpu.memory_space<vmem>>, vector<8x128xf32>,
    %c0_118 = arith.constant 0 : index
    %c0_119 = arith.constant 0 : index
    %351 = vector.load %arg13[%c0_118, %c0_119] : memref<64x128xf32, #tpu.memory_space<vmem>>, vector<8x128xf32>
    %cst_120 = arith.constant dense<0.000000e+00> : vector<8x128xf32>
    %352 = tpu.matmul %346, %22, %cst_120 {dimension_numbers = #tpu.dot_dimension_numbers<[1], [0], [0], [1], [0, 0, 1, 1], [], []>} : vector<8x64xbf16>, vector<64x128xbf16>, vector<8x128xf32> -> vector<8x128xf32>
    %353 = arith.addf %351, %352 : vector<8x128xf32>
    %c0_121 = arith.constant 0 : index
    %c0_122 = arith.constant 0 : index
    %354 = vector.load %arg13[%c0_121, %c0_122] : memref<64x128xf32, #tpu.memory_space<vmem>>, vector<8x128xf32>
    tpu.vector_store %arg13[%c0_121, %c0_122], %353 {strides = array<i32>} : memref<64x128xf32, #tpu.memory_space<vmem>>, vector<8x128xf32>,
    %c0_123 = arith.constant 0 : index
    %c0_124 = arith.constant 0 : index
    %355 = vector.load %arg13[%c0_123, %c0_124] : memref<64x128xf32, #tpu.memory_space<vmem>>, vector<64x128xf32>
    %356 = math.tanh %355 : vector<64x128xf32>
    %357 = vector.extract_strided_slice %356 {offsets = [0, 0], sizes = [8, 128], strides = [1, 1]} : vector<64x128xf32> to vector<8x128xf32>
    %358 = vector.extract_strided_slice %356 {offsets = [8, 0], sizes = [8, 128], strides = [1, 1]} : vector<64x128xf32> to vector<8x128xf32>
    %359 = arith.maximumf %357, %358 : vector<8x128xf32>
    %360 = vector.extract_strided_slice %356 {offsets = [16, 0], sizes = [8, 128], strides = [1, 1]} : vector<64x128xf32> to vector<8x128xf32>
    %361 = arith.maximumf %359, %360 : vector<8x128xf32>
    %362 = vector.extract_strided_slice %356 {offsets = [24, 0], sizes = [8, 128], strides = [1, 1]} : vector<64x128xf32> to vector<8x128xf32>
    %363 = arith.maximumf %361, %362 : vector<8x128xf32>
    %364 = vector.extract_strided_slice %356 {offsets = [32, 0], sizes = [8, 128], strides = [1, 1]} : vector<64x128xf32> to vector<8x128xf32>
    %365 = arith.maximumf %363, %364 : vector<8x128xf32>
    %366 = vector.extract_strided_slice %356 {offsets = [40, 0], sizes = [8, 128], strides = [1, 1]} : vector<64x128xf32> to vector<8x128xf32>
    %367 = arith.maximumf %365, %366 : vector<8x128xf32>
    %368 = vector.extract_strided_slice %356 {offsets = [48, 0], sizes = [8, 128], strides = [1, 1]} : vector<64x128xf32> to vector<8x128xf32>
    %369 = arith.maximumf %367, %368 : vector<8x128xf32>
    %370 = vector.extract_strided_slice %356 {offsets = [56, 0], sizes = [8, 128], strides = [1, 1]} : vector<64x128xf32> to vector<8x128xf32>
    %371 = arith.maximumf %369, %370 : vector<8x128xf32>
    %372 = arith.truncf %371 : vector<8x128xf32> to vector<8x128xbf16>
    %c0_125 = arith.constant 0 : index
    %c0_126 = arith.constant 0 : index
    %373 = vector.load %arg10[%c0_125, %c0_126] : memref<128x128xbf16, #tpu.memory_space<vmem>>, vector<128x128xbf16>
    %cst_127 = arith.constant dense<0.000000e+00> : vector<8x128xf32>
    %374 = tpu.matmul %372, %373, %cst_127 {dimension_numbers = #tpu.dot_dimension_numbers<[1], [0], [0], [1], [0, 0, 1, 1], [], []>} : vector<8x128xbf16>, vector<128x128xbf16>, vector<8x128xf32> -> vector<8x128xf32>
    %c0_128 = arith.constant 0 : index
    %c0_129 = arith.constant 0 : index
    %375 = vector.load %arg11[%c0_128, %c0_129] : memref<1x128xf32, #tpu.memory_space<vmem>>, vector<1x128xf32>
    %376 = vector.broadcast %375 : vector<1x128xf32> to vector<8x128xf32>
    %377 = arith.addf %374, %376 : vector<8x128xf32>
    %378 = arith.negf %377 : vector<8x128xf32>
    %379 = math.exp %378 : vector<8x128xf32>
    %cst_130 = arith.constant 1.000000e+00 : f32
    %380 = vector.broadcast %cst_130 : f32 to vector<8x128xf32>
    %381 = arith.addf %380, %379 : vector<8x128xf32>
    %382 = arith.divf %380, %381 : vector<8x128xf32>
    %c0_131 = arith.constant 0 : index
    %c0_132 = arith.constant 0 : index
    %383 = vector.load %arg12[%c0_131, %c0_132] : memref<8x128xf32, #tpu.memory_space<vmem>>, vector<8x128xf32>
    tpu.vector_store %arg12[%c0_131, %c0_132], %382 {strides = array<i32>} : memref<8x128xf32, #tpu.memory_space<vmem>>, vector<8x128xf32>,
    return
  }
  func.func @transform_0(%arg0: i32) -> (i32, i32) {
    %c0_i32 = arith.constant 0 : i32
    %c0_i32_0 = arith.constant 0 : i32
    %c0_i32_1 = arith.constant 0 : i32
    return %c0_i32, %c0_i32_0 : i32, i32
  }
  func.func @transform_1(%arg0: i32) -> (i32, i32) {
    %c0_i32 = arith.constant 0 : i32
    %c0_i32_0 = arith.constant 0 : i32
    %c0_i32_1 = arith.constant 0 : i32
    return %c0_i32, %c0_i32_0 : i32, i32
  }
  func.func @transform_2(%arg0: i32) -> (i32, i32) {
    %c0_i32 = arith.constant 0 : i32
    %c0_i32_0 = arith.constant 0 : i32
    %c0_i32_1 = arith.constant 0 : i32
    return %c0_i32, %c0_i32_0 : i32, i32
  }
  func.func @transform_3(%arg0: i32) -> (i32, i32) {
    %c0_i32 = arith.constant 0 : i32
    %c0_i32_0 = arith.constant 0 : i32
    %c0_i32_1 = arith.constant 0 : i32
    return %c0_i32, %c0_i32_0 : i32, i32
  }
  func.func @transform_4(%arg0: i32) -> (i32, i32) {
    %c0_i32 = arith.constant 0 : i32
    %c0_i32_0 = arith.constant 0 : i32
    %c0_i32_1 = arith.constant 0 : i32
    return %c0_i32, %c0_i32_0 : i32, i32
  }
  func.func @transform_5(%arg0: i32) -> (i32, i32) {
    %c0_i32 = arith.constant 0 : i32
    %c0_i32_0 = arith.constant 0 : i32
    %c0_i32_1 = arith.constant 0 : i32
    return %c0_i32, %c0_i32_0 : i32, i32
  }
  func.func @transform_6(%arg0: i32) -> (i32, i32) {
    %c0_i32 = arith.constant 0 : i32
    %c0_i32_0 = arith.constant 0 : i32
    %c0_i32_1 = arith.constant 0 : i32
    return %c0_i32, %c0_i32_0 : i32, i32
  }
  func.func @transform_7(%arg0: i32) -> (i32, i32) {
    %c0_i32 = arith.constant 0 : i32
    %c0_i32_0 = arith.constant 0 : i32
    %c0_i32_1 = arith.constant 0 : i32
    return %c0_i32, %c0_i32_0 : i32, i32
  }
  func.func @transform_8(%arg0: i32) -> (i32, i32) {
    %c0_i32 = arith.constant 0 : i32
    %c0_i32_0 = arith.constant 0 : i32
    %c0_i32_1 = arith.constant 0 : i32
    return %c0_i32, %c0_i32_0 : i32, i32
  }
  func.func @transform_9(%arg0: i32) -> (i32, i32) {
    %c0_i32 = arith.constant 0 : i32
    %c0_i32_0 = arith.constant 0 : i32
    %c0_i32_1 = arith.constant 0 : i32
    return %c0_i32, %c0_i32_0 : i32, i32
  }
  func.func @transform_10(%arg0: i32) -> (i32, i32) {
    %c0_i32 = arith.constant 0 : i32
    %c0_i32_0 = arith.constant 0 : i32
    %c0_i32_1 = arith.constant 0 : i32
    return %c0_i32, %c0_i32_0 : i32, i32
  }
  func.func @transform_11(%arg0: i32) -> (i32, i32) {
    %c0_i32 = arith.constant 0 : i32
    %c0_i32_0 = arith.constant 0 : i32
    %c0_i32_1 = arith.constant 0 : i32
    return %c0_i32, %c0_i32_0 : i32, i32
  }
}

</mosaic_0001>

<llo_original>
// kernel: text_mrcnn_forward.1
$region0: #{text_mrcnn_forward.1}
  #allocation0 [shape = 'u32[]', space=smem, size = 0x4, offset = 0x4, fixed_abs, tag = 'smem constant byte address 0x4 - core index']
  #allocation1 [shape = 'u32[72,128]{1,0:T(1,128)}', space=vmem, size = 0x9000, scoped, tag = 'internal scratch']
  #allocation2 [shape = 'f32[64,128]{1,0:T(8,128)}', space=vmem, size = 0x8000, scoped, tag = 'scratch operand']
  %s0 = inlined_call_operand.vmem [shape: s32[64,1], index: 0, kind: input, shape index: {}]
  %s1 = inlined_call_operand.vmem [shape: bf16[32,512], index: 1, kind: input, shape index: {}]
  %s2 = inlined_call_operand.vmem [shape: f32[1,512], index: 2, kind: input, shape index: {}]
  %s3 = inlined_call_operand.hbm [shape: bf16[64,256], index: 3, kind: input, shape index: {}]
  %s4 = inlined_call_operand.hbm [shape: bf16[64,256], index: 4, kind: input, shape index: {}]
  %s5 = inlined_call_operand.hbm [shape: bf16[32,128], index: 5, kind: input, shape index: {}]
  %s6 = inlined_call_operand.vmem [shape: bf16[64,128], index: 6, kind: input, shape index: {}]
  %s7 = inlined_call_operand.hbm [shape: bf16[64,128], index: 7, kind: input, shape index: {}]
  %s8 = inlined_call_operand.vmem [shape: f32[1,128], index: 8, kind: input, shape index: {}]
  %s9 = inlined_call_operand.hbm [shape: bf16[128,128], index: 9, kind: input, shape index: {}]
  %s10 = inlined_call_operand.vmem [shape: f32[1,128], index: 10, kind: input, shape index: {}]
  %s11 = inlined_call_operand.vmem [shape: f32[8,128], index: 11, kind: output, shape index: {}]
  %s12 = sld [smem:[#allocation0]]
  $region74: #{text_mrcnn_forward.1} parent=0
    _
  %s14 = ssub.s32 1, %s12
  %s15 = scalar_select 0, %s14, %s12
  $region1: #{text_mrcnn_forward.1} parent=0
    #allocation3 [shape = 'u8[32768]{0}', space=vmem, size = 0x8000, scoped, tag = 'input window, operand 3, single buffered']
    #allocation4 [shape = 's32[1]{0}', space=sflag, size = 0x4, scoped, tag = 'scoped memory for text_mrcnn_forward.1']
    #allocation5 [shape = 'u8[32768]{0}', space=vmem, size = 0x8000, scoped, tag = 'input window, operand 4, single buffered']
    #allocation6 [shape = 's32[1]{0}', space=sflag, size = 0x4, scoped, tag = 'scoped memory for text_mrcnn_forward.1']
    #allocation7 [shape = 'u8[8192]{0}', space=vmem, size = 0x2000, scoped, tag = 'input window, operand 5, single buffered']
    #allocation8 [shape = 'u8[16384]{0}', space=vmem, size = 0x4000, scoped, tag = 'input window, operand 7, single buffered']
    #allocation9 [shape = 's32[1]{0}', space=sflag, size = 0x4, scoped, tag = 'scoped memory for text_mrcnn_forward.1']
    #allocation10 [shape = 'u8[32768]{0}', space=vmem, size = 0x8000, scoped, tag = 'input window, operand 9, single buffered']
    %16 = vsyncpa [#allocation4], 0
    %17 = vsyncpa [#allocation6], 0
    %18 = vsyncpa [#allocation9], 0
    // Predicated region
    $region2: #{text_mrcnn_forward.1} parent=1 // pred_check
      _
    $region3: #{text_mrcnn_forward.1} parent=1 // pred_check_branch
      %20 = sbr.rel (0) target = $region5
    $region4: #{text_mrcnn_forward.1} parent=1 // pred_region
      _
    $region5: #{text_mrcnn_forward.1} parent=1 // pred_fallthru
      _
    // Predicated region
    $region6: #{text_mrcnn_forward.1} parent=1 // pred_check
      _
    $region7: #{text_mrcnn_forward.1} parent=1 // pred_check_branch
      %22 = sbr.rel (0) target = $region9
    $region8: #{text_mrcnn_forward.1} parent=1 // pred_region
      _
    $region9: #{text_mrcnn_forward.1} parent=1 // pred_fallthru
      _
    // Predicated region
    $region10: #{text_mrcnn_forward.1} parent=1 // pred_check
      _
    $region11: #{text_mrcnn_forward.1} parent=1 // pred_check_branch
      %24 = sbr.rel (0) target = $region13
    $region12: #{text_mrcnn_forward.1} parent=1 // pred_region
      _
    $region13: #{text_mrcnn_forward.1} parent=1 // pred_fallthru
      _
    // Predicated region
    $region14: #{text_mrcnn_forward.1} parent=1 // pred_check
      _
    $region15: #{text_mrcnn_forward.1} parent=1 // pred_check_branch
      %26 = sbr.rel (0) target = $region17
    $region16: #{text_mrcnn_forward.1} parent=1 // pred_region
      %28 = vsyncadd [#allocation4], 0
      %s29 = sshll.u32 %s3, 4
      %s30 = int_to_ptr.hbm [resolvable:$true] %s29
      %s31 = sshll.u32 [#allocation3], 4
      %s32 = int_to_ptr.vmem [resolvable:$true] %s31
      %37 = dma.hbm_to_vmem [thread:$0]  %s30, 1024, %s32, [#allocation4], 128, 128, 8
    $region17: #{text_mrcnn_forward.1} parent=1 // pred_fallthru
      _
    // Predicated region
    $region18: #{text_mrcnn_forward.1} parent=1 // pred_check
      _
    $region19: #{text_mrcnn_forward.1} parent=1 // pred_check_branch
      %39 = sbr.rel (0) target = $region21
    $region20: #{text_mrcnn_forward.1} parent=1 // pred_region
      %41 = vsyncadd [#allocation6], 0
      %s42 = sshll.u32 %s4, 4
      %s43 = int_to_ptr.hbm [resolvable:$true] %s42
      %s44 = sshll.u32 [#allocation5], 4
      %s45 = int_to_ptr.vmem [resolvable:$true] %s44
      %50 = dma.hbm_to_vmem [thread:$0]  %s43, 1024, %s45, [#allocation6], 128, 128, 8
    $region21: #{text_mrcnn_forward.1} parent=1 // pred_fallthru
      _
    // Predicated region
    $region22: #{text_mrcnn_forward.1} parent=1 // pred_check
      _
    $region23: #{text_mrcnn_forward.1} parent=1 // pred_check_branch
      %52 = sbr.rel (0) target = $region25
    $region24: #{text_mrcnn_forward.1} parent=1 // pred_region
      %54 = vsyncadd [#allocation6], 0
      %s55 = sshll.u32 %s5, 4
      %s56 = int_to_ptr.hbm [resolvable:$true] %s55
      %s57 = sshll.u32 [#allocation7], 4
      %s58 = int_to_ptr.vmem [resolvable:$true] %s57
      %63 = dma.hbm_to_vmem [thread:$0]  %s56, 256, %s58, [#allocation6], 64, 64, 4
    $region25: #{text_mrcnn_forward.1} parent=1 // pred_fallthru
      _
    // Predicated region
    $region26: #{text_mrcnn_forward.1} parent=1 // pred_check
      _
    $region27: #{text_mrcnn_forward.1} parent=1 // pred_check_branch
      %65 = sbr.rel (0) target = $region29
    $region28: #{text_mrcnn_forward.1} parent=1 // pred_region
      _
    $region29: #{text_mrcnn_forward.1} parent=1 // pred_fallthru
      _
    // Predicated region
    $region30: #{text_mrcnn_forward.1} parent=1 // pred_check
      _
    $region31: #{text_mrcnn_forward.1} parent=1 // pred_check_branch
      %67 = sbr.rel (0) target = $region33
    $region32: #{text_mrcnn_forward.1} parent=1 // pred_region
      %69 = vsyncadd [#allocation9], 0
      %s70 = sshll.u32 %s7, 4
      %s71 = int_to_ptr.hbm [resolvable:$true] %s70
      %s72 = sshll.u32 [#allocation8], 4
      %s73 = int_to_ptr.vmem [resolvable:$true] %s72
      %78 = dma.hbm_to_vmem [thread:$0]  %s71, 512, %s73, [#allocation9], 64, 64, 4
    $region33: #{text_mrcnn_forward.1} parent=1 // pred_fallthru
      _
    // Predicated region
    $region34: #{text_mrcnn_forward.1} parent=1 // pred_check
      _
    $region35: #{text_mrcnn_forward.1} parent=1 // pred_check_branch
      %80 = sbr.rel (0) target = $region37
    $region36: #{text_mrcnn_forward.1} parent=1 // pred_region
      _
    $region37: #{text_mrcnn_forward.1} parent=1 // pred_fallthru
      _
    // Predicated region
    $region38: #{text_mrcnn_forward.1} parent=1 // pred_check
      _
    $region39: #{text_mrcnn_forward.1} parent=1 // pred_check_branch
      %82 = sbr.rel (0) target = $region41
    $region40: #{text_mrcnn_forward.1} parent=1 // pred_region
      %84 = vsyncadd [#allocation9], 0
      %s85 = sshll.u32 %s9, 4
      %s86 = int_to_ptr.hbm [resolvable:$true] %s85
      %s87 = sshll.u32 [#allocation10], 4
      %s88 = int_to_ptr.vmem [resolvable:$true] %s87
      %93 = dma.hbm_to_vmem [thread:$0]  %s86, 1024, %s88, [#allocation9], 64, 64, 4
    $region41: #{text_mrcnn_forward.1} parent=1 // pred_fallthru
      _
    // Predicated region
    $region42: #{text_mrcnn_forward.1} parent=1 // pred_check
      _
    $region43: #{text_mrcnn_forward.1} parent=1 // pred_check_branch
      %95 = sbr.rel (0) target = $region45
    $region44: #{text_mrcnn_forward.1} parent=1 // pred_region
      _
    $region45: #{text_mrcnn_forward.1} parent=1 // pred_fallthru
      _
    // Predicated region
    $region46: #{text_mrcnn_forward.1} parent=1 // pred_check
      _
    $region47: #{text_mrcnn_forward.1} parent=1 // pred_check_branch
      %97 = sbr.rel (0) target = $region49
    $region48: #{text_mrcnn_forward.1} parent=1 // pred_region
      %99 = dma.done [#allocation4], 1024
    $region49: #{text_mrcnn_forward.1} parent=1 // pred_fallthru
      _
    // Predicated region
    $region50: #{text_mrcnn_forward.1} parent=1 // pred_check
      _
    $region51: #{text_mrcnn_forward.1} parent=1 // pred_check_branch
      %101 = sbr.rel (0) target = $region53
    $region52: #{text_mrcnn_forward.1} parent=1 // pred_region
      %103 = dma.done [#allocation6], 1024
    $region53: #{text_mrcnn_forward.1} parent=1 // pred_fallthru
      _
    // Predicated region
    $region54: #{text_mrcnn_forward.1} parent=1 // pred_check
      _
    $region55: #{text_mrcnn_forward.1} parent=1 // pred_check_branch
      %105 = sbr.rel (0) target = $region57
    $region56: #{text_mrcnn_forward.1} parent=1 // pred_region
      %107 = dma.done [#allocation6], 256
    $region57: #{text_mrcnn_forward.1} parent=1 // pred_fallthru
      _
    // Predicated region
    $region58: #{text_mrcnn_forward.1} parent=1 // pred_check
      _
    $region59: #{text_mrcnn_forward.1} parent=1 // pred_check_branch
      %109 = sbr.rel (0) target = $region61
    $region60: #{text_mrcnn_forward.1} parent=1 // pred_region
      %111 = dma.done [#allocation9], 512
    $region61: #{text_mrcnn_forward.1} parent=1 // pred_fallthru
      _
    // Predicated region
    $region62: #{text_mrcnn_forward.1} parent=1 // pred_check
      _
    $region63: #{text_mrcnn_forward.1} parent=1 // pred_check_branch
      %113 = sbr.rel (0) target = $region65
    $region64: #{text_mrcnn_forward.1} parent=1 // pred_region
      %115 = dma.done [#allocation9], 1024
    $region65: #{text_mrcnn_forward.1} parent=1 // pred_fallthru
      _
    %v117 = vld [vmem:[%s0] sm:$0xff]
    %v118 = vld [vmem:[%s0 + $0x8] sm:$0xff]
    %v119 = vld [vmem:[%s0 + $0x10] sm:$0xff]
    %v120 = vld [vmem:[%s0 + $0x18] sm:$0xff]
    %v121 = vld [vmem:[%s0 + $0x20] sm:$0xff]
    %v122 = vld [vmem:[%s0 + $0x28] sm:$0xff]
    %v123 = vld [vmem:[%s0 + $0x30] sm:$0xff]
    %v124 = vld [vmem:[%s0 + $0x38] sm:$0xff]
    %v125 = vlaneseq
    %v126 = vand.u32 %v125, 127
    %127 = vset.pattern.permute.xlu0 0
    %128 = vperm.xlu0 %127, %v117
    %v129 = vpop.permute.xlu0 %128
    %130 = vset.pattern.permute.xlu0 0
    %131 = vperm.xlu0 %130, %v118
    %v132 = vpop.permute.xlu0 %131
    %133 = vset.pattern.permute.xlu0 0
    %134 = vperm.xlu0 %133, %v119
    %v135 = vpop.permute.xlu0 %134
    %136 = vset.pattern.permute.xlu0 0
    %137 = vperm.xlu0 %136, %v120
    %v138 = vpop.permute.xlu0 %137
    %139 = vset.pattern.permute.xlu0 0
    %140 = vperm.xlu0 %139, %v121
    %v141 = vpop.permute.xlu0 %140
    %142 = vset.pattern.permute.xlu0 0
    %143 = vperm.xlu0 %142, %v122
    %v144 = vpop.permute.xlu0 %143
    %145 = vset.pattern.permute.xlu0 0
    %146 = vperm.xlu0 %145, %v123
    %v147 = vpop.permute.xlu0 %146
    %148 = vset.pattern.permute.xlu0 0
    %149 = vperm.xlu0 %148, %v124
    %v150 = vpop.permute.xlu0 %149
    %vm151 = vcmp.eq.s32.totalorder %v126, %v129
    %vm152 = vcmp.eq.s32.totalorder %v126, %v132
    %vm153 = vcmp.eq.s32.totalorder %v126, %v135
    %vm154 = vcmp.eq.s32.totalorder %v126, %v138
    %vm155 = vcmp.eq.s32.totalorder %v126, %v141
    %vm156 = vcmp.eq.s32.totalorder %v126, %v144
    %vm157 = vcmp.eq.s32.totalorder %v126, %v147
    %vm158 = vcmp.eq.s32.totalorder %v126, %v150
    %v159 = vsel %vm151, 1.0, 0.0
    %v160 = vsel %vm152, 1.0, 0.0
    %v161 = vsel %vm153, 1.0, 0.0
    %v162 = vsel %vm154, 1.0, 0.0
    %v163 = vsel %vm155, 1.0, 0.0
    %v164 = vsel %vm156, 1.0, 0.0
    %v165 = vsel %vm157, 1.0, 0.0
    %v166 = vsel %vm158, 1.0, 0.0
    %v167 = vpack.c.bf16 %v160, %v159
    %v168 = vpack.c.bf16 %v162, %v161
    %v169 = vpack.c.bf16 %v164, %v163
    %v170 = vpack.c.bf16 %v166, %v165
    %v171 = vld [vmem:[%s1] sm:$0xff]
    %v172 = vld [vmem:[%s1 + $0x8] sm:$0xff]
    %v173 = vld [vmem:[%s1 + $0x10] sm:$0xff]
    %v174 = vld [vmem:[%s1 + $0x18] sm:$0xff]
    %v175 = vld [vmem:[%s1 + $0x20] sm:$0xff]
    %v176 = vld [vmem:[%s1 + $0x28] sm:$0xff]
    %v177 = vld [vmem:[%s1 + $0x30] sm:$0xff]
    %v178 = vld [vmem:[%s1 + $0x38] sm:$0xff]
    %v179 = vld [vmem:[%s2] sm:$0xf]
    %v181 = vperm.slane %v179, 0
    %v182 = vperm.slane %v179, 1
    %v183 = vperm.slane %v179, 2
    %v184 = vperm.slane %v179, 3
    %v197 = vunpack.c.l.b16 %v171
    %v198 = vunpack.c.h.b16 %v171
    %v199 = vunpack.c.l.b16 %v172
    %v200 = vunpack.c.h.b16 %v172
    %v201 = vunpack.c.l.b16 %v173
    %v202 = vunpack.c.h.b16 %v173
    %v203 = vunpack.c.l.b16 %v174
    %v204 = vunpack.c.h.b16 %v174
    %v205 = vunpack.c.l.b16 %v175
    %v206 = vunpack.c.h.b16 %v175
    %v207 = vunpack.c.l.b16 %v176
    %v208 = vunpack.c.h.b16 %v176
    %v209 = vunpack.c.l.b16 %v177
    %v210 = vunpack.c.h.b16 %v177
    %v211 = vunpack.c.l.b16 %v178
    %v212 = vunpack.c.h.b16 %v178
    %v213 = vpack.c.b16 %v201, %v197
    %v214 = vpack.c.b16 %v202, %v198
    %v215 = vpack.c.b16 %v203, %v199
    %v216 = vpack.c.b16 %v204, %v200
    %v217 = vpack.c.b16 %v209, %v205
    %v218 = vpack.c.b16 %v210, %v206
    %v219 = vpack.c.b16 %v211, %v207
    %v220 = vpack.c.b16 %v212, %v208
    %vm229 = vcmask 261120
    %v231 = vsel %vm229, %v167, 0
    %v234 = vsel %vm229, %v168, 0
    %v237 = vsel %vm229, %v169, 0
    %v240 = vsel %vm229, %v170, 0
    %242 = vmatpush.bf16.msra.mxu0 0
    %243 = vmatpush.bf16.msra.mxu0 0
    %244 = vmatpush.bf16.msra.mxu0 0
    %245 = vmatpush.bf16.msra.mxu0 0
    %246 = vmatpush.bf16.msra.mxu0 0
    %247 = vmatpush.bf16.msra.mxu0 0
    %248 = vmatpush.bf16.msra.mxu0 %v217
    %249 = vmatpush.bf16.msra.mxu0 %v213
    %250 = vmatmul.bf16.gmra.mxu0 %v231
    %v251 = vpop.f32.mrf.mxu0
    %v252 = vadd.f32 %v181, %v251
    %v253 = vpop.f32.mrf.mxu0
    %v254 = vadd.f32 %v181, %v253
    %255 = vmatmul.bf16.gmra.mxu0 %v234
    %v256 = vpop.f32.mrf.mxu0
    %v257 = vadd.f32 %v181, %v256
    %v258 = vpop.f32.mrf.mxu0
    %v259 = vadd.f32 %v181, %v258
    %260 = vmatmul.bf16.gmra.mxu0 %v237
    %v261 = vpop.f32.mrf.mxu0
    %v262 = vadd.f32 %v181, %v261
    %v263 = vpop.f32.mrf.mxu0
    %v264 = vadd.f32 %v181, %v263
    %265 = vmatmul.bf16.gmra.mxu0 %v240
    %v266 = vpop.f32.mrf.mxu0
    %v267 = vadd.f32 %v181, %v266
    %v268 = vpop.f32.mrf.mxu0
    %v269 = vadd.f32 %v181, %v268
    %270 = vdwg.mxu0
    %271 = vmatpush.bf16.msra.mxu0 0
    %272 = vmatpush.bf16.msra.mxu0 0
    %273 = vmatpush.bf16.msra.mxu0 0
    %274 = vmatpush.bf16.msra.mxu0 0
    %275 = vmatpush.bf16.msra.mxu0 0
    %276 = vmatpush.bf16.msra.mxu0 0
    %277 = vmatpush.bf16.msra.mxu0 %v218
    %278 = vmatpush.bf16.msra.mxu0 %v214
    %279 = vmatmul.bf16.gmra.mxu0 %v231
    %v280 = vpop.f32.mrf.mxu0
    %v281 = vadd.f32 %v182, %v280
    %v282 = vpop.f32.mrf.mxu0
    %v283 = vadd.f32 %v182, %v282
    %284 = vmatmul.bf16.gmra.mxu0 %v234
    %v285 = vpop.f32.mrf.mxu0
    %v286 = vadd.f32 %v182, %v285
    %v287 = vpop.f32.mrf.mxu0
    %v288 = vadd.f32 %v182, %v287
    %289 = vmatmul.bf16.gmra.mxu0 %v237
    %v290 = vpop.f32.mrf.mxu0
    %v291 = vadd.f32 %v182, %v290
    %v292 = vpop.f32.mrf.mxu0
    %v293 = vadd.f32 %v182, %v292
    %294 = vmatmul.bf16.gmra.mxu0 %v240
    %v295 = vpop.f32.mrf.mxu0
    %v296 = vadd.f32 %v182, %v295
    %v297 = vpop.f32.mrf.mxu0
    %v298 = vadd.f32 %v182, %v297
    %299 = vdwg.mxu0
    %300 = vmatpush.bf16.msra.mxu0 0
    %301 = vmatpush.bf16.msra.mxu0 0
    %302 = vmatpush.bf16.msra.mxu0 0
    %303 = vmatpush.bf16.msra.mxu0 0
    %304 = vmatpush.bf16.msra.mxu0 0
    %305 = vmatpush.bf16.msra.mxu0 0
    %306 = vmatpush.bf16.msra.mxu0 %v219
    %307 = vmatpush.bf16.msra.mxu0 %v215
    %308 = vmatmul.bf16.gmra.mxu0 %v231
    %v309 = vpop.f32.mrf.mxu0
    %v310 = vadd.f32 %v183, %v309
    %v311 = vpop.f32.mrf.mxu0
    %v312 = vadd.f32 %v183, %v311
    %313 = vmatmul.bf16.gmra.mxu0 %v234
    %v314 = vpop.f32.mrf.mxu0
    %v315 = vadd.f32 %v183, %v314
    %v316 = vpop.f32.mrf.mxu0
    %v317 = vadd.f32 %v183, %v316
    %318 = vmatmul.bf16.gmra.mxu0 %v237
    %v319 = vpop.f32.mrf.mxu0
    %v320 = vadd.f32 %v183, %v319
    %v321 = vpop.f32.mrf.mxu0
    %v322 = vadd.f32 %v183, %v321
    %323 = vmatmul.bf16.gmra.mxu0 %v240
    %v324 = vpop.f32.mrf.mxu0
    %v325 = vadd.f32 %v183, %v324
    %v326 = vpop.f32.mrf.mxu0
    %v327 = vadd.f32 %v183, %v326
    %328 = vdwg.mxu0
    %329 = vmatpush.bf16.msra.mxu0 0
    %330 = vmatpush.bf16.msra.mxu0 0
    %331 = vmatpush.bf16.msra.mxu0 0
    %332 = vmatpush.bf16.msra.mxu0 0
    %333 = vmatpush.bf16.msra.mxu0 0
    %334 = vmatpush.bf16.msra.mxu0 0
    %335 = vmatpush.bf16.msra.mxu0 %v220
    %336 = vmatpush.bf16.msra.mxu0 %v216
    %337 = vmatmul.bf16.gmra.mxu0 %v231
    %v338 = vpop.f32.mrf.mxu0
    %v339 = vadd.f32 %v184, %v338
    %v340 = vpop.f32.mrf.mxu0
    %v341 = vadd.f32 %v184, %v340
    %342 = vmatmul.bf16.gmra.mxu0 %v234
    %v343 = vpop.f32.mrf.mxu0
    %v344 = vadd.f32 %v184, %v343
    %v345 = vpop.f32.mrf.mxu0
    %v346 = vadd.f32 %v184, %v345
    %347 = vmatmul.bf16.gmra.mxu0 %v237
    %v348 = vpop.f32.mrf.mxu0
    %v349 = vadd.f32 %v184, %v348
    %v350 = vpop.f32.mrf.mxu0
    %v351 = vadd.f32 %v184, %v350
    %352 = vmatmul.bf16.gmra.mxu0 %v240
    %v353 = vpop.f32.mrf.mxu0
    %v354 = vadd.f32 %v184, %v353
    %v355 = vpop.f32.mrf.mxu0
    %v356 = vadd.f32 %v184, %v355
    %357 = vdwg.mxu0
    %v358 = vld [vmem:[#allocation7] sm:$0xf]
    %v359 = vld [vmem:[#allocation7 + $0x4] sm:$0xf]
    %v360 = vld [vmem:[#allocation7 + $0x8] sm:$0xf]
    %v361 = vld [vmem:[#allocation7 + $0xc] sm:$0xf]
    %v362 = vld [vmem:[%s8] sm:$0x1]
    %v364 = vperm.slane %v362, 0
    %v370 = vunpack.c.l.b16 %v358
    %v371 = vunpack.c.l.b16 %v359
    %v372 = vunpack.c.l.b16 %v360
    %v373 = vunpack.c.l.b16 %v361
    %v374 = vpack.c.b16 %v371, %v370
    %v375 = vpack.c.b16 %v373, %v372
    %378 = vmatpush.bf16.msra.mxu0 0
    %379 = vmatpush.bf16.msra.mxu0 0
    %380 = vmatpush.bf16.msra.mxu0 0
    %381 = vmatpush.bf16.msra.mxu0 0
    %382 = vmatpush.bf16.msra.mxu0 0
    %383 = vmatpush.bf16.msra.mxu0 0
    %384 = vmatpush.bf16.msra.mxu0 %v375
    %385 = vmatpush.bf16.msra.mxu0 %v374
    %386 = vmatmul.bf16.gmra.mxu0 %v231
    %v387 = vpop.f32.mrf.mxu0
    %v388 = vadd.f32 %v364, %v387
    %v389 = vpop.f32.mrf.mxu0
    %v390 = vadd.f32 %v364, %v389
    %391 = vmatmul.bf16.gmra.mxu0 %v234
    %v392 = vpop.f32.mrf.mxu0
    %v393 = vadd.f32 %v364, %v392
    %v394 = vpop.f32.mrf.mxu0
    %v395 = vadd.f32 %v364, %v394
    %396 = vmatmul.bf16.gmra.mxu0 %v237
    %v397 = vpop.f32.mrf.mxu0
    %v398 = vadd.f32 %v364, %v397
    %v399 = vpop.f32.mrf.mxu0
    %v400 = vadd.f32 %v364, %v399
    %401 = vmatmul.bf16.gmra.mxu0 %v240
    %v402 = vpop.f32.mrf.mxu0
    %v403 = vadd.f32 %v364, %v402
    %v404 = vpop.f32.mrf.mxu0
    %v405 = vadd.f32 %v364, %v404
    %406 = vdwg.mxu0
    %407 = vst [vmem:[#allocation2] sm:$0xff] %v388
    %408 = vst [vmem:[#allocation2 + $0x8] sm:$0xff] %v390
    %409 = vst [vmem:[#allocation2 + $0x10] sm:$0xff] %v393
    %410 = vst [vmem:[#allocation2 + $0x18] sm:$0xff] %v395
    %411 = vst [vmem:[#allocation2 + $0x20] sm:$0xff] %v398
    %412 = vst [vmem:[#allocation2 + $0x28] sm:$0xff] %v400
    %413 = vst [vmem:[#allocation2 + $0x30] sm:$0xff] %v403
    %414 = vst [vmem:[#allocation2 + $0x38] sm:$0xff] %v405
    %v415 = vld [vmem:[#allocation3] sm:$0xff]
    %v416 = vld [vmem:[#allocation3 + $0x8] sm:$0xff]
    %v417 = vld [vmem:[#allocation3 + $0x10] sm:$0xff]
    %v418 = vld [vmem:[#allocation3 + $0x18] sm:$0xff]
    %v419 = vld [vmem:[#allocation3 + $0x20] sm:$0xff]
    %v420 = vld [vmem:[#allocation3 + $0x28] sm:$0xff]
    %v421 = vld [vmem:[#allocation3 + $0x30] sm:$0xff]
    %v422 = vld [vmem:[#allocation3 + $0x38] sm:$0xff]
    %v423 = vld [vmem:[#allocation5] sm:$0xff]
    %v424 = vld [vmem:[#allocation5 + $0x8] sm:$0xff]
    %v425 = vld [vmem:[#allocation5 + $0x10] sm:$0xff]
    %v426 = vld [vmem:[#allocation5 + $0x18] sm:$0xff]
    %v427 = vld [vmem:[#allocation5 + $0x20] sm:$0xff]
    %v428 = vld [vmem:[#allocation5 + $0x28] sm:$0xff]
    %v429 = vld [vmem:[#allocation5 + $0x30] sm:$0xff]
    %v430 = vld [vmem:[#allocation5 + $0x38] sm:$0xff]
    %v431 = vld [vmem:[%s6] sm:$0xf]
    %v432 = vld [vmem:[%s6 + $0x4] sm:$0xf]
    %v433 = vld [vmem:[%s6 + $0x8] sm:$0xf]
    %v434 = vld [vmem:[%s6 + $0xc] sm:$0xf]
    %v435 = vld [vmem:[%s6 + $0x10] sm:$0xf]
    %v436 = vld [vmem:[%s6 + $0x14] sm:$0xf]
    %v437 = vld [vmem:[%s6 + $0x18] sm:$0xf]
    %v438 = vld [vmem:[%s6 + $0x1c] sm:$0xf]
    %v439 = vld [vmem:[#allocation8] sm:$0xf]
    %v440 = vld [vmem:[#allocation8 + $0x4] sm:$0xf]
    %v441 = vld [vmem:[#allocation8 + $0x8] sm:$0xf]
    %v442 = vld [vmem:[#allocation8 + $0xc] sm:$0xf]
    %v443 = vld [vmem:[#allocation8 + $0x10] sm:$0xf]
    %v444 = vld [vmem:[#allocation8 + $0x14] sm:$0xf]
    %v445 = vld [vmem:[#allocation8 + $0x18] sm:$0xf]
    %v446 = vld [vmem:[#allocation8 + $0x1c] sm:$0xf]
    %v455 = vunpack.c.l.b16 %v415
    %v456 = vunpack.c.h.b16 %v415
    %v457 = vunpack.c.l.b16 %v416
    %v458 = vunpack.c.h.b16 %v416
    %v459 = vunpack.c.l.b16 %v417
    %v460 = vunpack.c.h.b16 %v417
    %v461 = vunpack.c.l.b16 %v418
    %v462 = vunpack.c.h.b16 %v418
    %v463 = vunpack.c.l.b16 %v419
    %v464 = vunpack.c.h.b16 %v419
    %v465 = vunpack.c.l.b16 %v420
    %v466 = vunpack.c.h.b16 %v420
    %v467 = vunpack.c.l.b16 %v421
    %v468 = vunpack.c.h.b16 %v421
    %v469 = vunpack.c.l.b16 %v422
    %v470 = vunpack.c.h.b16 %v422
    %v471 = vpack.c.b16 %v457, %v455
    %v472 = vpack.c.b16 %v458, %v456
    %v473 = vpack.c.b16 %v461, %v459
    %v474 = vpack.c.b16 %v462, %v460
    %v475 = vpack.c.b16 %v465, %v463
    %v476 = vpack.c.b16 %v466, %v464
    %v477 = vpack.c.b16 %v469, %v467
    %v478 = vpack.c.b16 %v470, %v468
    %vm487 = vcmask 523264
    %v489 = vsel %vm487, 0, 0
    %491 = vmatpush.bf16.msra.mxu0 0
    %492 = vmatpush.bf16.msra.mxu0 0
    %493 = vmatpush.bf16.msra.mxu0 0
    %494 = vmatpush.bf16.msra.mxu0 0
    %495 = vmatpush.bf16.msra.mxu0 %v477
    %496 = vmatpush.bf16.msra.mxu0 %v475
    %497 = vmatpush.bf16.msra.mxu0 %v473
    %498 = vmatpush.bf16.msra.mxu0 %v471
    %499 = vmatmul.bf16.gmra.mxu0 %v489
    %v500 = vpop.f32.mrf.mxu0
    %v501 = vadd.f32 %v252, %v500
    %v502 = vpop.f32.mrf.mxu0
    %503 = vdwg.mxu0
    %504 = vmatpush.bf16.msra.mxu0 0
    %505 = vmatpush.bf16.msra.mxu0 0
    %506 = vmatpush.bf16.msra.mxu0 0
    %507 = vmatpush.bf16.msra.mxu0 0
    %508 = vmatpush.bf16.msra.mxu0 %v478
    %509 = vmatpush.bf16.msra.mxu0 %v476
    %510 = vmatpush.bf16.msra.mxu0 %v474
    %511 = vmatpush.bf16.msra.mxu0 %v472
    %512 = vmatmul.bf16.gmra.mxu0 %v489
    %v513 = vpop.f32.mrf.mxu0
    %v514 = vadd.f32 %v281, %v513
    %v515 = vpop.f32.mrf.mxu0
    %516 = vdwg.mxu0
    %v525 = vunpack.c.l.b16 %v423
    %v526 = vunpack.c.h.b16 %v423
    %v527 = vunpack.c.l.b16 %v424
    %v528 = vunpack.c.h.b16 %v424
    %v529 = vunpack.c.l.b16 %v425
    %v530 = vunpack.c.h.b16 %v425
    %v531 = vunpack.c.l.b16 %v426
    %v532 = vunpack.c.h.b16 %v426
    %v533 = vunpack.c.l.b16 %v427
    %v534 = vunpack.c.h.b16 %v427
    %v535 = vunpack.c.l.b16 %v428
    %v536 = vunpack.c.h.b16 %v428
    %v537 = vunpack.c.l.b16 %v429
    %v538 = vunpack.c.h.b16 %v429
    %v539 = vunpack.c.l.b16 %v430
    %v540 = vunpack.c.h.b16 %v430
    %v541 = vpack.c.b16 %v527, %v525
    %v542 = vpack.c.b16 %v528, %v526
    %v543 = vpack.c.b16 %v531, %v529
    %v544 = vpack.c.b16 %v532, %v530
    %v545 = vpack.c.b16 %v535, %v533
    %v546 = vpack.c.b16 %v536, %v534
    %v547 = vpack.c.b16 %v539, %v537
    %v548 = vpack.c.b16 %v540, %v538
    %557 = vmatpush.bf16.msra.mxu0 0
    %558 = vmatpush.bf16.msra.mxu0 0
    %559 = vmatpush.bf16.msra.mxu0 0
    %560 = vmatpush.bf16.msra.mxu0 0
    %561 = vmatpush.bf16.msra.mxu0 %v547
    %562 = vmatpush.bf16.msra.mxu0 %v545
    %563 = vmatpush.bf16.msra.mxu0 %v543
    %564 = vmatpush.bf16.msra.mxu0 %v541
    %565 = vmatmul.bf16.gmra.mxu0 %v489
    %v566 = vpop.f32.mrf.mxu0
    %v567 = vadd.f32 %v327, %v566
    %v568 = vpop.f32.mrf.mxu0
    %569 = vdwg.mxu0
    %570 = vmatpush.bf16.msra.mxu0 0
    %571 = vmatpush.bf16.msra.mxu0 0
    %572 = vmatpush.bf16.msra.mxu0 0
    %573 = vmatpush.bf16.msra.mxu0 0
    %574 = vmatpush.bf16.msra.mxu0 %v548
    %575 = vmatpush.bf16.msra.mxu0 %v546
    %576 = vmatpush.bf16.msra.mxu0 %v544
    %577 = vmatpush.bf16.msra.mxu0 %v542
    %578 = vmatmul.bf16.gmra.mxu0 %v489
    %v579 = vpop.f32.mrf.mxu0
    %v580 = vadd.f32 %v356, %v579
    %v581 = vpop.f32.mrf.mxu0
    %582 = vdwg.mxu0
    %v583 = vxor.u32 %v501, 2147483648
    %v584 = vxor.u32 %v514, 2147483648
    %v585 = vxor.u32 %v567, 2147483648
    %v586 = vxor.u32 %v580, 2147483648
    %v587 = vmul.f32 %v583, 1.442695
    %v588 = vpow.pop %v587
    %v589 = vmul.f32 %v584, 1.442695
    %v590 = vpow.pop %v589
    %v591 = vmul.f32 %v585, 1.442695
    %v592 = vpow.pop %v591
    %v593 = vmul.f32 %v586, 1.442695
    %v594 = vpow.pop %v593
    %v595 = vadd.f32 %v588, 1.0
    %v596 = vadd.f32 %v590, 1.0
    %v597 = vadd.f32 %v592, 1.0
    %v598 = vadd.f32 %v594, 1.0
    %v599 = vrcp.pop %v595
    %v600 = vmul.f32 %v595, %v599
    %v601 = vsub.f32 1.0, %v600
    %v602 = vmul.f32 %v599, %v601
    %v603 = vadd.f32 %v599, %v602
    %vm604 = vweird.f32 %v595
    %vm605 = vweird.f32 %v599
    %vm606 = vmor %vm604, %vm605
    %v607 = vsel %vm606, %v599, %v603
    %v608 = vand.u32 2147483647, %v595
    %vm609 = vcmp.eq.f32.partialorder %v608, 8.507059e+37
    %v610 = vand.u32 %v595, 2147483648
    %v611 = vor.u32 1.1754944e-38, %v610
    %v612 = vsel %vm609, %v611, %v607
    %v613 = vmul.f32 1.0, %v612
    %v614 = vrcp.pop %v596
    %v615 = vmul.f32 %v596, %v614
    %v616 = vsub.f32 1.0, %v615
    %v617 = vmul.f32 %v614, %v616
    %v618 = vadd.f32 %v614, %v617
    %vm619 = vweird.f32 %v596
    %vm620 = vweird.f32 %v614
    %vm621 = vmor %vm619, %vm620
    %v622 = vsel %vm621, %v614, %v618
    %v623 = vand.u32 2147483647, %v596
    %vm624 = vcmp.eq.f32.partialorder %v623, 8.507059e+37
    %v625 = vand.u32 %v596, 2147483648
    %v626 = vor.u32 1.1754944e-38, %v625
    %v627 = vsel %vm624, %v626, %v622
    %v628 = vmul.f32 1.0, %v627
    %v629 = vrcp.pop %v597
    %v630 = vmul.f32 %v597, %v629
    %v631 = vsub.f32 1.0, %v630
    %v632 = vmul.f32 %v629, %v631
    %v633 = vadd.f32 %v629, %v632
    %vm634 = vweird.f32 %v597
    %vm635 = vweird.f32 %v629
    %vm636 = vmor %vm634, %vm635
    %v637 = vsel %vm636, %v629, %v633
    %v638 = vand.u32 2147483647, %v597
    %vm639 = vcmp.eq.f32.partialorder %v638, 8.507059e+37
    %v640 = vand.u32 %v597, 2147483648
    %v641 = vor.u32 1.1754944e-38, %v640
    %v642 = vsel %vm639, %v641, %v637
    %v643 = vmul.f32 1.0, %v642
    %v644 = vrcp.pop %v598
    %v645 = vmul.f32 %v598, %v644
    %v646 = vsub.f32 1.0, %v645
    %v647 = vmul.f32 %v644, %v646
    %v648 = vadd.f32 %v644, %v647
    %vm649 = vweird.f32 %v598
    %vm650 = vweird.f32 %v644
    %vm651 = vmor %vm649, %vm650
    %v652 = vsel %vm651, %v644, %v648
    %v653 = vand.u32 2147483647, %v598
    %vm654 = vcmp.eq.f32.partialorder %v653, 8.507059e+37
    %v655 = vand.u32 %v598, 2147483648
    %v656 = vor.u32 1.1754944e-38, %v655
    %v657 = vsel %vm654, %v656, %v652
    %v658 = vmul.f32 1.0, %v657
    %v659 = vtanh.pop %v514
    %v660 = vtanh.pop %v580
    %v661 = vmul.f32 %v613, 0.0
    %v662 = vmul.f32 %v613, %v659
    %664 = vrot.lane.b32.xlu0 %v662, 64
    %v665 = vpop.permute.xlu0 %664
    %v667 = vadd.f32 %v661, %v665
    %v668 = vtanh.pop %v667
    %v669 = vmul.f32 %v628, %v668
    %v670 = vmul.f32 %v643, 0.0
    %v671 = vmul.f32 %v643, %v660
    %673 = vrot.lane.b32.xlu0 %v671, 64
    %v674 = vpop.permute.xlu0 %673
    %v676 = vadd.f32 %v670, %v674
    %v677 = vtanh.pop %v676
    %v678 = vmul.f32 %v658, %v677
    %v679 = vpack.c.bf16 %v669, %v669
    %v680 = vpack.c.bf16 %v678, %v678
    %v681 = vld [vmem:[#allocation2] sm:$0xff]
    %683 = vrot.lane.b32.xlu0 %v679, 64
    %v684 = vpop.permute.xlu0 %683
    %v693 = vunpack.c.l.b16 %v431
    %v694 = vunpack.c.l.b16 %v432
    %v695 = vunpack.c.l.b16 %v433
    %v696 = vunpack.c.l.b16 %v434
    %v697 = vunpack.c.l.b16 %v435
    %v698 = vunpack.c.l.b16 %v436
    %v699 = vunpack.c.l.b16 %v437
    %v700 = vunpack.c.l.b16 %v438
    %v701 = vpack.c.b16 %v694, %v693
    %v702 = vpack.c.b16 %v696, %v695
    %v703 = vpack.c.b16 %v698, %v697
    %v704 = vpack.c.b16 %v700, %v699
    %v710 = vsel %vm487, %v684, 0
    %712 = vmatpush.bf16.msra.mxu0 0
    %713 = vmatpush.bf16.msra.mxu0 0
    %714 = vmatpush.bf16.msra.mxu0 0
    %715 = vmatpush.bf16.msra.mxu0 0
    %716 = vmatpush.bf16.msra.mxu0 %v704
    %717 = vmatpush.bf16.msra.mxu0 %v703
    %718 = vmatpush.bf16.msra.mxu0 %v702
    %719 = vmatpush.bf16.msra.mxu0 %v701
    %720 = vmatmul.bf16.gmra.mxu0 %v710
    %v721 = vpop.f32.mrf.mxu0
    %v722 = vadd.f32 0.0, %v721
    %v723 = vpop.f32.mrf.mxu0
    %724 = vdwg.mxu0
    %v725 = vadd.f32 %v681, %v722
    %726 = vst [vmem:[#allocation2] sm:$0xff] %v725
    %v727 = vld [vmem:[#allocation2 + $0x38] sm:$0xff]
    %729 = vrot.lane.b32.xlu0 %v680, 64
    %v730 = vpop.permute.xlu0 %729
    %v739 = vunpack.c.l.b16 %v439
    %v740 = vunpack.c.l.b16 %v440
    %v741 = vunpack.c.l.b16 %v441
    %v742 = vunpack.c.l.b16 %v442
    %v743 = vunpack.c.l.b16 %v443
    %v744 = vunpack.c.l.b16 %v444
    %v745 = vunpack.c.l.b16 %v445
    %v746 = vunpack.c.l.b16 %v446
    %v747 = vpack.c.b16 %v740, %v739
    %v748 = vpack.c.b16 %v742, %v741
    %v749 = vpack.c.b16 %v744, %v743
    %v750 = vpack.c.b16 %v746, %v745
    %v756 = vsel %vm487, %v730, 0
    %758 = vmatpush.bf16.msra.mxu0 0
    %759 = vmatpush.bf16.msra.mxu0 0
    %760 = vmatpush.bf16.msra.mxu0 0
    %761 = vmatpush.bf16.msra.mxu0 0
    %762 = vmatpush.bf16.msra.mxu0 %v750
    %763 = vmatpush.bf16.msra.mxu0 %v749
    %764 = vmatpush.bf16.msra.mxu0 %v748
    %765 = vmatpush.bf16.msra.mxu0 %v747
    %766 = vmatmul.bf16.gmra.mxu0 %v756
    %v767 = vpop.f32.mrf.mxu0
    %v768 = vadd.f32 0.0, %v767
    %v769 = vpop.f32.mrf.mxu0
    %770 = vdwg.mxu0
    %v771 = vadd.f32 %v727, %v768
    %772 = vst [vmem:[#allocation2 + $0x38] sm:$0xff] %v771
    %773 = vmatpush.bf16.msra.mxu0 0
    %774 = vmatpush.bf16.msra.mxu0 0
    %775 = vmatpush.bf16.msra.mxu0 0
    %776 = vmatpush.bf16.msra.mxu0 0
    %777 = vmatpush.bf16.msra.mxu0 %v477
    %778 = vmatpush.bf16.msra.mxu0 %v475
    %779 = vmatpush.bf16.msra.mxu0 %v473
    %780 = vmatpush.bf16.msra.mxu0 %v471
    %781 = vmatmul.bf16.gmra.mxu0 %v710
    %v782 = vpop.f32.mrf.mxu0
    %v783 = vadd.f32 %v254, %v782
    %v784 = vpop.f32.mrf.mxu0
    %785 = vdwg.mxu0
    %786 = vmatpush.bf16.msra.mxu0 0
    %787 = vmatpush.bf16.msra.mxu0 0
    %788 = vmatpush.bf16.msra.mxu0 0
    %789 = vmatpush.bf16.msra.mxu0 0
    %790 = vmatpush.bf16.msra.mxu0 %v478
    %791 = vmatpush.bf16.msra.mxu0 %v476
    %792 = vmatpush.bf16.msra.mxu0 %v474
    %793 = vmatpush.bf16.msra.mxu0 %v472
    %794 = vmatmul.bf16.gmra.mxu0 %v710
    %v795 = vpop.f32.mrf.mxu0
    %v796 = vadd.f32 %v283, %v795
    %v797 = vpop.f32.mrf.mxu0
    %798 = vdwg.mxu0
    %799 = vmatpush.bf16.msra.mxu0 0
    %800 = vmatpush.bf16.msra.mxu0 0
    %801 = vmatpush.bf16.msra.mxu0 0
    %802 = vmatpush.bf16.msra.mxu0 0
    %803 = vmatpush.bf16.msra.mxu0 %v547
    %804 = vmatpush.bf16.msra.mxu0 %v545
    %805 = vmatpush.bf16.msra.mxu0 %v543
    %806 = vmatpush.bf16.msra.mxu0 %v541
    %807 = vmatmul.bf16.gmra.mxu0 %v756
    %v808 = vpop.f32.mrf.mxu0
    %v809 = vadd.f32 %v325, %v808
    %v810 = vpop.f32.mrf.mxu0
    %811 = vdwg.mxu0
    %812 = vmatpush.bf16.msra.mxu0 0
    %813 = vmatpush.bf16.msra.mxu0 0
    %814 = vmatpush.bf16.msra.mxu0 0
    %815 = vmatpush.bf16.msra.mxu0 0
    %816 = vmatpush.bf16.msra.mxu0 %v548
    %817 = vmatpush.bf16.msra.mxu0 %v546
    %818 = vmatpush.bf16.msra.mxu0 %v544
    %819 = vmatpush.bf16.msra.mxu0 %v542
    %820 = vmatmul.bf16.gmra.mxu0 %v756
    %v821 = vpop.f32.mrf.mxu0
    %v822 = vadd.f32 %v354, %v821
    %v823 = vpop.f32.mrf.mxu0
    %824 = vdwg.mxu0
    %v825 = vxor.u32 %v783, 2147483648
    %v826 = vxor.u32 %v796, 2147483648
    %v827 = vxor.u32 %v809, 2147483648
    %v828 = vxor.u32 %v822, 2147483648
    %v829 = vmul.f32 %v825, 1.442695
    %v830 = vpow.pop %v829
    %v831 = vmul.f32 %v826, 1.442695
    %v832 = vpow.pop %v831
    %v833 = vmul.f32 %v827, 1.442695
    %v834 = vpow.pop %v833
    %v835 = vmul.f32 %v828, 1.442695
    %v836 = vpow.pop %v835
    %v837 = vadd.f32 %v830, 1.0
    %v838 = vadd.f32 %v832, 1.0
    %v839 = vadd.f32 %v834, 1.0
    %v840 = vadd.f32 %v836, 1.0
    %v841 = vrcp.pop %v837
    %v842 = vmul.f32 %v837, %v841
    %v843 = vsub.f32 1.0, %v842
    %v844 = vmul.f32 %v841, %v843
    %v845 = vadd.f32 %v841, %v844
    %vm846 = vweird.f32 %v837
    %vm847 = vweird.f32 %v841
    %vm848 = vmor %vm846, %vm847
    %v849 = vsel %vm848, %v841, %v845
    %v850 = vand.u32 2147483647, %v837
    %vm851 = vcmp.eq.f32.partialorder %v850, 8.507059e+37
    %v852 = vand.u32 %v837, 2147483648
    %v853 = vor.u32 1.1754944e-38, %v852
    %v854 = vsel %vm851, %v853, %v849
    %v855 = vmul.f32 1.0, %v854
    %v856 = vrcp.pop %v838
    %v857 = vmul.f32 %v838, %v856
    %v858 = vsub.f32 1.0, %v857
    %v859 = vmul.f32 %v856, %v858
    %v860 = vadd.f32 %v856, %v859
    %vm861 = vweird.f32 %v838
    %vm862 = vweird.f32 %v856
    %vm863 = vmor %vm861, %vm862
    %v864 = vsel %vm863, %v856, %v860
    %v865 = vand.u32 2147483647, %v838
    %vm866 = vcmp.eq.f32.partialorder %v865, 8.507059e+37
    %v867 = vand.u32 %v838, 2147483648
    %v868 = vor.u32 1.1754944e-38, %v867
    %v869 = vsel %vm866, %v868, %v864
    %v870 = vmul.f32 1.0, %v869
    %v871 = vrcp.pop %v839
    %v872 = vmul.f32 %v839, %v871
    %v873 = vsub.f32 1.0, %v872
    %v874 = vmul.f32 %v871, %v873
    %v875 = vadd.f32 %v871, %v874
    %vm876 = vweird.f32 %v839
    %vm877 = vweird.f32 %v871
    %vm878 = vmor %vm876, %vm877
    %v879 = vsel %vm878, %v871, %v875
    %v880 = vand.u32 2147483647, %v839
    %vm881 = vcmp.eq.f32.partialorder %v880, 8.507059e+37
    %v882 = vand.u32 %v839, 2147483648
    %v883 = vor.u32 1.1754944e-38, %v882
    %v884 = vsel %vm881, %v883, %v879
    %v885 = vmul.f32 1.0, %v884
    %v886 = vrcp.pop %v840
    %v887 = vmul.f32 %v840, %v886
    %v888 = vsub.f32 1.0, %v887
    %v889 = vmul.f32 %v886, %v888
    %v890 = vadd.f32 %v886, %v889
    %vm891 = vweird.f32 %v840
    %vm892 = vweird.f32 %v886
    %vm893 = vmor %vm891, %vm892
    %v894 = vsel %vm893, %v886, %v890
    %v895 = vand.u32 2147483647, %v840
    %vm896 = vcmp.eq.f32.partialorder %v895, 8.507059e+37
    %v897 = vand.u32 %v840, 2147483648
    %v898 = vor.u32 1.1754944e-38, %v897
    %v899 = vsel %vm896, %v898, %v894
    %v900 = vmul.f32 1.0, %v899
    %v901 = vtanh.pop %v796
    %v902 = vtanh.pop %v822
    %v903 = vmul.f32 %v855, %v667
    %v904 = vmul.f32 %v855, %v901
    %906 = vrot.lane.b32.xlu0 %v904, 64
    %v907 = vpop.permute.xlu0 %906
    %v909 = vadd.f32 %v903, %v907
    %v910 = vtanh.pop %v909
    %v911 = vmul.f32 %v870, %v910
    %v912 = vmul.f32 %v885, %v676
    %v913 = vmul.f32 %v885, %v902
    %915 = vrot.lane.b32.xlu0 %v913, 64
    %v916 = vpop.permute.xlu0 %915
    %v918 = vadd.f32 %v912, %v916
    %v919 = vtanh.pop %v918
    %v920 = vmul.f32 %v900, %v919
    %v921 = vpack.c.bf16 %v911, %v911
    %v922 = vpack.c.bf16 %v920, %v920
    %v923 = vld [vmem:[#allocation2 + $0x8] sm:$0xff]
    %925 = vrot.lane.b32.xlu0 %v921, 64
    %v926 = vpop.permute.xlu0 %925
    %v928 = vsel %vm487, %v926, 0
    %930 = vmatpush.bf16.msra.mxu0 0
    %931 = vmatpush.bf16.msra.mxu0 0
    %932 = vmatpush.bf16.msra.mxu0 0
    %933 = vmatpush.bf16.msra.mxu0 0
    %934 = vmatpush.bf16.msra.mxu0 %v704
    %935 = vmatpush.bf16.msra.mxu0 %v703
    %936 = vmatpush.bf16.msra.mxu0 %v702
    %937 = vmatpush.bf16.msra.mxu0 %v701
    %938 = vmatmul.bf16.gmra.mxu0 %v928
    %v939 = vpop.f32.mrf.mxu0
    %v940 = vadd.f32 0.0, %v939
    %v941 = vpop.f32.mrf.mxu0
    %942 = vdwg.mxu0
    %v943 = vadd.f32 %v923, %v940
    %944 = vst [vmem:[#allocation2 + $0x8] sm:$0xff] %v943
    %v945 = vld [vmem:[#allocation2 + $0x30] sm:$0xff]
    %947 = vrot.lane.b32.xlu0 %v922, 64
    %v948 = vpop.permute.xlu0 %947
    %v950 = vsel %vm487, %v948, 0
    %952 = vmatpush.bf16.msra.mxu0 0
    %953 = vmatpush.bf16.msra.mxu0 0
    %954 = vmatpush.bf16.msra.mxu0 0
    %955 = vmatpush.bf16.msra.mxu0 0
    %956 = vmatpush.bf16.msra.mxu0 %v750
    %957 = vmatpush.bf16.msra.mxu0 %v749
    %958 = vmatpush.bf16.msra.mxu0 %v748
    %959 = vmatpush.bf16.msra.mxu0 %v747
    %960 = vmatmul.bf16.gmra.mxu0 %v950
    %v961 = vpop.f32.mrf.mxu0
    %v962 = vadd.f32 0.0, %v961
    %v963 = vpop.f32.mrf.mxu0
    %964 = vdwg.mxu0
    %v965 = vadd.f32 %v945, %v962
    %966 = vst [vmem:[#allocation2 + $0x30] sm:$0xff] %v965
    %967 = vmatpush.bf16.msra.mxu0 0
    %968 = vmatpush.bf16.msra.mxu0 0
    %969 = vmatpush.bf16.msra.mxu0 0
    %970 = vmatpush.bf16.msra.mxu0 0
    %971 = vmatpush.bf16.msra.mxu0 %v477
    %972 = vmatpush.bf16.msra.mxu0 %v475
    %973 = vmatpush.bf16.msra.mxu0 %v473
    %974 = vmatpush.bf16.msra.mxu0 %v471
    %975 = vmatmul.bf16.gmra.mxu0 %v928
    %v976 = vpop.f32.mrf.mxu0
    %v977 = vadd.f32 %v257, %v976
    %v978 = vpop.f32.mrf.mxu0
    %979 = vdwg.mxu0
    %980 = vmatpush.bf16.msra.mxu0 0
    %981 = vmatpush.bf16.msra.mxu0 0
    %982 = vmatpush.bf16.msra.mxu0 0
    %983 = vmatpush.bf16.msra.mxu0 0
    %984 = vmatpush.bf16.msra.mxu0 %v478
    %985 = vmatpush.bf16.msra.mxu0 %v476
    %986 = vmatpush.bf16.msra.mxu0 %v474
    %987 = vmatpush.bf16.msra.mxu0 %v472
    %988 = vmatmul.bf16.gmra.mxu0 %v928
    %v989 = vpop.f32.mrf.mxu0
    %v990 = vadd.f32 %v286, %v989
    %v991 = vpop.f32.mrf.mxu0
    %992 = vdwg.mxu0
    %993 = vmatpush.bf16.msra.mxu0 0
    %994 = vmatpush.bf16.msra.mxu0 0
    %995 = vmatpush.bf16.msra.mxu0 0
    %996 = vmatpush.bf16.msra.mxu0 0
    %997 = vmatpush.bf16.msra.mxu0 %v547
    %998 = vmatpush.bf16.msra.mxu0 %v545
    %999 = vmatpush.bf16.msra.mxu0 %v543
    %1000 = vmatpush.bf16.msra.mxu0 %v541
    %1001 = vmatmul.bf16.gmra.mxu0 %v950
    %v1002 = vpop.f32.mrf.mxu0
    %v1003 = vadd.f32 %v322, %v1002
    %v1004 = vpop.f32.mrf.mxu0
    %1005 = vdwg.mxu0
    %1006 = vmatpush.bf16.msra.mxu0 0
    %1007 = vmatpush.bf16.msra.mxu0 0
    %1008 = vmatpush.bf16.msra.mxu0 0
    %1009 = vmatpush.bf16.msra.mxu0 0
    %1010 = vmatpush.bf16.msra.mxu0 %v548
    %1011 = vmatpush.bf16.msra.mxu0 %v546
    %1012 = vmatpush.bf16.msra.mxu0 %v544
    %1013 = vmatpush.bf16.msra.mxu0 %v542
    %1014 = vmatmul.bf16.gmra.mxu0 %v950
    %v1015 = vpop.f32.mrf.mxu0
    %v1016 = vadd.f32 %v351, %v1015
    %v1017 = vpop.f32.mrf.mxu0
    %1018 = vdwg.mxu0
    %v1019 = vxor.u32 %v977, 2147483648
    %v1020 = vxor.u32 %v990, 2147483648
    %v1021 = vxor.u32 %v1003, 2147483648
    %v1022 = vxor.u32 %v1016, 2147483648
    %v1023 = vmul.f32 %v1019, 1.442695
    %v1024 = vpow.pop %v1023
    %v1025 = vmul.f32 %v1020, 1.442695
    %v1026 = vpow.pop %v1025
    %v1027 = vmul.f32 %v1021, 1.442695
    %v1028 = vpow.pop %v1027
    %v1029 = vmul.f32 %v1022, 1.442695
    %v1030 = vpow.pop %v1029
    %v1031 = vadd.f32 %v1024, 1.0
    %v1032 = vadd.f32 %v1026, 1.0
    %v1033 = vadd.f32 %v1028, 1.0
    %v1034 = vadd.f32 %v1030, 1.0
    %v1035 = vrcp.pop %v1031
    %v1036 = vmul.f32 %v1031, %v1035
    %v1037 = vsub.f32 1.0, %v1036
    %v1038 = vmul.f32 %v1035, %v1037
    %v1039 = vadd.f32 %v1035, %v1038
    %vm1040 = vweird.f32 %v1031
    %vm1041 = vweird.f32 %v1035
    %vm1042 = vmor %vm1040, %vm1041
    %v1043 = vsel %vm1042, %v1035, %v1039
    %v1044 = vand.u32 2147483647, %v1031
    %vm1045 = vcmp.eq.f32.partialorder %v1044, 8.507059e+37
    %v1046 = vand.u32 %v1031, 2147483648
    %v1047 = vor.u32 1.1754944e-38, %v1046
    %v1048 = vsel %vm1045, %v1047, %v1043
    %v1049 = vmul.f32 1.0, %v1048
    %v1050 = vrcp.pop %v1032
    %v1051 = vmul.f32 %v1032, %v1050
    %v1052 = vsub.f32 1.0, %v1051
    %v1053 = vmul.f32 %v1050, %v1052
    %v1054 = vadd.f32 %v1050, %v1053
    %vm1055 = vweird.f32 %v1032
    %vm1056 = vweird.f32 %v1050
    %vm1057 = vmor %vm1055, %vm1056
    %v1058 = vsel %vm1057, %v1050, %v1054
    %v1059 = vand.u32 2147483647, %v1032
    %vm1060 = vcmp.eq.f32.partialorder %v1059, 8.507059e+37
    %v1061 = vand.u32 %v1032, 2147483648
    %v1062 = vor.u32 1.1754944e-38, %v1061
    %v1063 = vsel %vm1060, %v1062, %v1058
    %v1064 = vmul.f32 1.0, %v1063
    %v1065 = vrcp.pop %v1033
    %v1066 = vmul.f32 %v1033, %v1065
    %v1067 = vsub.f32 1.0, %v1066
    %v1068 = vmul.f32 %v1065, %v1067
    %v1069 = vadd.f32 %v1065, %v1068
    %vm1070 = vweird.f32 %v1033
    %vm1071 = vweird.f32 %v1065
    %vm1072 = vmor %vm1070, %vm1071
    %v1073 = vsel %vm1072, %v1065, %v1069
    %v1074 = vand.u32 2147483647, %v1033
    %vm1075 = vcmp.eq.f32.partialorder %v1074, 8.507059e+37
    %v1076 = vand.u32 %v1033, 2147483648
    %v1077 = vor.u32 1.1754944e-38, %v1076
    %v1078 = vsel %vm1075, %v1077, %v1073
    %v1079 = vmul.f32 1.0, %v1078
    %v1080 = vrcp.pop %v1034
    %v1081 = vmul.f32 %v1034, %v1080
    %v1082 = vsub.f32 1.0, %v1081
    %v1083 = vmul.f32 %v1080, %v1082
    %v1084 = vadd.f32 %v1080, %v1083
    %vm1085 = vweird.f32 %v1034
    %vm1086 = vweird.f32 %v1080
    %vm1087 = vmor %vm1085, %vm1086
    %v1088 = vsel %vm1087, %v1080, %v1084
    %v1089 = vand.u32 2147483647, %v1034
    %vm1090 = vcmp.eq.f32.partialorder %v1089, 8.507059e+37
    %v1091 = vand.u32 %v1034, 2147483648
    %v1092 = vor.u32 1.1754944e-38, %v1091
    %v1093 = vsel %vm1090, %v1092, %v1088
    %v1094 = vmul.f32 1.0, %v1093
    %v1095 = vtanh.pop %v990
    %v1096 = vtanh.pop %v1016
    %v1097 = vmul.f32 %v1049, %v909
    %v1098 = vmul.f32 %v1049, %v1095
    %1100 = vrot.lane.b32.xlu0 %v1098, 64
    %v1101 = vpop.permute.xlu0 %1100
    %v1103 = vadd.f32 %v1097, %v1101
    %v1104 = vtanh.pop %v1103
    %v1105 = vmul.f32 %v1064, %v1104
    %v1106 = vmul.f32 %v1079, %v918
    %v1107 = vmul.f32 %v1079, %v1096
    %1109 = vrot.lane.b32.xlu0 %v1107, 64
    %v1110 = vpop.permute.xlu0 %1109
    %v1112 = vadd.f32 %v1106, %v1110
    %v1113 = vtanh.pop %v1112
    %v1114 = vmul.f32 %v1094, %v1113
    %v1115 = vpack.c.bf16 %v1105, %v1105
    %v1116 = vpack.c.bf16 %v1114, %v1114
    %v1117 = vld [vmem:[#allocation2 + $0x10] sm:$0xff]
    %1119 = vrot.lane.b32.xlu0 %v1115, 64
    %v1120 = vpop.permute.xlu0 %1119
    %v1122 = vsel %vm487, %v1120, 0
    %1124 = vmatpush.bf16.msra.mxu0 0
    %1125 = vmatpush.bf16.msra.mxu0 0
    %1126 = vmatpush.bf16.msra.mxu0 0
    %1127 = vmatpush.bf16.msra.mxu0 0
    %1128 = vmatpush.bf16.msra.mxu0 %v704
    %1129 = vmatpush.bf16.msra.mxu0 %v703
    %1130 = vmatpush.bf16.msra.mxu0 %v702
    %1131 = vmatpush.bf16.msra.mxu0 %v701
    %1132 = vmatmul.bf16.gmra.mxu0 %v1122
    %v1133 = vpop.f32.mrf.mxu0
    %v1134 = vadd.f32 0.0, %v1133
    %v1135 = vpop.f32.mrf.mxu0
    %1136 = vdwg.mxu0
    %v1137 = vadd.f32 %v1117, %v1134
    %1138 = vst [vmem:[#allocation2 + $0x10] sm:$0xff] %v1137
    %v1139 = vld [vmem:[#allocation2 + $0x28] sm:$0xff]
    %1141 = vrot.lane.b32.xlu0 %v1116, 64
    %v1142 = vpop.permute.xlu0 %1141
    %v1144 = vsel %vm487, %v1142, 0
    %1146 = vmatpush.bf16.msra.mxu0 0
    %1147 = vmatpush.bf16.msra.mxu0 0
    %1148 = vmatpush.bf16.msra.mxu0 0
    %1149 = vmatpush.bf16.msra.mxu0 0
    %1150 = vmatpush.bf16.msra.mxu0 %v750
    %1151 = vmatpush.bf16.msra.mxu0 %v749
    %1152 = vmatpush.bf16.msra.mxu0 %v748
    %1153 = vmatpush.bf16.msra.mxu0 %v747
    %1154 = vmatmul.bf16.gmra.mxu0 %v1144
    %v1155 = vpop.f32.mrf.mxu0
    %v1156 = vadd.f32 0.0, %v1155
    %v1157 = vpop.f32.mrf.mxu0
    %1158 = vdwg.mxu0
    %v1159 = vadd.f32 %v1139, %v1156
    %1160 = vst [vmem:[#allocation2 + $0x28] sm:$0xff] %v1159
    %1161 = vmatpush.bf16.msra.mxu0 0
    %1162 = vmatpush.bf16.msra.mxu0 0
    %1163 = vmatpush.bf16.msra.mxu0 0
    %1164 = vmatpush.bf16.msra.mxu0 0
    %1165 = vmatpush.bf16.msra.mxu0 %v477
    %1166 = vmatpush.bf16.msra.mxu0 %v475
    %1167 = vmatpush.bf16.msra.mxu0 %v473
    %1168 = vmatpush.bf16.msra.mxu0 %v471
    %1169 = vmatmul.bf16.gmra.mxu0 %v1122
    %v1170 = vpop.f32.mrf.mxu0
    %v1171 = vadd.f32 %v259, %v1170
    %v1172 = vpop.f32.mrf.mxu0
    %1173 = vdwg.mxu0
    %1174 = vmatpush.bf16.msra.mxu0 0
    %1175 = vmatpush.bf16.msra.mxu0 0
    %1176 = vmatpush.bf16.msra.mxu0 0
    %1177 = vmatpush.bf16.msra.mxu0 0
    %1178 = vmatpush.bf16.msra.mxu0 %v478
    %1179 = vmatpush.bf16.msra.mxu0 %v476
    %1180 = vmatpush.bf16.msra.mxu0 %v474
    %1181 = vmatpush.bf16.msra.mxu0 %v472
    %1182 = vmatmul.bf16.gmra.mxu0 %v1122
    %v1183 = vpop.f32.mrf.mxu0
    %v1184 = vadd.f32 %v288, %v1183
    %v1185 = vpop.f32.mrf.mxu0
    %1186 = vdwg.mxu0
    %1187 = vmatpush.bf16.msra.mxu0 0
    %1188 = vmatpush.bf16.msra.mxu0 0
    %1189 = vmatpush.bf16.msra.mxu0 0
    %1190 = vmatpush.bf16.msra.mxu0 0
    %1191 = vmatpush.bf16.msra.mxu0 %v547
    %1192 = vmatpush.bf16.msra.mxu0 %v545
    %1193 = vmatpush.bf16.msra.mxu0 %v543
    %1194 = vmatpush.bf16.msra.mxu0 %v541
    %1195 = vmatmul.bf16.gmra.mxu0 %v1144
    %v1196 = vpop.f32.mrf.mxu0
    %v1197 = vadd.f32 %v320, %v1196
    %v1198 = vpop.f32.mrf.mxu0
    %1199 = vdwg.mxu0
    %1200 = vmatpush.bf16.msra.mxu0 0
    %1201 = vmatpush.bf16.msra.mxu0 0
    %1202 = vmatpush.bf16.msra.mxu0 0
    %1203 = vmatpush.bf16.msra.mxu0 0
    %1204 = vmatpush.bf16.msra.mxu0 %v548
    %1205 = vmatpush.bf16.msra.mxu0 %v546
    %1206 = vmatpush.bf16.msra.mxu0 %v544
    %1207 = vmatpush.bf16.msra.mxu0 %v542
    %1208 = vmatmul.bf16.gmra.mxu0 %v1144
    %v1209 = vpop.f32.mrf.mxu0
    %v1210 = vadd.f32 %v349, %v1209
    %v1211 = vpop.f32.mrf.mxu0
    %1212 = vdwg.mxu0
    %v1213 = vxor.u32 %v1171, 2147483648
    %v1214 = vxor.u32 %v1184, 2147483648
    %v1215 = vxor.u32 %v1197, 2147483648
    %v1216 = vxor.u32 %v1210, 2147483648
    %v1217 = vmul.f32 %v1213, 1.442695
    %v1218 = vpow.pop %v1217
    %v1219 = vmul.f32 %v1214, 1.442695
    %v1220 = vpow.pop %v1219
    %v1221 = vmul.f32 %v1215, 1.442695
    %v1222 = vpow.pop %v1221
    %v1223 = vmul.f32 %v1216, 1.442695
    %v1224 = vpow.pop %v1223
    %v1225 = vadd.f32 %v1218, 1.0
    %v1226 = vadd.f32 %v1220, 1.0
    %v1227 = vadd.f32 %v1222, 1.0
    %v1228 = vadd.f32 %v1224, 1.0
    %v1229 = vrcp.pop %v1225
    %v1230 = vmul.f32 %v1225, %v1229
    %v1231 = vsub.f32 1.0, %v1230
    %v1232 = vmul.f32 %v1229, %v1231
    %v1233 = vadd.f32 %v1229, %v1232
    %vm1234 = vweird.f32 %v1225
    %vm1235 = vweird.f32 %v1229
    %vm1236 = vmor %vm1234, %vm1235
    %v1237 = vsel %vm1236, %v1229, %v1233
    %v1238 = vand.u32 2147483647, %v1225
    %vm1239 = vcmp.eq.f32.partialorder %v1238, 8.507059e+37
    %v1240 = vand.u32 %v1225, 2147483648
    %v1241 = vor.u32 1.1754944e-38, %v1240
    %v1242 = vsel %vm1239, %v1241, %v1237
    %v1243 = vmul.f32 1.0, %v1242
    %v1244 = vrcp.pop %v1226
    %v1245 = vmul.f32 %v1226, %v1244
    %v1246 = vsub.f32 1.0, %v1245
    %v1247 = vmul.f32 %v1244, %v1246
    %v1248 = vadd.f32 %v1244, %v1247
    %vm1249 = vweird.f32 %v1226
    %vm1250 = vweird.f32 %v1244
    %vm1251 = vmor %vm1249, %vm1250
    %v1252 = vsel %vm1251, %v1244, %v1248
    %v1253 = vand.u32 2147483647, %v1226
    %vm1254 = vcmp.eq.f32.partialorder %v1253, 8.507059e+37
    %v1255 = vand.u32 %v1226, 2147483648
    %v1256 = vor.u32 1.1754944e-38, %v1255
    %v1257 = vsel %vm1254, %v1256, %v1252
    %v1258 = vmul.f32 1.0, %v1257
    %v1259 = vrcp.pop %v1227
    %v1260 = vmul.f32 %v1227, %v1259
    %v1261 = vsub.f32 1.0, %v1260
    %v1262 = vmul.f32 %v1259, %v1261
    %v1263 = vadd.f32 %v1259, %v1262
    %vm1264 = vweird.f32 %v1227
    %vm1265 = vweird.f32 %v1259
    %vm1266 = vmor %vm1264, %vm1265
    %v1267 = vsel %vm1266, %v1259, %v1263
    %v1268 = vand.u32 2147483647, %v1227
    %vm1269 = vcmp.eq.f32.partialorder %v1268, 8.507059e+37
    %v1270 = vand.u32 %v1227, 2147483648
    %v1271 = vor.u32 1.1754944e-38, %v1270
    %v1272 = vsel %vm1269, %v1271, %v1267
    %v1273 = vmul.f32 1.0, %v1272
    %v1274 = vrcp.pop %v1228
    %v1275 = vmul.f32 %v1228, %v1274
    %v1276 = vsub.f32 1.0, %v1275
    %v1277 = vmul.f32 %v1274, %v1276
    %v1278 = vadd.f32 %v1274, %v1277
    %vm1279 = vweird.f32 %v1228
    %vm1280 = vweird.f32 %v1274
    %vm1281 = vmor %vm1279, %vm1280
    %v1282 = vsel %vm1281, %v1274, %v1278
    %v1283 = vand.u32 2147483647, %v1228
    %vm1284 = vcmp.eq.f32.partialorder %v1283, 8.507059e+37
    %v1285 = vand.u32 %v1228, 2147483648
    %v1286 = vor.u32 1.1754944e-38, %v1285
    %v1287 = vsel %vm1284, %v1286, %v1282
    %v1288 = vmul.f32 1.0, %v1287
    %v1289 = vtanh.pop %v1184
    %v1290 = vtanh.pop %v1210
    %v1291 = vmul.f32 %v1243, %v1103
    %v1292 = vmul.f32 %v1243, %v1289
    %1294 = vrot.lane.b32.xlu0 %v1292, 64
    %v1295 = vpop.permute.xlu0 %1294
    %v1297 = vadd.f32 %v1291, %v1295
    %v1298 = vtanh.pop %v1297
    %v1299 = vmul.f32 %v1258, %v1298
    %v1300 = vmul.f32 %v1273, %v1112
    %v1301 = vmul.f32 %v1273, %v1290
    %1303 = vrot.lane.b32.xlu0 %v1301, 64
    %v1304 = vpop.permute.xlu0 %1303
    %v1306 = vadd.f32 %v1300, %v1304
    %v1307 = vtanh.pop %v1306
    %v1308 = vmul.f32 %v1288, %v1307
    %v1309 = vpack.c.bf16 %v1299, %v1299
    %v1310 = vpack.c.bf16 %v1308, %v1308
    %v1311 = vld [vmem:[#allocation2 + $0x18] sm:$0xff]
    %1313 = vrot.lane.b32.xlu0 %v1309, 64
    %v1314 = vpop.permute.xlu0 %1313
    %v1316 = vsel %vm487, %v1314, 0
    %1318 = vmatpush.bf16.msra.mxu0 0
    %1319 = vmatpush.bf16.msra.mxu0 0
    %1320 = vmatpush.bf16.msra.mxu0 0
    %1321 = vmatpush.bf16.msra.mxu0 0
    %1322 = vmatpush.bf16.msra.mxu0 %v704
    %1323 = vmatpush.bf16.msra.mxu0 %v703
    %1324 = vmatpush.bf16.msra.mxu0 %v702
    %1325 = vmatpush.bf16.msra.mxu0 %v701
    %1326 = vmatmul.bf16.gmra.mxu0 %v1316
    %v1327 = vpop.f32.mrf.mxu0
    %v1328 = vadd.f32 0.0, %v1327
    %v1329 = vpop.f32.mrf.mxu0
    %1330 = vdwg.mxu0
    %v1331 = vadd.f32 %v1311, %v1328
    %1332 = vst [vmem:[#allocation2 + $0x18] sm:$0xff] %v1331
    %v1333 = vld [vmem:[#allocation2 + $0x20] sm:$0xff]
    %1335 = vrot.lane.b32.xlu0 %v1310, 64
    %v1336 = vpop.permute.xlu0 %1335
    %v1338 = vsel %vm487, %v1336, 0
    %1340 = vmatpush.bf16.msra.mxu0 0
    %1341 = vmatpush.bf16.msra.mxu0 0
    %1342 = vmatpush.bf16.msra.mxu0 0
    %1343 = vmatpush.bf16.msra.mxu0 0
    %1344 = vmatpush.bf16.msra.mxu0 %v750
    %1345 = vmatpush.bf16.msra.mxu0 %v749
    %1346 = vmatpush.bf16.msra.mxu0 %v748
    %1347 = vmatpush.bf16.msra.mxu0 %v747
    %1348 = vmatmul.bf16.gmra.mxu0 %v1338
    %v1349 = vpop.f32.mrf.mxu0
    %v1350 = vadd.f32 0.0, %v1349
    %v1351 = vpop.f32.mrf.mxu0
    %1352 = vdwg.mxu0
    %v1353 = vadd.f32 %v1333, %v1350
    %1354 = vst [vmem:[#allocation2 + $0x20] sm:$0xff] %v1353
    %1355 = vmatpush.bf16.msra.mxu0 0
    %1356 = vmatpush.bf16.msra.mxu0 0
    %1357 = vmatpush.bf16.msra.mxu0 0
    %1358 = vmatpush.bf16.msra.mxu0 0
    %1359 = vmatpush.bf16.msra.mxu0 %v477
    %1360 = vmatpush.bf16.msra.mxu0 %v475
    %1361 = vmatpush.bf16.msra.mxu0 %v473
    %1362 = vmatpush.bf16.msra.mxu0 %v471
    %1363 = vmatmul.bf16.gmra.mxu0 %v1316
    %v1364 = vpop.f32.mrf.mxu0
    %v1365 = vadd.f32 %v262, %v1364
    %v1366 = vpop.f32.mrf.mxu0
    %1367 = vdwg.mxu0
    %1368 = vmatpush.bf16.msra.mxu0 0
    %1369 = vmatpush.bf16.msra.mxu0 0
    %1370 = vmatpush.bf16.msra.mxu0 0
    %1371 = vmatpush.bf16.msra.mxu0 0
    %1372 = vmatpush.bf16.msra.mxu0 %v478
    %1373 = vmatpush.bf16.msra.mxu0 %v476
    %1374 = vmatpush.bf16.msra.mxu0 %v474
    %1375 = vmatpush.bf16.msra.mxu0 %v472
    %1376 = vmatmul.bf16.gmra.mxu0 %v1316
    %v1377 = vpop.f32.mrf.mxu0
    %v1378 = vadd.f32 %v291, %v1377
    %v1379 = vpop.f32.mrf.mxu0
    %1380 = vdwg.mxu0
    %1381 = vmatpush.bf16.msra.mxu0 0
    %1382 = vmatpush.bf16.msra.mxu0 0
    %1383 = vmatpush.bf16.msra.mxu0 0
    %1384 = vmatpush.bf16.msra.mxu0 0
    %1385 = vmatpush.bf16.msra.mxu0 %v547
    %1386 = vmatpush.bf16.msra.mxu0 %v545
    %1387 = vmatpush.bf16.msra.mxu0 %v543
    %1388 = vmatpush.bf16.msra.mxu0 %v541
    %1389 = vmatmul.bf16.gmra.mxu0 %v1338
    %v1390 = vpop.f32.mrf.mxu0
    %v1391 = vadd.f32 %v317, %v1390
    %v1392 = vpop.f32.mrf.mxu0
    %1393 = vdwg.mxu0
    %1394 = vmatpush.bf16.msra.mxu0 0
    %1395 = vmatpush.bf16.msra.mxu0 0
    %1396 = vmatpush.bf16.msra.mxu0 0
    %1397 = vmatpush.bf16.msra.mxu0 0
    %1398 = vmatpush.bf16.msra.mxu0 %v548
    %1399 = vmatpush.bf16.msra.mxu0 %v546
    %1400 = vmatpush.bf16.msra.mxu0 %v544
    %1401 = vmatpush.bf16.msra.mxu0 %v542
    %1402 = vmatmul.bf16.gmra.mxu0 %v1338
    %v1403 = vpop.f32.mrf.mxu0
    %v1404 = vadd.f32 %v346, %v1403
    %v1405 = vpop.f32.mrf.mxu0
    %1406 = vdwg.mxu0
    %v1407 = vxor.u32 %v1365, 2147483648
    %v1408 = vxor.u32 %v1378, 2147483648
    %v1409 = vxor.u32 %v1391, 2147483648
    %v1410 = vxor.u32 %v1404, 2147483648
    %v1411 = vmul.f32 %v1407, 1.442695
    %v1412 = vpow.pop %v1411
    %v1413 = vmul.f32 %v1408, 1.442695
    %v1414 = vpow.pop %v1413
    %v1415 = vmul.f32 %v1409, 1.442695
    %v1416 = vpow.pop %v1415
    %v1417 = vmul.f32 %v1410, 1.442695
    %v1418 = vpow.pop %v1417
    %v1419 = vadd.f32 %v1412, 1.0
    %v1420 = vadd.f32 %v1414, 1.0
    %v1421 = vadd.f32 %v1416, 1.0
    %v1422 = vadd.f32 %v1418, 1.0
    %v1423 = vrcp.pop %v1419
    %v1424 = vmul.f32 %v1419, %v1423
    %v1425 = vsub.f32 1.0, %v1424
    %v1426 = vmul.f32 %v1423, %v1425
    %v1427 = vadd.f32 %v1423, %v1426
    %vm1428 = vweird.f32 %v1419
    %vm1429 = vweird.f32 %v1423
    %vm1430 = vmor %vm1428, %vm1429
    %v1431 = vsel %vm1430, %v1423, %v1427
    %v1432 = vand.u32 2147483647, %v1419
    %vm1433 = vcmp.eq.f32.partialorder %v1432, 8.507059e+37
    %v1434 = vand.u32 %v1419, 2147483648
    %v1435 = vor.u32 1.1754944e-38, %v1434
    %v1436 = vsel %vm1433, %v1435, %v1431
    %v1437 = vmul.f32 1.0, %v1436
    %v1438 = vrcp.pop %v1420
    %v1439 = vmul.f32 %v1420, %v1438
    %v1440 = vsub.f32 1.0, %v1439
    %v1441 = vmul.f32 %v1438, %v1440
    %v1442 = vadd.f32 %v1438, %v1441
    %vm1443 = vweird.f32 %v1420
    %vm1444 = vweird.f32 %v1438
    %vm1445 = vmor %vm1443, %vm1444
    %v1446 = vsel %vm1445, %v1438, %v1442
    %v1447 = vand.u32 2147483647, %v1420
    %vm1448 = vcmp.eq.f32.partialorder %v1447, 8.507059e+37
    %v1449 = vand.u32 %v1420, 2147483648
    %v1450 = vor.u32 1.1754944e-38, %v1449
    %v1451 = vsel %vm1448, %v1450, %v1446
    %v1452 = vmul.f32 1.0, %v1451
    %v1453 = vrcp.pop %v1421
    %v1454 = vmul.f32 %v1421, %v1453
    %v1455 = vsub.f32 1.0, %v1454
    %v1456 = vmul.f32 %v1453, %v1455
    %v1457 = vadd.f32 %v1453, %v1456
    %vm1458 = vweird.f32 %v1421
    %vm1459 = vweird.f32 %v1453
    %vm1460 = vmor %vm1458, %vm1459
    %v1461 = vsel %vm1460, %v1453, %v1457
    %v1462 = vand.u32 2147483647, %v1421
    %vm1463 = vcmp.eq.f32.partialorder %v1462, 8.507059e+37
    %v1464 = vand.u32 %v1421, 2147483648
    %v1465 = vor.u32 1.1754944e-38, %v1464
    %v1466 = vsel %vm1463, %v1465, %v1461
    %v1467 = vmul.f32 1.0, %v1466
    %v1468 = vrcp.pop %v1422
    %v1469 = vmul.f32 %v1422, %v1468
    %v1470 = vsub.f32 1.0, %v1469
    %v1471 = vmul.f32 %v1468, %v1470
    %v1472 = vadd.f32 %v1468, %v1471
    %vm1473 = vweird.f32 %v1422
    %vm1474 = vweird.f32 %v1468
    %vm1475 = vmor %vm1473, %vm1474
    %v1476 = vsel %vm1475, %v1468, %v1472
    %v1477 = vand.u32 2147483647, %v1422
    %vm1478 = vcmp.eq.f32.partialorder %v1477, 8.507059e+37
    %v1479 = vand.u32 %v1422, 2147483648
    %v1480 = vor.u32 1.1754944e-38, %v1479
    %v1481 = vsel %vm1478, %v1480, %v1476
    %v1482 = vmul.f32 1.0, %v1481
    %v1483 = vtanh.pop %v1378
    %v1484 = vtanh.pop %v1404
    %v1485 = vmul.f32 %v1437, %v1297
    %v1486 = vmul.f32 %v1437, %v1483
    %1488 = vrot.lane.b32.xlu0 %v1486, 64
    %v1489 = vpop.permute.xlu0 %1488
    %v1491 = vadd.f32 %v1485, %v1489
    %v1492 = vtanh.pop %v1491
    %v1493 = vmul.f32 %v1452, %v1492
    %v1494 = vmul.f32 %v1467, %v1306
    %v1495 = vmul.f32 %v1467, %v1484
    %1497 = vrot.lane.b32.xlu0 %v1495, 64
    %v1498 = vpop.permute.xlu0 %1497
    %v1500 = vadd.f32 %v1494, %v1498
    %v1501 = vtanh.pop %v1500
    %v1502 = vmul.f32 %v1482, %v1501
    %v1503 = vpack.c.bf16 %v1493, %v1493
    %v1504 = vpack.c.bf16 %v1502, %v1502
    %v1505 = vld [vmem:[#allocation2 + $0x20] sm:$0xff]
    %1507 = vrot.lane.b32.xlu0 %v1503, 64
    %v1508 = vpop.permute.xlu0 %1507
    %v1510 = vsel %vm487, %v1508, 0
    %1512 = vmatpush.bf16.msra.mxu0 0
    %1513 = vmatpush.bf16.msra.mxu0 0
    %1514 = vmatpush.bf16.msra.mxu0 0
    %1515 = vmatpush.bf16.msra.mxu0 0
    %1516 = vmatpush.bf16.msra.mxu0 %v704
    %1517 = vmatpush.bf16.msra.mxu0 %v703
    %1518 = vmatpush.bf16.msra.mxu0 %v702
    %1519 = vmatpush.bf16.msra.mxu0 %v701
    %1520 = vmatmul.bf16.gmra.mxu0 %v1510
    %v1521 = vpop.f32.mrf.mxu0
    %v1522 = vadd.f32 0.0, %v1521
    %v1523 = vpop.f32.mrf.mxu0
    %1524 = vdwg.mxu0
    %v1525 = vadd.f32 %v1505, %v1522
    %1526 = vst [vmem:[#allocation2 + $0x20] sm:$0xff] %v1525
    %v1527 = vld [vmem:[#allocation2 + $0x18] sm:$0xff]
    %1529 = vrot.lane.b32.xlu0 %v1504, 64
    %v1530 = vpop.permute.xlu0 %1529
    %v1532 = vsel %vm487, %v1530, 0
    %1534 = vmatpush.bf16.msra.mxu0 0
    %1535 = vmatpush.bf16.msra.mxu0 0
    %1536 = vmatpush.bf16.msra.mxu0 0
    %1537 = vmatpush.bf16.msra.mxu0 0
    %1538 = vmatpush.bf16.msra.mxu0 %v750
    %1539 = vmatpush.bf16.msra.mxu0 %v749
    %1540 = vmatpush.bf16.msra.mxu0 %v748
    %1541 = vmatpush.bf16.msra.mxu0 %v747
    %1542 = vmatmul.bf16.gmra.mxu0 %v1532
    %v1543 = vpop.f32.mrf.mxu0
    %v1544 = vadd.f32 0.0, %v1543
    %v1545 = vpop.f32.mrf.mxu0
    %1546 = vdwg.mxu0
    %v1547 = vadd.f32 %v1527, %v1544
    %1548 = vst [vmem:[#allocation2 + $0x18] sm:$0xff] %v1547
    %1549 = vmatpush.bf16.msra.mxu0 0
    %1550 = vmatpush.bf16.msra.mxu0 0
    %1551 = vmatpush.bf16.msra.mxu0 0
    %1552 = vmatpush.bf16.msra.mxu0 0
    %1553 = vmatpush.bf16.msra.mxu0 %v477
    %1554 = vmatpush.bf16.msra.mxu0 %v475
    %1555 = vmatpush.bf16.msra.mxu0 %v473
    %1556 = vmatpush.bf16.msra.mxu0 %v471
    %1557 = vmatmul.bf16.gmra.mxu0 %v1510
    %v1558 = vpop.f32.mrf.mxu0
    %v1559 = vadd.f32 %v264, %v1558
    %v1560 = vpop.f32.mrf.mxu0
    %1561 = vdwg.mxu0
    %1562 = vmatpush.bf16.msra.mxu0 0
    %1563 = vmatpush.bf16.msra.mxu0 0
    %1564 = vmatpush.bf16.msra.mxu0 0
    %1565 = vmatpush.bf16.msra.mxu0 0
    %1566 = vmatpush.bf16.msra.mxu0 %v478
    %1567 = vmatpush.bf16.msra.mxu0 %v476
    %1568 = vmatpush.bf16.msra.mxu0 %v474
    %1569 = vmatpush.bf16.msra.mxu0 %v472
    %1570 = vmatmul.bf16.gmra.mxu0 %v1510
    %v1571 = vpop.f32.mrf.mxu0
    %v1572 = vadd.f32 %v293, %v1571
    %v1573 = vpop.f32.mrf.mxu0
    %1574 = vdwg.mxu0
    %1575 = vmatpush.bf16.msra.mxu0 0
    %1576 = vmatpush.bf16.msra.mxu0 0
    %1577 = vmatpush.bf16.msra.mxu0 0
    %1578 = vmatpush.bf16.msra.mxu0 0
    %1579 = vmatpush.bf16.msra.mxu0 %v547
    %1580 = vmatpush.bf16.msra.mxu0 %v545
    %1581 = vmatpush.bf16.msra.mxu0 %v543
    %1582 = vmatpush.bf16.msra.mxu0 %v541
    %1583 = vmatmul.bf16.gmra.mxu0 %v1532
    %v1584 = vpop.f32.mrf.mxu0
    %v1585 = vadd.f32 %v315, %v1584
    %v1586 = vpop.f32.mrf.mxu0
    %1587 = vdwg.mxu0
    %1588 = vmatpush.bf16.msra.mxu0 0
    %1589 = vmatpush.bf16.msra.mxu0 0
    %1590 = vmatpush.bf16.msra.mxu0 0
    %1591 = vmatpush.bf16.msra.mxu0 0
    %1592 = vmatpush.bf16.msra.mxu0 %v548
    %1593 = vmatpush.bf16.msra.mxu0 %v546
    %1594 = vmatpush.bf16.msra.mxu0 %v544
    %1595 = vmatpush.bf16.msra.mxu0 %v542
    %1596 = vmatmul.bf16.gmra.mxu0 %v1532
    %v1597 = vpop.f32.mrf.mxu0
    %v1598 = vadd.f32 %v344, %v1597
    %v1599 = vpop.f32.mrf.mxu0
    %1600 = vdwg.mxu0
    %v1601 = vxor.u32 %v1559, 2147483648
    %v1602 = vxor.u32 %v1572, 2147483648
    %v1603 = vxor.u32 %v1585, 2147483648
    %v1604 = vxor.u32 %v1598, 2147483648
    %v1605 = vmul.f32 %v1601, 1.442695
    %v1606 = vpow.pop %v1605
    %v1607 = vmul.f32 %v1602, 1.442695
    %v1608 = vpow.pop %v1607
    %v1609 = vmul.f32 %v1603, 1.442695
    %v1610 = vpow.pop %v1609
    %v1611 = vmul.f32 %v1604, 1.442695
    %v1612 = vpow.pop %v1611
    %v1613 = vadd.f32 %v1606, 1.0
    %v1614 = vadd.f32 %v1608, 1.0
    %v1615 = vadd.f32 %v1610, 1.0
    %v1616 = vadd.f32 %v1612, 1.0
    %v1617 = vrcp.pop %v1613
    %v1618 = vmul.f32 %v1613, %v1617
    %v1619 = vsub.f32 1.0, %v1618
    %v1620 = vmul.f32 %v1617, %v1619
    %v1621 = vadd.f32 %v1617, %v1620
    %vm1622 = vweird.f32 %v1613
    %vm1623 = vweird.f32 %v1617
    %vm1624 = vmor %vm1622, %vm1623
    %v1625 = vsel %vm1624, %v1617, %v1621
    %v1626 = vand.u32 2147483647, %v1613
    %vm1627 = vcmp.eq.f32.partialorder %v1626, 8.507059e+37
    %v1628 = vand.u32 %v1613, 2147483648
    %v1629 = vor.u32 1.1754944e-38, %v1628
    %v1630 = vsel %vm1627, %v1629, %v1625
    %v1631 = vmul.f32 1.0, %v1630
    %v1632 = vrcp.pop %v1614
    %v1633 = vmul.f32 %v1614, %v1632
    %v1634 = vsub.f32 1.0, %v1633
    %v1635 = vmul.f32 %v1632, %v1634
    %v1636 = vadd.f32 %v1632, %v1635
    %vm1637 = vweird.f32 %v1614
    %vm1638 = vweird.f32 %v1632
    %vm1639 = vmor %vm1637, %vm1638
    %v1640 = vsel %vm1639, %v1632, %v1636
    %v1641 = vand.u32 2147483647, %v1614
    %vm1642 = vcmp.eq.f32.partialorder %v1641, 8.507059e+37
    %v1643 = vand.u32 %v1614, 2147483648
    %v1644 = vor.u32 1.1754944e-38, %v1643
    %v1645 = vsel %vm1642, %v1644, %v1640
    %v1646 = vmul.f32 1.0, %v1645
    %v1647 = vrcp.pop %v1615
    %v1648 = vmul.f32 %v1615, %v1647
    %v1649 = vsub.f32 1.0, %v1648
    %v1650 = vmul.f32 %v1647, %v1649
    %v1651 = vadd.f32 %v1647, %v1650
    %vm1652 = vweird.f32 %v1615
    %vm1653 = vweird.f32 %v1647
    %vm1654 = vmor %vm1652, %vm1653
    %v1655 = vsel %vm1654, %v1647, %v1651
    %v1656 = vand.u32 2147483647, %v1615
    %vm1657 = vcmp.eq.f32.partialorder %v1656, 8.507059e+37
    %v1658 = vand.u32 %v1615, 2147483648
    %v1659 = vor.u32 1.1754944e-38, %v1658
    %v1660 = vsel %vm1657, %v1659, %v1655
    %v1661 = vmul.f32 1.0, %v1660
    %v1662 = vrcp.pop %v1616
    %v1663 = vmul.f32 %v1616, %v1662
    %v1664 = vsub.f32 1.0, %v1663
    %v1665 = vmul.f32 %v1662, %v1664
    %v1666 = vadd.f32 %v1662, %v1665
    %vm1667 = vweird.f32 %v1616
    %vm1668 = vweird.f32 %v1662
    %vm1669 = vmor %vm1667, %vm1668
    %v1670 = vsel %vm1669, %v1662, %v1666
    %v1671 = vand.u32 2147483647, %v1616
    %vm1672 = vcmp.eq.f32.partialorder %v1671, 8.507059e+37
    %v1673 = vand.u32 %v1616, 2147483648
    %v1674 = vor.u32 1.1754944e-38, %v1673
    %v1675 = vsel %vm1672, %v1674, %v1670
    %v1676 = vmul.f32 1.0, %v1675
    %v1677 = vtanh.pop %v1572
    %v1678 = vtanh.pop %v1598
    %v1679 = vmul.f32 %v1631, %v1491
    %v1680 = vmul.f32 %v1631, %v1677
    %1682 = vrot.lane.b32.xlu0 %v1680, 64
    %v1683 = vpop.permute.xlu0 %1682
    %v1685 = vadd.f32 %v1679, %v1683
    %v1686 = vtanh.pop %v1685
    %v1687 = vmul.f32 %v1646, %v1686
    %v1688 = vmul.f32 %v1661, %v1500
    %v1689 = vmul.f32 %v1661, %v1678
    %1691 = vrot.lane.b32.xlu0 %v1689, 64
    %v1692 = vpop.permute.xlu0 %1691
    %v1694 = vadd.f32 %v1688, %v1692
    %v1695 = vtanh.pop %v1694
    %v1696 = vmul.f32 %v1676, %v1695
    %v1697 = vpack.c.bf16 %v1687, %v1687
    %v1698 = vpack.c.bf16 %v1696, %v1696
    %v1699 = vld [vmem:[#allocation2 + $0x28] sm:$0xff]
    %1701 = vrot.lane.b32.xlu0 %v1697, 64
    %v1702 = vpop.permute.xlu0 %1701
    %v1704 = vsel %vm487, %v1702, 0
    %1706 = vmatpush.bf16.msra.mxu0 0
    %1707 = vmatpush.bf16.msra.mxu0 0
    %1708 = vmatpush.bf16.msra.mxu0 0
    %1709 = vmatpush.bf16.msra.mxu0 0
    %1710 = vmatpush.bf16.msra.mxu0 %v704
    %1711 = vmatpush.bf16.msra.mxu0 %v703
    %1712 = vmatpush.bf16.msra.mxu0 %v702
    %1713 = vmatpush.bf16.msra.mxu0 %v701
    %1714 = vmatmul.bf16.gmra.mxu0 %v1704
    %v1715 = vpop.f32.mrf.mxu0
    %v1716 = vadd.f32 0.0, %v1715
    %v1717 = vpop.f32.mrf.mxu0
    %1718 = vdwg.mxu0
    %v1719 = vadd.f32 %v1699, %v1716
    %1720 = vst [vmem:[#allocation2 + $0x28] sm:$0xff] %v1719
    %v1721 = vld [vmem:[#allocation2 + $0x10] sm:$0xff]
    %1723 = vrot.lane.b32.xlu0 %v1698, 64
    %v1724 = vpop.permute.xlu0 %1723
    %v1726 = vsel %vm487, %v1724, 0
    %1728 = vmatpush.bf16.msra.mxu0 0
    %1729 = vmatpush.bf16.msra.mxu0 0
    %1730 = vmatpush.bf16.msra.mxu0 0
    %1731 = vmatpush.bf16.msra.mxu0 0
    %1732 = vmatpush.bf16.msra.mxu0 %v750
    %1733 = vmatpush.bf16.msra.mxu0 %v749
    %1734 = vmatpush.bf16.msra.mxu0 %v748
    %1735 = vmatpush.bf16.msra.mxu0 %v747
    %1736 = vmatmul.bf16.gmra.mxu0 %v1726
    %v1737 = vpop.f32.mrf.mxu0
    %v1738 = vadd.f32 0.0, %v1737
    %v1739 = vpop.f32.mrf.mxu0
    %1740 = vdwg.mxu0
    %v1741 = vadd.f32 %v1721, %v1738
    %1742 = vst [vmem:[#allocation2 + $0x10] sm:$0xff] %v1741
    %1743 = vmatpush.bf16.msra.mxu0 0
    %1744 = vmatpush.bf16.msra.mxu0 0
    %1745 = vmatpush.bf16.msra.mxu0 0
    %1746 = vmatpush.bf16.msra.mxu0 0
    %1747 = vmatpush.bf16.msra.mxu0 %v477
    %1748 = vmatpush.bf16.msra.mxu0 %v475
    %1749 = vmatpush.bf16.msra.mxu0 %v473
    %1750 = vmatpush.bf16.msra.mxu0 %v471
    %1751 = vmatmul.bf16.gmra.mxu0 %v1704
    %v1752 = vpop.f32.mrf.mxu0
    %v1753 = vadd.f32 %v267, %v1752
    %v1754 = vpop.f32.mrf.mxu0
    %1755 = vdwg.mxu0
    %1756 = vmatpush.bf16.msra.mxu0 0
    %1757 = vmatpush.bf16.msra.mxu0 0
    %1758 = vmatpush.bf16.msra.mxu0 0
    %1759 = vmatpush.bf16.msra.mxu0 0
    %1760 = vmatpush.bf16.msra.mxu0 %v478
    %1761 = vmatpush.bf16.msra.mxu0 %v476
    %1762 = vmatpush.bf16.msra.mxu0 %v474
    %1763 = vmatpush.bf16.msra.mxu0 %v472
    %1764 = vmatmul.bf16.gmra.mxu0 %v1704
    %v1765 = vpop.f32.mrf.mxu0
    %v1766 = vadd.f32 %v296, %v1765
    %v1767 = vpop.f32.mrf.mxu0
    %1768 = vdwg.mxu0
    %1769 = vmatpush.bf16.msra.mxu0 0
    %1770 = vmatpush.bf16.msra.mxu0 0
    %1771 = vmatpush.bf16.msra.mxu0 0
    %1772 = vmatpush.bf16.msra.mxu0 0
    %1773 = vmatpush.bf16.msra.mxu0 %v547
    %1774 = vmatpush.bf16.msra.mxu0 %v545
    %1775 = vmatpush.bf16.msra.mxu0 %v543
    %1776 = vmatpush.bf16.msra.mxu0 %v541
    %1777 = vmatmul.bf16.gmra.mxu0 %v1726
    %v1778 = vpop.f32.mrf.mxu0
    %v1779 = vadd.f32 %v312, %v1778
    %v1780 = vpop.f32.mrf.mxu0
    %1781 = vdwg.mxu0
    %1782 = vmatpush.bf16.msra.mxu0 0
    %1783 = vmatpush.bf16.msra.mxu0 0
    %1784 = vmatpush.bf16.msra.mxu0 0
    %1785 = vmatpush.bf16.msra.mxu0 0
    %1786 = vmatpush.bf16.msra.mxu0 %v548
    %1787 = vmatpush.bf16.msra.mxu0 %v546
    %1788 = vmatpush.bf16.msra.mxu0 %v544
    %1789 = vmatpush.bf16.msra.mxu0 %v542
    %1790 = vmatmul.bf16.gmra.mxu0 %v1726
    %v1791 = vpop.f32.mrf.mxu0
    %v1792 = vadd.f32 %v341, %v1791
    %v1793 = vpop.f32.mrf.mxu0
    %1794 = vdwg.mxu0
    %v1795 = vxor.u32 %v1753, 2147483648
    %v1796 = vxor.u32 %v1766, 2147483648
    %v1797 = vxor.u32 %v1779, 2147483648
    %v1798 = vxor.u32 %v1792, 2147483648
    %v1799 = vmul.f32 %v1795, 1.442695
    %v1800 = vpow.pop %v1799
    %v1801 = vmul.f32 %v1796, 1.442695
    %v1802 = vpow.pop %v1801
    %v1803 = vmul.f32 %v1797, 1.442695
    %v1804 = vpow.pop %v1803
    %v1805 = vmul.f32 %v1798, 1.442695
    %v1806 = vpow.pop %v1805
    %v1807 = vadd.f32 %v1800, 1.0
    %v1808 = vadd.f32 %v1802, 1.0
    %v1809 = vadd.f32 %v1804, 1.0
    %v1810 = vadd.f32 %v1806, 1.0
    %v1811 = vrcp.pop %v1807
    %v1812 = vmul.f32 %v1807, %v1811
    %v1813 = vsub.f32 1.0, %v1812
    %v1814 = vmul.f32 %v1811, %v1813
    %v1815 = vadd.f32 %v1811, %v1814
    %vm1816 = vweird.f32 %v1807
    %vm1817 = vweird.f32 %v1811
    %vm1818 = vmor %vm1816, %vm1817
    %v1819 = vsel %vm1818, %v1811, %v1815
    %v1820 = vand.u32 2147483647, %v1807
    %vm1821 = vcmp.eq.f32.partialorder %v1820, 8.507059e+37
    %v1822 = vand.u32 %v1807, 2147483648
    %v1823 = vor.u32 1.1754944e-38, %v1822
    %v1824 = vsel %vm1821, %v1823, %v1819
    %v1825 = vmul.f32 1.0, %v1824
    %v1826 = vrcp.pop %v1808
    %v1827 = vmul.f32 %v1808, %v1826
    %v1828 = vsub.f32 1.0, %v1827
    %v1829 = vmul.f32 %v1826, %v1828
    %v1830 = vadd.f32 %v1826, %v1829
    %vm1831 = vweird.f32 %v1808
    %vm1832 = vweird.f32 %v1826
    %vm1833 = vmor %vm1831, %vm1832
    %v1834 = vsel %vm1833, %v1826, %v1830
    %v1835 = vand.u32 2147483647, %v1808
    %vm1836 = vcmp.eq.f32.partialorder %v1835, 8.507059e+37
    %v1837 = vand.u32 %v1808, 2147483648
    %v1838 = vor.u32 1.1754944e-38, %v1837
    %v1839 = vsel %vm1836, %v1838, %v1834
    %v1840 = vmul.f32 1.0, %v1839
    %v1841 = vrcp.pop %v1809
    %v1842 = vmul.f32 %v1809, %v1841
    %v1843 = vsub.f32 1.0, %v1842
    %v1844 = vmul.f32 %v1841, %v1843
    %v1845 = vadd.f32 %v1841, %v1844
    %vm1846 = vweird.f32 %v1809
    %vm1847 = vweird.f32 %v1841
    %vm1848 = vmor %vm1846, %vm1847
    %v1849 = vsel %vm1848, %v1841, %v1845
    %v1850 = vand.u32 2147483647, %v1809
    %vm1851 = vcmp.eq.f32.partialorder %v1850, 8.507059e+37
    %v1852 = vand.u32 %v1809, 2147483648
    %v1853 = vor.u32 1.1754944e-38, %v1852
    %v1854 = vsel %vm1851, %v1853, %v1849
    %v1855 = vmul.f32 1.0, %v1854
    %v1856 = vrcp.pop %v1810
    %v1857 = vmul.f32 %v1810, %v1856
    %v1858 = vsub.f32 1.0, %v1857
    %v1859 = vmul.f32 %v1856, %v1858
    %v1860 = vadd.f32 %v1856, %v1859
    %vm1861 = vweird.f32 %v1810
    %vm1862 = vweird.f32 %v1856
    %vm1863 = vmor %vm1861, %vm1862
    %v1864 = vsel %vm1863, %v1856, %v1860
    %v1865 = vand.u32 2147483647, %v1810
    %vm1866 = vcmp.eq.f32.partialorder %v1865, 8.507059e+37
    %v1867 = vand.u32 %v1810, 2147483648
    %v1868 = vor.u32 1.1754944e-38, %v1867
    %v1869 = vsel %vm1866, %v1868, %v1864
    %v1870 = vmul.f32 1.0, %v1869
    %v1871 = vtanh.pop %v1766
    %v1872 = vtanh.pop %v1792
    %v1873 = vmul.f32 %v1825, %v1685
    %v1874 = vmul.f32 %v1825, %v1871
    %1876 = vrot.lane.b32.xlu0 %v1874, 64
    %v1877 = vpop.permute.xlu0 %1876
    %v1879 = vadd.f32 %v1873, %v1877
    %v1880 = vtanh.pop %v1879
    %v1881 = vmul.f32 %v1840, %v1880
    %v1882 = vmul.f32 %v1855, %v1694
    %v1883 = vmul.f32 %v1855, %v1872
    %1885 = vrot.lane.b32.xlu0 %v1883, 64
    %v1886 = vpop.permute.xlu0 %1885
    %v1888 = vadd.f32 %v1882, %v1886
    %v1889 = vtanh.pop %v1888
    %v1890 = vmul.f32 %v1870, %v1889
    %v1891 = vpack.c.bf16 %v1881, %v1881
    %v1892 = vpack.c.bf16 %v1890, %v1890
    %v1893 = vld [vmem:[#allocation2 + $0x30] sm:$0xff]
    %1895 = vrot.lane.b32.xlu0 %v1891, 64
    %v1896 = vpop.permute.xlu0 %1895
    %v1898 = vsel %vm487, %v1896, 0
    %1900 = vmatpush.bf16.msra.mxu0 0
    %1901 = vmatpush.bf16.msra.mxu0 0
    %1902 = vmatpush.bf16.msra.mxu0 0
    %1903 = vmatpush.bf16.msra.mxu0 0
    %1904 = vmatpush.bf16.msra.mxu0 %v704
    %1905 = vmatpush.bf16.msra.mxu0 %v703
    %1906 = vmatpush.bf16.msra.mxu0 %v702
    %1907 = vmatpush.bf16.msra.mxu0 %v701
    %1908 = vmatmul.bf16.gmra.mxu0 %v1898
    %v1909 = vpop.f32.mrf.mxu0
    %v1910 = vadd.f32 0.0, %v1909
    %v1911 = vpop.f32.mrf.mxu0
    %1912 = vdwg.mxu0
    %v1913 = vadd.f32 %v1893, %v1910
    %1914 = vst [vmem:[#allocation2 + $0x30] sm:$0xff] %v1913
    %v1915 = vld [vmem:[#allocation2 + $0x8] sm:$0xff]
    %1917 = vrot.lane.b32.xlu0 %v1892, 64
    %v1918 = vpop.permute.xlu0 %1917
    %v1920 = vsel %vm487, %v1918, 0
    %1922 = vmatpush.bf16.msra.mxu0 0
    %1923 = vmatpush.bf16.msra.mxu0 0
    %1924 = vmatpush.bf16.msra.mxu0 0
    %1925 = vmatpush.bf16.msra.mxu0 0
    %1926 = vmatpush.bf16.msra.mxu0 %v750
    %1927 = vmatpush.bf16.msra.mxu0 %v749
    %1928 = vmatpush.bf16.msra.mxu0 %v748
    %1929 = vmatpush.bf16.msra.mxu0 %v747
    %1930 = vmatmul.bf16.gmra.mxu0 %v1920
    %v1931 = vpop.f32.mrf.mxu0
    %v1932 = vadd.f32 0.0, %v1931
    %v1933 = vpop.f32.mrf.mxu0
    %1934 = vdwg.mxu0
    %v1935 = vadd.f32 %v1915, %v1932
    %1936 = vst [vmem:[#allocation2 + $0x8] sm:$0xff] %v1935
    %1937 = vmatpush.bf16.msra.mxu0 0
    %1938 = vmatpush.bf16.msra.mxu0 0
    %1939 = vmatpush.bf16.msra.mxu0 0
    %1940 = vmatpush.bf16.msra.mxu0 0
    %1941 = vmatpush.bf16.msra.mxu0 %v477
    %1942 = vmatpush.bf16.msra.mxu0 %v475
    %1943 = vmatpush.bf16.msra.mxu0 %v473
    %1944 = vmatpush.bf16.msra.mxu0 %v471
    %1945 = vmatmul.bf16.gmra.mxu0 %v1898
    %v1946 = vpop.f32.mrf.mxu0
    %v1947 = vadd.f32 %v269, %v1946
    %v1948 = vpop.f32.mrf.mxu0
    %1949 = vdwg.mxu0
    %1950 = vmatpush.bf16.msra.mxu0 0
    %1951 = vmatpush.bf16.msra.mxu0 0
    %1952 = vmatpush.bf16.msra.mxu0 0
    %1953 = vmatpush.bf16.msra.mxu0 0
    %1954 = vmatpush.bf16.msra.mxu0 %v478
    %1955 = vmatpush.bf16.msra.mxu0 %v476
    %1956 = vmatpush.bf16.msra.mxu0 %v474
    %1957 = vmatpush.bf16.msra.mxu0 %v472
    %1958 = vmatmul.bf16.gmra.mxu0 %v1898
    %v1959 = vpop.f32.mrf.mxu0
    %v1960 = vadd.f32 %v298, %v1959
    %v1961 = vpop.f32.mrf.mxu0
    %1962 = vdwg.mxu0
    %1963 = vmatpush.bf16.msra.mxu0 0
    %1964 = vmatpush.bf16.msra.mxu0 0
    %1965 = vmatpush.bf16.msra.mxu0 0
    %1966 = vmatpush.bf16.msra.mxu0 0
    %1967 = vmatpush.bf16.msra.mxu0 %v547
    %1968 = vmatpush.bf16.msra.mxu0 %v545
    %1969 = vmatpush.bf16.msra.mxu0 %v543
    %1970 = vmatpush.bf16.msra.mxu0 %v541
    %1971 = vmatmul.bf16.gmra.mxu0 %v1920
    %v1972 = vpop.f32.mrf.mxu0
    %v1973 = vadd.f32 %v310, %v1972
    %v1974 = vpop.f32.mrf.mxu0
    %1975 = vdwg.mxu0
    %1976 = vmatpush.bf16.msra.mxu0 0
    %1977 = vmatpush.bf16.msra.mxu0 0
    %1978 = vmatpush.bf16.msra.mxu0 0
    %1979 = vmatpush.bf16.msra.mxu0 0
    %1980 = vmatpush.bf16.msra.mxu0 %v548
    %1981 = vmatpush.bf16.msra.mxu0 %v546
    %1982 = vmatpush.bf16.msra.mxu0 %v544
    %1983 = vmatpush.bf16.msra.mxu0 %v542
    %1984 = vmatmul.bf16.gmra.mxu0 %v1920
    %v1985 = vpop.f32.mrf.mxu0
    %v1986 = vadd.f32 %v339, %v1985
    %v1987 = vpop.f32.mrf.mxu0
    %1988 = vdwg.mxu0
    %v1989 = vxor.u32 %v1947, 2147483648
    %v1990 = vxor.u32 %v1960, 2147483648
    %v1991 = vxor.u32 %v1973, 2147483648
    %v1992 = vxor.u32 %v1986, 2147483648
    %v1993 = vmul.f32 %v1989, 1.442695
    %v1994 = vpow.pop %v1993
    %v1995 = vmul.f32 %v1990, 1.442695
    %v1996 = vpow.pop %v1995
    %v1997 = vmul.f32 %v1991, 1.442695
    %v1998 = vpow.pop %v1997
    %v1999 = vmul.f32 %v1992, 1.442695
    %v2000 = vpow.pop %v1999
    %v2001 = vadd.f32 %v1994, 1.0
    %v2002 = vadd.f32 %v1996, 1.0
    %v2003 = vadd.f32 %v1998, 1.0
    %v2004 = vadd.f32 %v2000, 1.0
    %v2005 = vrcp.pop %v2001
    %v2006 = vmul.f32 %v2001, %v2005
    %v2007 = vsub.f32 1.0, %v2006
    %v2008 = vmul.f32 %v2005, %v2007
    %v2009 = vadd.f32 %v2005, %v2008
    %vm2010 = vweird.f32 %v2001
    %vm2011 = vweird.f32 %v2005
    %vm2012 = vmor %vm2010, %vm2011
    %v2013 = vsel %vm2012, %v2005, %v2009
    %v2014 = vand.u32 2147483647, %v2001
    %vm2015 = vcmp.eq.f32.partialorder %v2014, 8.507059e+37
    %v2016 = vand.u32 %v2001, 2147483648
    %v2017 = vor.u32 1.1754944e-38, %v2016
    %v2018 = vsel %vm2015, %v2017, %v2013
    %v2019 = vmul.f32 1.0, %v2018
    %v2020 = vrcp.pop %v2002
    %v2021 = vmul.f32 %v2002, %v2020
    %v2022 = vsub.f32 1.0, %v2021
    %v2023 = vmul.f32 %v2020, %v2022
    %v2024 = vadd.f32 %v2020, %v2023
    %vm2025 = vweird.f32 %v2002
    %vm2026 = vweird.f32 %v2020
    %vm2027 = vmor %vm2025, %vm2026
    %v2028 = vsel %vm2027, %v2020, %v2024
    %v2029 = vand.u32 2147483647, %v2002
    %vm2030 = vcmp.eq.f32.partialorder %v2029, 8.507059e+37
    %v2031 = vand.u32 %v2002, 2147483648
    %v2032 = vor.u32 1.1754944e-38, %v2031
    %v2033 = vsel %vm2030, %v2032, %v2028
    %v2034 = vmul.f32 1.0, %v2033
    %v2035 = vrcp.pop %v2003
    %v2036 = vmul.f32 %v2003, %v2035
    %v2037 = vsub.f32 1.0, %v2036
    %v2038 = vmul.f32 %v2035, %v2037
    %v2039 = vadd.f32 %v2035, %v2038
    %vm2040 = vweird.f32 %v2003
    %vm2041 = vweird.f32 %v2035
    %vm2042 = vmor %vm2040, %vm2041
    %v2043 = vsel %vm2042, %v2035, %v2039
    %v2044 = vand.u32 2147483647, %v2003
    %vm2045 = vcmp.eq.f32.partialorder %v2044, 8.507059e+37
    %v2046 = vand.u32 %v2003, 2147483648
    %v2047 = vor.u32 1.1754944e-38, %v2046
    %v2048 = vsel %vm2045, %v2047, %v2043
    %v2049 = vmul.f32 1.0, %v2048
    %v2050 = vrcp.pop %v2004
    %v2051 = vmul.f32 %v2004, %v2050
    %v2052 = vsub.f32 1.0, %v2051
    %v2053 = vmul.f32 %v2050, %v2052
    %v2054 = vadd.f32 %v2050, %v2053
    %vm2055 = vweird.f32 %v2004
    %vm2056 = vweird.f32 %v2050
    %vm2057 = vmor %vm2055, %vm2056
    %v2058 = vsel %vm2057, %v2050, %v2054
    %v2059 = vand.u32 2147483647, %v2004
    %vm2060 = vcmp.eq.f32.partialorder %v2059, 8.507059e+37
    %v2061 = vand.u32 %v2004, 2147483648
    %v2062 = vor.u32 1.1754944e-38, %v2061
    %v2063 = vsel %vm2060, %v2062, %v2058
    %v2064 = vmul.f32 1.0, %v2063
    %v2065 = vtanh.pop %v1960
    %v2066 = vtanh.pop %v1986
    %v2067 = vmul.f32 %v2019, %v1879
    %v2068 = vmul.f32 %v2019, %v2065
    %2070 = vrot.lane.b32.xlu0 %v2068, 64
    %v2071 = vpop.permute.xlu0 %2070
    %v2073 = vadd.f32 %v2067, %v2071
    %v2074 = vtanh.pop %v2073
    %v2075 = vmul.f32 %v2034, %v2074
    %v2076 = vmul.f32 %v2049, %v1888
    %v2077 = vmul.f32 %v2049, %v2066
    %2079 = vrot.lane.b32.xlu0 %v2077, 64
    %v2080 = vpop.permute.xlu0 %2079
    %v2082 = vadd.f32 %v2076, %v2080
    %v2083 = vtanh.pop %v2082
    %v2084 = vmul.f32 %v2064, %v2083
    %v2085 = vpack.c.bf16 %v2075, %v2075
    %v2086 = vpack.c.bf16 %v2084, %v2084
    %v2087 = vld [vmem:[#allocation2 + $0x38] sm:$0xff]
    %2089 = vrot.lane.b32.xlu0 %v2085, 64
    %v2090 = vpop.permute.xlu0 %2089
    %v2092 = vsel %vm487, %v2090, 0
    %2094 = vmatpush.bf16.msra.mxu0 0
    %2095 = vmatpush.bf16.msra.mxu0 0
    %2096 = vmatpush.bf16.msra.mxu0 0
    %2097 = vmatpush.bf16.msra.mxu0 0
    %2098 = vmatpush.bf16.msra.mxu0 %v704
    %2099 = vmatpush.bf16.msra.mxu0 %v703
    %2100 = vmatpush.bf16.msra.mxu0 %v702
    %2101 = vmatpush.bf16.msra.mxu0 %v701
    %2102 = vmatmul.bf16.gmra.mxu0 %v2092
    %v2103 = vpop.f32.mrf.mxu0
    %v2104 = vadd.f32 0.0, %v2103
    %v2105 = vpop.f32.mrf.mxu0
    %2106 = vdwg.mxu0
    %v2107 = vadd.f32 %v2087, %v2104
    %2108 = vst [vmem:[#allocation2 + $0x38] sm:$0xff] %v2107
    %v2109 = vld [vmem:[#allocation2] sm:$0xff]
    %2111 = vrot.lane.b32.xlu0 %v2086, 64
    %v2112 = vpop.permute.xlu0 %2111
    %v2114 = vsel %vm487, %v2112, 0
    %2116 = vmatpush.bf16.msra.mxu0 0
    %2117 = vmatpush.bf16.msra.mxu0 0
    %2118 = vmatpush.bf16.msra.mxu0 0
    %2119 = vmatpush.bf16.msra.mxu0 0
    %2120 = vmatpush.bf16.msra.mxu0 %v750
    %2121 = vmatpush.bf16.msra.mxu0 %v749
    %2122 = vmatpush.bf16.msra.mxu0 %v748
    %2123 = vmatpush.bf16.msra.mxu0 %v747
    %2124 = vmatmul.bf16.gmra.mxu0 %v2114
    %v2125 = vpop.f32.mrf.mxu0
    %v2126 = vadd.f32 0.0, %v2125
    %v2127 = vpop.f32.mrf.mxu0
    %2128 = vdwg.mxu0
    %v2129 = vadd.f32 %v2109, %v2126
    %2130 = vst [vmem:[#allocation2] sm:$0xff] %v2129
    %v2131 = vld [vmem:[#allocation2] sm:$0xff]
    %v2132 = vld [vmem:[#allocation2 + $0x8] sm:$0xff]
    %v2133 = vld [vmem:[#allocation2 + $0x10] sm:$0xff]
    %v2134 = vld [vmem:[#allocation2 + $0x18] sm:$0xff]
    %v2135 = vld [vmem:[#allocation2 + $0x20] sm:$0xff]
    %v2136 = vld [vmem:[#allocation2 + $0x28] sm:$0xff]
    %v2137 = vld [vmem:[#allocation2 + $0x30] sm:$0xff]
    %v2138 = vld [vmem:[#allocation2 + $0x38] sm:$0xff]
    %v2139 = vtanh.pop %v2131
    %v2140 = vtanh.pop %v2132
    %v2141 = vtanh.pop %v2133
    %v2142 = vtanh.pop %v2134
    %v2143 = vtanh.pop %v2135
    %v2144 = vtanh.pop %v2136
    %v2145 = vtanh.pop %v2137
    %v2146 = vtanh.pop %v2138
    %v2147 = vmax.f32 %v2139, %v2140
    %v2148 = vmax.f32 %v2147, %v2141
    %v2149 = vmax.f32 %v2148, %v2142
    %v2150 = vmax.f32 %v2149, %v2143
    %v2151 = vmax.f32 %v2150, %v2144
    %v2152 = vmax.f32 %v2151, %v2145
    %v2153 = vmax.f32 %v2152, %v2146
    %v2154 = vpack.c.bf16 %v2153, %v2153
    %v2155 = vld [vmem:[#allocation10] sm:$0xf]
    %v2156 = vld [vmem:[#allocation10 + $0x4] sm:$0xf]
    %v2157 = vld [vmem:[#allocation10 + $0x8] sm:$0xf]
    %v2158 = vld [vmem:[#allocation10 + $0xc] sm:$0xf]
    %v2159 = vld [vmem:[#allocation10 + $0x10] sm:$0xf]
    %v2160 = vld [vmem:[#allocation10 + $0x14] sm:$0xf]
    %v2161 = vld [vmem:[#allocation10 + $0x18] sm:$0xf]
    %v2162 = vld [vmem:[#allocation10 + $0x1c] sm:$0xf]
    %v2163 = vld [vmem:[#allocation10 + $0x20] sm:$0xf]
    %v2164 = vld [vmem:[#allocation10 + $0x24] sm:$0xf]
    %v2165 = vld [vmem:[#allocation10 + $0x28] sm:$0xf]
    %v2166 = vld [vmem:[#allocation10 + $0x2c] sm:$0xf]
    %v2167 = vld [vmem:[#allocation10 + $0x30] sm:$0xf]
    %v2168 = vld [vmem:[#allocation10 + $0x34] sm:$0xf]
    %v2169 = vld [vmem:[#allocation10 + $0x38] sm:$0xf]
    %v2170 = vld [vmem:[#allocation10 + $0x3c] sm:$0xf]
    %v2171 = vld [vmem:[%s10] sm:$0x1]
    %v2173 = vperm.slane %v2171, 0
    %v2191 = vunpack.c.l.b16 %v2155
    %v2192 = vunpack.c.l.b16 %v2156
    %v2193 = vunpack.c.l.b16 %v2157
    %v2194 = vunpack.c.l.b16 %v2158
    %v2195 = vunpack.c.l.b16 %v2159
    %v2196 = vunpack.c.l.b16 %v2160
    %v2197 = vunpack.c.l.b16 %v2161
    %v2198 = vunpack.c.l.b16 %v2162
    %v2199 = vunpack.c.l.b16 %v2163
    %v2200 = vunpack.c.l.b16 %v2164
    %v2201 = vunpack.c.l.b16 %v2165
    %v2202 = vunpack.c.l.b16 %v2166
    %v2203 = vunpack.c.l.b16 %v2167
    %v2204 = vunpack.c.l.b16 %v2168
    %v2205 = vunpack.c.l.b16 %v2169
    %v2206 = vunpack.c.l.b16 %v2170
    %v2207 = vpack.c.b16 %v2192, %v2191
    %v2208 = vpack.c.b16 %v2194, %v2193
    %v2209 = vpack.c.b16 %v2196, %v2195
    %v2210 = vpack.c.b16 %v2198, %v2197
    %v2211 = vpack.c.b16 %v2200, %v2199
    %v2212 = vpack.c.b16 %v2202, %v2201
    %v2213 = vpack.c.b16 %v2204, %v2203
    %v2214 = vpack.c.b16 %v2206, %v2205
    %2223 = vmatpush.bf16.msra.mxu0 %v2214
    %2224 = vmatpush.bf16.msra.mxu0 %v2213
    %2225 = vmatpush.bf16.msra.mxu0 %v2212
    %2226 = vmatpush.bf16.msra.mxu0 %v2211
    %2227 = vmatpush.bf16.msra.mxu0 %v2210
    %2228 = vmatpush.bf16.msra.mxu0 %v2209
    %2229 = vmatpush.bf16.msra.mxu0 %v2208
    %2230 = vmatpush.bf16.msra.mxu0 %v2207
    %2231 = vmatmul.bf16.gmra.mxu0 %v2154
    %v2232 = vpop.f32.mrf.mxu0
    %v2233 = vadd.f32 %v2173, %v2232
    %v2234 = vpop.f32.mrf.mxu0
    %2235 = vdwg.mxu0
    %v2236 = vxor.u32 %v2233, 2147483648
    %v2237 = vmul.f32 %v2236, 1.442695
    %v2238 = vpow.pop %v2237
    %v2239 = vadd.f32 %v2238, 1.0
    %v2240 = vrcp.pop %v2239
    %v2241 = vmul.f32 %v2239, %v2240
    %v2242 = vsub.f32 1.0, %v2241
    %v2243 = vmul.f32 %v2240, %v2242
    %v2244 = vadd.f32 %v2240, %v2243
    %vm2245 = vweird.f32 %v2239
    %vm2246 = vweird.f32 %v2240
    %vm2247 = vmor %vm2245, %vm2246
    %v2248 = vsel %vm2247, %v2240, %v2244
    %v2249 = vand.u32 2147483647, %v2239
    %vm2250 = vcmp.eq.f32.partialorder %v2249, 8.507059e+37
    %v2251 = vand.u32 %v2239, 2147483648
    %v2252 = vor.u32 1.1754944e-38, %v2251
    %v2253 = vsel %vm2250, %v2252, %v2248
    %v2254 = vmul.f32 1.0, %v2253
    %2255 = vst [vmem:[%s11] sm:$0xff] %v2254
    // Predicated region
    $region66: #{text_mrcnn_forward.1} parent=1 // pred_check
      _
    $region67: #{text_mrcnn_forward.1} parent=1 // pred_check_branch
      %2257 = sbr.rel (0) target = $region69
    $region68: #{text_mrcnn_forward.1} parent=1 // pred_region
      _
    $region69: #{text_mrcnn_forward.1} parent=1 // pred_fallthru
      _
    // Predicated region
    $region70: #{text_mrcnn_forward.1} parent=1 // pred_check
      _
    $region71: #{text_mrcnn_forward.1} parent=1 // pred_check_branch
      %2259 = sbr.rel (0) target = $region73
    $region72: #{text_mrcnn_forward.1} parent=1 // pred_region
      _
    $region73: #{text_mrcnn_forward.1} parent=1 // pred_fallthru
      _
    %2260 = vsyncpa [#allocation4], 1
    %2261 = vsyncpa [#allocation6], 1
    %2262 = vsyncpa [#allocation9], 1

</llo_original>
